<compile_context>
chip_gen: v6e
topology: v6e:2x2x1
jax: 0.10.0
libtpu: 0.0.40
codegen_flags: <defaults>
</compile_context>

<pallas_src>
import math

import jax
import jax.numpy as jnp
from jax.experimental import pallas as pl
from jax.experimental.pallas import tpu as pltpu


# ---------------------------------------------------------------------------
# Plain-JAX glue (the torch.no_grad() sections): FPS, kNN, gathers.
# ---------------------------------------------------------------------------
def farthest_point_sample(xyz, npoint):
    """xyz: [B, N, 3] -> indices [B, npoint] (deterministic, starts at 0)."""
    B, N, _ = xyz.shape

    def body(i, state):
        dist, farthest, idxs = state
        idxs = idxs.at[:, i].set(farthest)
        centroid = jnp.take_along_axis(xyz, farthest[:, None, None], axis=1)
        d = jnp.sum((xyz - centroid) ** 2, axis=-1)
        dist = jnp.minimum(dist, d)
        farthest = jnp.argmax(dist, axis=-1).astype(jnp.int32)
        return dist, farthest, idxs

    dist0 = jnp.full((B, N), 1e10, dtype=jnp.float32)
    far0 = jnp.zeros((B,), dtype=jnp.int32)
    idxs0 = jnp.zeros((B, npoint), dtype=jnp.int32)
    _, _, idxs = jax.lax.fori_loop(0, npoint, body, (dist0, far0, idxs0))
    return idxs


def square_distance(src, dst):
    """src: [B, S, 3], dst: [B, N, 3] -> [B, S, N]."""
    return jnp.sum((src[:, :, None, :] - dst[:, None, :, :]) ** 2, axis=-1)


def index_points(points, idx):
    """points: [B, N, C]; idx: [B, S] or [B, S, K]."""
    if idx.ndim == 2:
        return jnp.take_along_axis(points, idx[..., None], axis=1)
    B, S, K = idx.shape
    flat = idx.reshape(B, S * K)
    out = jnp.take_along_axis(points, flat[..., None], axis=1)
    return out.reshape(B, S, K, points.shape[-1])


# ---------------------------------------------------------------------------
# Pallas kernel: full attention pipeline for TB batch elements per grid step.
# ---------------------------------------------------------------------------
# Square block-diagonal [128, 128] weight stack indices.
_I_D1, _I_D2, _I_Q1, _I_Q2, _I_G1A, _I_G1B, _I_G2A, _I_G2B, _I_C1, _I_C2 = range(10)
# Bias / folded-BN vector stack indices ([14, 128]).
(_V_BD1, _V_BD2, _V_BG1A, _V_BG1B, _V_BG2A, _V_BG2B, _V_BC1, _V_BC2,
 _V_BN0S, _V_BN0T, _V_BN1S, _V_BN1T, _V_BN2S, _V_BN2T) = range(14)


def _tsa_kernel(relp_ref, gpp_ref, cpp_ref, wsq_ref, wkv_ref, vs_ref,
                out_ref, pos_ref):
    RK, L = gpp_ref.shape[1], gpp_ref.shape[2]   # rows over (tb, m//G, k), 128
    RM = cpp_ref.shape[1]                        # rows over (tb, m//G)
    K = RK // RM                                 # neighbourhood size
    f32, bf16 = jnp.float32, jnp.bfloat16

    def dot(a, w):
        # bf16 MXU operands, f32 accumulation.
        return jnp.dot(a.astype(bf16), w, preferred_element_type=f32)

    def vrow(i):
        return vs_ref[i:i + 1, :]                # [1, 128] broadcast row

    # --- positional encoding MLP: Linear(3,D) -> ReLU -> Linear(D,D) --------
    # rel is zero-padded to D lanes per group in the wrapper; the first-layer
    # weight has matching zero rows, so this is one lane-dense MXU matmul.
    h = jnp.maximum(dot(relp_ref[0], wsq_ref[_I_D1]) + vrow(_V_BD1), 0.0)
    # Park pos in VMEM scratch; re-load per stage instead of holding it in
    # vregs across both attention stages.
    pos_ref[...] = dot(h, wsq_ref[_I_D2]) + vrow(_V_BD2)

    def attention(q, wkv, iwa, iba, iwb, ibb):
        # Stage-local fused K|V projection: [RK,128] x [128,256]; the two
        # halves split on the 128-lane tile boundary (free slices).
        kv = dot(gpp_ref[0], wkv)
        k = kv[:, :L].reshape(RM, K, L)
        v = kv[:, L:]
        pos = pos_ref[...]
        # fc_gamma(q - k + pos) -> softmax over neighbours -> weighted sum.
        x = (q[:, None, :] - k + pos.reshape(RM, K, L)).reshape(RK, L)
        hh = jnp.maximum(dot(x, wsq_ref[iwa]) + vrow(iba), 0.0)
        a = (dot(hh, wsq_ref[iwb]) + vrow(ibb)).reshape(RM, K, L)
        a = a - jnp.max(a, axis=1, keepdims=True)
        e = jnp.exp(a)                                     # lane-dense EUP
        num = jnp.sum(e * (v + pos).reshape(RM, K, L), axis=1)   # [RM, L]
        den = jnp.sum(e, axis=1)                                  # [RM, L]
        return num * pl.reciprocal(den, approx=False)

    cp = cpp_ref[0]                                        # raw centre feats

    # --- attention stage 1 ---------------------------------------------------
    q1 = dot(cp, wsq_ref[_I_Q1])
    res1 = attention(q1, wkv_ref[0], _I_G1A, _V_BG1A, _I_G1B, _V_BG1B)

    # conv1 (1x1, bn1 folded into weight/bias) -> relu -> conv2; residual; bnorm0
    t = jnp.maximum(dot(res1, wsq_ref[_I_C1]) + vrow(_V_BC1), 0.0)
    t = dot(t, wsq_ref[_I_C2]) + vrow(_V_BC2)
    res1 = (res1 + t) * vrow(_V_BN0S) + vrow(_V_BN0T)

    # --- attention stage 2 ---------------------------------------------------
    q2 = dot(res1, wsq_ref[_I_Q2])
    res2 = attention(q2, wkv_ref[1], _I_G2A, _V_BG2A, _I_G2B, _V_BG2B)

    out = (res1 + res2) * vrow(_V_BN1S) + vrow(_V_BN1T)    # bnorm1
    out = (out + cp) * vrow(_V_BN2S) + vrow(_V_BN2T)       # + centres, bnorm2
    out_ref[0] = out.astype(out_ref.dtype)                 # lane-dense slab


def _pick_batch_tile(B):
    """Largest divisor of B that keeps >= 2 grid steps (v7x dual TC)."""
    if B <= 1:
        return 1
    for tb in range(B // 2, 0, -1):
        if B % tb == 0:
            return tb
    return 1


def transformer_set_abstraction(xyz, points, params, npoint, nneigh,
                                batch_tile=None):
    B, N, _ = xyz.shape
    D = points.shape[-1]
    M, K = npoint, nneigh
    assert 128 % D == 0 and D >= 4, "dim must divide 128 (and be >= 4)"
    G = 128 // D                      # neighbourhoods packed per 128 lanes
    assert M % G == 0, "npoint must be a multiple of 128 // dim"
    Mg = M // G
    TB = _pick_batch_tile(B) if batch_tile is None else batch_tile
    assert B % TB == 0
    NB = B // TB
    L = G * D                         # 128

    # ---- no_grad sections: FPS + kNN + gathers (plain JAX glue) ------------
    fps_idx = farthest_point_sample(xyz, npoint)                  # [B, M]
    new_xyz = index_points(xyz, fps_idx)                          # [B, M, 3]
    dists = square_distance(new_xyz, xyz)                         # [B, M, N]
    _, idx = jax.lax.top_k(-dists, nneigh)                        # [B, M, K]

    # ---- lane-packing (layout plumbing, done once in the wrapper) ----------
    # gather order (m2, k, g) with m = m2*G + g  ->  row=(m2,k), lane=g*D+d
    idx_p = (idx.reshape(B, Mg, G, K).transpose(0, 1, 3, 2)
             .reshape(B, Mg * K * G))
    gxyz = jnp.take_along_axis(xyz, idx_p[..., None], axis=1
                               ).reshape(B, Mg, K, G, 3)
    gpts = jnp.take_along_axis(points, idx_p[..., None], axis=1
                               ).reshape(B, Mg, K, G, D)
    nxyz_p = new_xyz.reshape(B, Mg, G, 3)
    rel = gxyz - nxyz_p[:, :, None, :, :]                         # [B,Mg,K,G,3]
    relp = jnp.concatenate(
        [rel, jnp.zeros((B, Mg, K, G, D - 3), rel.dtype)], axis=-1)

    gpp = gpts.reshape(NB, TB * Mg * K, L)
    relp = relp.reshape(NB, TB * Mg * K, L)
    cpp = index_points(points, fps_idx).reshape(NB, TB * Mg, L)

    wsq = params["wsq"]        # [10, 128, 128] bf16 block-diagonal weights
    wkv = params["wkv"]        # [2, 128, 256]  bf16 fused (K|V) per stage
    vstack = params["vstack"]  # [14, 128]      f32 biases + folded BN affines

    # Advisory cost estimate so XLA schedules the FPS/kNN glue around us.
    rk, rm = B * Mg * K, B * Mg
    cost = pl.CostEstimate(
        flops=int(2 * L * L * (10 * rk + 4 * rm)),
        transcendentals=int(2 * L * (rk + rm)),
        bytes_accessed=int(4 * (gpp.size + relp.size + cpp.size + B * M * D)
                           + NB * (2 * wsq.size + 2 * wkv.size + 4 * vstack.size)))

    out_packed = pl.pallas_call(
        _tsa_kernel,
        out_shape=jax.ShapeDtypeStruct((NB, TB * Mg, L), points.dtype),
        grid=(NB,),
        in_specs=[
            pl.BlockSpec((1, TB * Mg * K, L), lambda b: (b, 0, 0)),  # relp
            pl.BlockSpec((1, TB * Mg * K, L), lambda b: (b, 0, 0)),  # gpp
            pl.BlockSpec((1, TB * Mg, L), lambda b: (b, 0, 0)),      # cpp
            pl.BlockSpec((10, L, L), lambda b: (0, 0, 0)),           # wsq
            pl.BlockSpec((2, L, 2 * L), lambda b: (0, 0, 0)),        # wkv
            pl.BlockSpec((14, L), lambda b: (0, 0)),                 # vstack
        ],
        out_specs=pl.BlockSpec((1, TB * Mg, L), lambda b: (b, 0, 0)),
        scratch_shapes=[pltpu.VMEM((TB * Mg * K, L), jnp.float32)],  # pos
        compiler_params=pltpu.CompilerParams(
            dimension_semantics=("parallel",)),
        cost_estimate=cost,
    )(relp, gpp, cpp, wsq, wkv, vstack)

    # unpack: [NB, TB*Mg, G*D] -> [B, M, D] (pure reshapes, m = m2*G + g)
    new_points = out_packed.reshape(B, Mg, G, D).reshape(B, M, D)
    return new_xyz, new_points


# ---------------------------------------------------------------------------
# Deterministic parameter init + packing (shapes from the module's __init__).
# ---------------------------------------------------------------------------
def init_params(key, dim):
    G = 128 // dim
    keys = iter(jax.random.split(key, 64))

    def lin(fan_in, fan_out):
        # weights generated directly in (in, out) orientation: kernel does x @ W
        return jax.random.normal(next(keys), (fan_in, fan_out), jnp.float32) * (
            1.0 / math.sqrt(fan_in))

    def vec(n):
        return jax.random.normal(next(keys), (n,), jnp.float32) * 0.1

    def bn_fold():
        gamma = 1.0 + 0.1 * jax.random.normal(next(keys), (dim,), jnp.float32)
        beta = 0.1 * jax.random.normal(next(keys), (dim,), jnp.float32)
        mean = 0.1 * jax.random.normal(next(keys), (dim,), jnp.float32)
        var = 1.0 + 0.1 * jnp.abs(jax.random.normal(next(keys), (dim,), jnp.float32))
        scale = gamma / jnp.sqrt(var + 1e-5)
        shift = beta - mean * scale
        return scale, shift

    raw = {}
    raw["W_Q1"], raw["W_K1"], raw["W_V1"] = lin(dim, dim), lin(dim, dim), lin(dim, dim)
    raw["W_Q2"], raw["W_K2"], raw["W_V2"] = lin(dim, dim), lin(dim, dim), lin(dim, dim)
    raw["W_D1"], raw["b_d1"] = lin(3, dim), vec(dim)       # fc_delta1[0]
    raw["W_D2"], raw["b_d2"] = lin(dim, dim), vec(dim)     # fc_delta1[2]
    raw["W_G1A"], raw["b_g1a"] = lin(dim, dim), vec(dim)   # fc_gamma1
    raw["W_G1B"], raw["b_g1b"] = lin(dim, dim), vec(dim)
    raw["W_G2A"], raw["b_g2a"] = lin(dim, dim), vec(dim)   # fc_gamma2
    raw["W_G2B"], raw["b_g2b"] = lin(dim, dim), vec(dim)
    raw["W_C1"], raw["b_c1"] = lin(dim, dim), vec(dim)     # conv1 (1x1)
    raw["W_C2"], raw["b_c2"] = lin(dim, dim), vec(dim)     # conv2 (1x1)
    raw["bn1_s"], raw["bn1_t"] = bn_fold()                 # bn1
    raw["bn0_s"], raw["bn0_t"] = bn_fold()                 # bnorm0
    raw["bnA_s"], raw["bnA_t"] = bn_fold()                 # bnorm1
    raw["bnB_s"], raw["bnB_t"] = bn_fold()                 # bnorm2

    # ---- parameter-time transforms (free at runtime) ------------------------
    # bn1 folded into conv1's weight/bias.
    W_C1f = raw["W_C1"] * raw["bn1_s"][None, :]
    b_c1f = raw["b_c1"] * raw["bn1_s"] + raw["bn1_t"]
    # fc_delta first layer zero-padded from 3 to dim input rows (matches the
    # zero-padded packed rel) so its contraction dim is lane-aligned.
    W_D1p = jnp.zeros((dim, dim), jnp.float32).at[:3, :].set(raw["W_D1"])

    eye = jnp.eye(G, dtype=jnp.float32)

    def bd(w):                        # block-diagonal replication over G groups
        return jnp.kron(eye, w)

    def tile(v):                      # per-channel vector tiled over G groups
        return jnp.tile(v, G)

    wsq = jnp.stack([bd(W_D1p), bd(raw["W_D2"]), bd(raw["W_Q1"]), bd(raw["W_Q2"]),
                     bd(raw["W_G1A"]), bd(raw["W_G1B"]), bd(raw["W_G2A"]),
                     bd(raw["W_G2B"]), bd(W_C1f), bd(raw["W_C2"])], axis=0)
    wkv = jnp.stack([
        jnp.concatenate([bd(raw["W_K1"]), bd(raw["W_V1"])], axis=1),
        jnp.concatenate([bd(raw["W_K2"]), bd(raw["W_V2"])], axis=1)], axis=0)
    vstack = jnp.stack([tile(raw["b_d1"]), tile(raw["b_d2"]),
                        tile(raw["b_g1a"]), tile(raw["b_g1b"]),
                        tile(raw["b_g2a"]), tile(raw["b_g2b"]),
                        tile(b_c1f), tile(raw["b_c2"]),
                        tile(raw["bn0_s"]), tile(raw["bn0_t"]),
                        tile(raw["bnA_s"]), tile(raw["bnA_t"]),
                        tile(raw["bnB_s"]), tile(raw["bnB_t"])], axis=0)

    params = {"wsq": wsq.astype(jnp.bfloat16),
              "wkv": wkv.astype(jnp.bfloat16),
              "vstack": vstack.astype(jnp.float32)}
    return params, raw


# ---------------------------------------------------------------------------
# Plain-JAX f32 reference of the module forward (for the parity check).
# ---------------------------------------------------------------------------
def reference_forward(xyz, points, raw, npoint, nneigh):
    fps_idx = farthest_point_sample(xyz, npoint)
    new_xyz = index_points(xyz, fps_idx)
    dists = square_distance(new_xyz, xyz)
    _, idx = jax.lax.top_k(-dists, nneigh)

    q = index_points(points @ raw["W_Q1"], fps_idx)
    k = index_points(points @ raw["W_K1"], idx)
    v = index_points(points @ raw["W_V1"], idx)
    gxyz = index_points(xyz, idx)
    rel = gxyz - new_xyz[:, :, None, :]
    pos = jnp.maximum(rel @ raw["W_D1"] + raw["b_d1"], 0.0) @ raw["W_D2"] + raw["b_d2"]

    def gamma(x, wa, ba, wb, bb):
        return jnp.maximum(x @ wa + ba, 0.0) @ wb + bb

    attn = jax.nn.softmax(gamma(q[:, :, None] - k + pos, raw["W_G1A"],
                                raw["b_g1a"], raw["W_G1B"], raw["b_g1b"]), axis=-2)
    res1 = jnp.einsum('bmnf,bmnf->bmf', attn, v + pos)

    t = res1 @ raw["W_C1"] + raw["b_c1"]
    t = jnp.maximum(t * raw["bn1_s"] + raw["bn1_t"], 0.0)
    t = t @ raw["W_C2"] + raw["b_c2"]
    res1 = (res1 + t) * raw["bn0_s"] + raw["bn0_t"]

    q2 = res1 @ raw["W_Q2"]
    k2 = index_points(points @ raw["W_K2"], idx)
    v2 = index_points(points @ raw["W_V2"], idx)
    attn2 = jax.nn.softmax(gamma(q2[:, :, None] - k2 + pos, raw["W_G2A"],
                                 raw["b_g2a"], raw["W_G2B"], raw["b_g2b"]), axis=-2)
    res2 = jnp.einsum('bmnf,bmnf->bmf', attn2, v2 + pos)

    out = (res1 + res2) * raw["bnA_s"] + raw["bnA_t"]
    out = (out + index_points(points, fps_idx)) * raw["bnB_s"] + raw["bnB_t"]
    return new_xyz, out


if __name__ == "__main__":
    B, N, DIM = 4, 128, 32
    NPOINT, NNEIGH = 32, 8            # G=4 -> 8 packed rows of 128 lanes per batch

    key = jax.random.PRNGKey(0)
    k_xyz, k_pts, k_par = jax.random.split(key, 3)
    xyz = jax.random.normal(k_xyz, (B, N, 3), jnp.float32)
    points = jax.random.normal(k_pts, (B, N, DIM), jnp.float32)
    params, raw = init_params(k_par, DIM)

    new_xyz, new_points = transformer_set_abstraction(
        xyz, points, params, NPOINT, NNEIGH)
    jax.block_until_ready((new_xyz, new_points))

    assert new_xyz.shape == (B, NPOINT, 3)
    assert new_points.shape == (B, NPOINT, DIM)
    assert bool(jnp.all(jnp.isfinite(new_points)))

    # Parity check vs the plain-JAX f32 reference (loose tolerance: kernel
    # matmuls use bf16 operands with f32 accumulation).
    ref_xyz, ref_points = reference_forward(xyz, points, raw, NPOINT, NNEIGH)
    assert bool(jnp.allclose(new_xyz, ref_xyz))
    err = float(jnp.max(jnp.abs(new_points - ref_points)))
    scale = float(jnp.max(jnp.abs(ref_points))) + 1e-6
    assert err <= 0.08 * scale + 0.08, (err, scale)

    print("KERNEL_OK")
</pallas_src>

<mosaic_0001>
module attributes {stable_mosaic.version = 11 : i64} {
  func.func @_tsa_kernel(%arg0: i32, %arg1: memref<1x128x128xf32, #tpu.memory_space<vmem>>, %arg2: memref<1x128x128xf32, #tpu.memory_space<vmem>>, %arg3: memref<1x16x128xf32, #tpu.memory_space<vmem>>, %arg4: memref<10x128x128xbf16, #tpu.memory_space<vmem>>, %arg5: memref<2x128x256xbf16, #tpu.memory_space<vmem>>, %arg6: memref<14x128xf32, #tpu.memory_space<vmem>>, %arg7: memref<1x16x128xf32, #tpu.memory_space<vmem>>, %arg8: memref<128x128xf32, #tpu.memory_space<vmem>>) attributes {dimension_semantics = [#tpu.dimension_semantics<parallel>], iteration_bounds = array<i64: 2>, scalar_prefetch = 0 : i64, scratch_operands = 1 : i64, tpu.core_type = #tpu.core_type<tc>, window_params = [{transform_indices = @transform_0, window_bounds = array<i64: 1, 128, 128>}, {transform_indices = @transform_1, window_bounds = array<i64: 1, 128, 128>}, {transform_indices = @transform_2, window_bounds = array<i64: 1, 16, 128>}, {pipeline_mode = #tpu.pipeline_mode<synchronous>, transform_indices = @transform_3, window_bounds = array<i64: 10, 128, 128>}, {pipeline_mode = #tpu.pipeline_mode<synchronous>, transform_indices = @transform_4, window_bounds = array<i64: 2, 128, 256>}, {pipeline_mode = #tpu.pipeline_mode<synchronous>, transform_indices = @transform_5, window_bounds = array<i64: 14, 128>}, {transform_indices = @transform_6, window_bounds = array<i64: 1, 16, 128>}]} {
    %c0 = arith.constant 0 : index
    %c0_0 = arith.constant 0 : index
    %c0_1 = arith.constant 0 : index
    %0 = vector.load %arg1[%c0, %c0_0, %c0_1] : memref<1x128x128xf32, #tpu.memory_space<vmem>>, vector<1x128x128xf32>
    %1 = vector.shape_cast %0 : vector<1x128x128xf32> to vector<128x128xf32>
    %c0_2 = arith.constant 0 : index
    %c0_3 = arith.constant 0 : index
    %c0_4 = arith.constant 0 : index
    %2 = vector.load %arg4[%c0_2, %c0_3, %c0_4] : memref<10x128x128xbf16, #tpu.memory_space<vmem>>, vector<1x128x128xbf16>
    %3 = vector.shape_cast %2 : vector<1x128x128xbf16> to vector<128x128xbf16>
    %4 = arith.truncf %1 : vector<128x128xf32> to vector<128x128xbf16>
    %cst = arith.constant dense<0.000000e+00> : vector<128x128xf32>
    %5 = tpu.matmul %4, %3, %cst {dimension_numbers = #tpu.dot_dimension_numbers<[1], [0], [0], [1], [0, 0, 1, 1], [], []>} : vector<128x128xbf16>, vector<128x128xbf16>, vector<128x128xf32> -> vector<128x128xf32>
    %c0_5 = arith.constant 0 : index
    %c0_6 = arith.constant 0 : index
    %6 = vector.load %arg6[%c0_5, %c0_6] : memref<14x128xf32, #tpu.memory_space<vmem>>, vector<1x128xf32>
    %7 = vector.broadcast %6 : vector<1x128xf32> to vector<128x128xf32>
    %8 = arith.addf %5, %7 : vector<128x128xf32>
    %cst_7 = arith.constant 0.000000e+00 : f32
    %9 = vector.broadcast %cst_7 : f32 to vector<128x128xf32>
    %10 = arith.maximumf %8, %9 : vector<128x128xf32>
    %c1 = arith.constant 1 : index
    %c0_8 = arith.constant 0 : index
    %c0_9 = arith.constant 0 : index
    %11 = vector.load %arg4[%c1, %c0_8, %c0_9] : memref<10x128x128xbf16, #tpu.memory_space<vmem>>, vector<1x128x128xbf16>
    %12 = vector.shape_cast %11 : vector<1x128x128xbf16> to vector<128x128xbf16>
    %13 = arith.truncf %10 : vector<128x128xf32> to vector<128x128xbf16>
    %cst_10 = arith.constant dense<0.000000e+00> : vector<128x128xf32>
    %14 = tpu.matmul %13, %12, %cst_10 {dimension_numbers = #tpu.dot_dimension_numbers<[1], [0], [0], [1], [0, 0, 1, 1], [], []>} : vector<128x128xbf16>, vector<128x128xbf16>, vector<128x128xf32> -> vector<128x128xf32>
    %c1_11 = arith.constant 1 : index
    %c0_12 = arith.constant 0 : index
    %15 = vector.load %arg6[%c1_11, %c0_12] : memref<14x128xf32, #tpu.memory_space<vmem>>, vector<1x128xf32>
    %16 = vector.broadcast %15 : vector<1x128xf32> to vector<128x128xf32>
    %17 = arith.addf %14, %16 : vector<128x128xf32>
    %c0_13 = arith.constant 0 : index
    %c0_14 = arith.constant 0 : index
    %18 = vector.load %arg8[%c0_13, %c0_14] : memref<128x128xf32, #tpu.memory_space<vmem>>, vector<128x128xf32>
    tpu.vector_store %arg8[%c0_13, %c0_14], %17 {strides = array<i32>} : memref<128x128xf32, #tpu.memory_space<vmem>>, vector<128x128xf32>,
    %c0_15 = arith.constant 0 : index
    %c0_16 = arith.constant 0 : index
    %c0_17 = arith.constant 0 : index
    %19 = vector.load %arg3[%c0_15, %c0_16, %c0_17] : memref<1x16x128xf32, #tpu.memory_space<vmem>>, vector<1x16x128xf32>
    %20 = vector.shape_cast %19 : vector<1x16x128xf32> to vector<16x128xf32>
    %c2 = arith.constant 2 : index
    %c0_18 = arith.constant 0 : index
    %c0_19 = arith.constant 0 : index
    %21 = vector.load %arg4[%c2, %c0_18, %c0_19] : memref<10x128x128xbf16, #tpu.memory_space<vmem>>, vector<1x128x128xbf16>
    %22 = vector.shape_cast %21 : vector<1x128x128xbf16> to vector<128x128xbf16>
    %23 = arith.truncf %20 : vector<16x128xf32> to vector<16x128xbf16>
    %cst_20 = arith.constant dense<0.000000e+00> : vector<16x128xf32>
    %24 = tpu.matmul %23, %22, %cst_20 {dimension_numbers = #tpu.dot_dimension_numbers<[1], [0], [0], [1], [0, 0, 1, 1], [], []>} : vector<16x128xbf16>, vector<128x128xbf16>, vector<16x128xf32> -> vector<16x128xf32>
    %c0_21 = arith.constant 0 : index
    %c0_22 = arith.constant 0 : index
    %c0_23 = arith.constant 0 : index
    %25 = vector.load %arg5[%c0_21, %c0_22, %c0_23] : memref<2x128x256xbf16, #tpu.memory_space<vmem>>, vector<1x128x256xbf16>
    %26 = vector.shape_cast %25 : vector<1x128x256xbf16> to vector<128x256xbf16>
    %c0_24 = arith.constant 0 : index
    %c0_25 = arith.constant 0 : index
    %c0_26 = arith.constant 0 : index
    %27 = vector.load %arg2[%c0_24, %c0_25, %c0_26] : memref<1x128x128xf32, #tpu.memory_space<vmem>>, vector<1x128x128xf32>
    %28 = vector.shape_cast %27 : vector<1x128x128xf32> to vector<128x128xf32>
    %29 = arith.truncf %28 : vector<128x128xf32> to vector<128x128xbf16>
    %cst_27 = arith.constant dense<0.000000e+00> : vector<128x256xf32>
    %30 = tpu.matmul %29, %26, %cst_27 {dimension_numbers = #tpu.dot_dimension_numbers<[1], [0], [0], [1], [0, 0, 1, 1], [], []>} : vector<128x128xbf16>, vector<128x256xbf16>, vector<128x256xf32> -> vector<128x256xf32>
    %31 = vector.extract_strided_slice %30 {offsets = [0, 0], sizes = [128, 128], strides = [1, 1]} : vector<128x256xf32> to vector<128x128xf32>
    %32 = vector.shape_cast %31 : vector<128x128xf32> to vector<16x8x128xf32>
    %33 = vector.extract_strided_slice %30 {offsets = [0, 128], sizes = [128, 128], strides = [1, 1]} : vector<128x256xf32> to vector<128x128xf32>
    %c0_28 = arith.constant 0 : index
    %c0_29 = arith.constant 0 : index
    %34 = vector.load %arg8[%c0_28, %c0_29] : memref<128x128xf32, #tpu.memory_space<vmem>>, vector<128x128xf32>
    %35 = vector.shape_cast %24 : vector<16x128xf32> to vector<16x1x128xf32>
    %36 = vector.broadcast %35 : vector<16x1x128xf32> to vector<16x8x128xf32>
    %37 = arith.subf %36, %32 : vector<16x8x128xf32>
    %38 = vector.shape_cast %34 : vector<128x128xf32> to vector<16x8x128xf32>
    %39 = arith.addf %37, %38 : vector<16x8x128xf32>
    %40 = vector.shape_cast %39 : vector<16x8x128xf32> to vector<128x128xf32>
    %c4 = arith.constant 4 : index
    %c0_30 = arith.constant 0 : index
    %c0_31 = arith.constant 0 : index
    %41 = vector.load %arg4[%c4, %c0_30, %c0_31] : memref<10x128x128xbf16, #tpu.memory_space<vmem>>, vector<1x128x128xbf16>
    %42 = vector.shape_cast %41 : vector<1x128x128xbf16> to vector<128x128xbf16>
    %43 = arith.truncf %40 : vector<128x128xf32> to vector<128x128xbf16>
    %cst_32 = arith.constant dense<0.000000e+00> : vector<128x128xf32>
    %44 = tpu.matmul %43, %42, %cst_32 {dimension_numbers = #tpu.dot_dimension_numbers<[1], [0], [0], [1], [0, 0, 1, 1], [], []>} : vector<128x128xbf16>, vector<128x128xbf16>, vector<128x128xf32> -> vector<128x128xf32>
    %c2_33 = arith.constant 2 : index
    %c0_34 = arith.constant 0 : index
    %45 = vector.load %arg6[%c2_33, %c0_34] : memref<14x128xf32, #tpu.memory_space<vmem>>, vector<1x128xf32>
    %46 = vector.broadcast %45 : vector<1x128xf32> to vector<128x128xf32>
    %47 = arith.addf %44, %46 : vector<128x128xf32>
    %cst_35 = arith.constant 0.000000e+00 : f32
    %48 = vector.broadcast %cst_35 : f32 to vector<128x128xf32>
    %49 = arith.maximumf %47, %48 : vector<128x128xf32>
    %c5 = arith.constant 5 : index
    %c0_36 = arith.constant 0 : index
    %c0_37 = arith.constant 0 : index
    %50 = vector.load %arg4[%c5, %c0_36, %c0_37] : memref<10x128x128xbf16, #tpu.memory_space<vmem>>, vector<1x128x128xbf16>
    %51 = vector.shape_cast %50 : vector<1x128x128xbf16> to vector<128x128xbf16>
    %52 = arith.truncf %49 : vector<128x128xf32> to vector<128x128xbf16>
    %cst_38 = arith.constant dense<0.000000e+00> : vector<128x128xf32>
    %53 = tpu.matmul %52, %51, %cst_38 {dimension_numbers = #tpu.dot_dimension_numbers<[1], [0], [0], [1], [0, 0, 1, 1], [], []>} : vector<128x128xbf16>, vector<128x128xbf16>, vector<128x128xf32> -> vector<128x128xf32>
    %c3 = arith.constant 3 : index
    %c0_39 = arith.constant 0 : index
    %54 = vector.load %arg6[%c3, %c0_39] : memref<14x128xf32, #tpu.memory_space<vmem>>, vector<1x128xf32>
    %55 = vector.broadcast %54 : vector<1x128xf32> to vector<128x128xf32>
    %56 = arith.addf %53, %55 : vector<128x128xf32>
    %57 = vector.shape_cast %56 : vector<128x128xf32> to vector<16x8x128xf32>
    %cst_40 = arith.constant dense<0xFF800000> : vector<16x128xf32>
    %58 = vector.multi_reduction <maximumf>, %57, %cst_40 [1] : vector<16x8x128xf32> to vector<16x128xf32>
    %59 = vector.shape_cast %58 : vector<16x128xf32> to vector<16x1x128xf32>
    %60 = vector.broadcast %59 : vector<16x1x128xf32> to vector<16x8x128xf32>
    %61 = arith.subf %57, %60 : vector<16x8x128xf32>
    %62 = math.exp %61 : vector<16x8x128xf32>
    %63 = arith.addf %33, %34 : vector<128x128xf32>
    %64 = vector.shape_cast %63 : vector<128x128xf32> to vector<16x8x128xf32>
    %65 = arith.mulf %62, %64 : vector<16x8x128xf32>
    %cst_41 = arith.constant dense<0.000000e+00> : vector<16x128xf32>
    %66 = vector.multi_reduction <add>, %65, %cst_41 [1] : vector<16x8x128xf32> to vector<16x128xf32>
    %cst_42 = arith.constant dense<0.000000e+00> : vector<16x128xf32>
    %67 = vector.multi_reduction <add>, %62, %cst_42 [1] : vector<16x8x128xf32> to vector<16x128xf32>
    %68 = tpu.reciprocal %67 : vector<16x128xf32> -> vector<16x128xf32>
    %69 = arith.mulf %66, %68 : vector<16x128xf32>
    %c8 = arith.constant 8 : index
    %c0_43 = arith.constant 0 : index
    %c0_44 = arith.constant 0 : index
    %70 = vector.load %arg4[%c8, %c0_43, %c0_44] : memref<10x128x128xbf16, #tpu.memory_space<vmem>>, vector<1x128x128xbf16>
    %71 = vector.shape_cast %70 : vector<1x128x128xbf16> to vector<128x128xbf16>
    %72 = arith.truncf %69 : vector<16x128xf32> to vector<16x128xbf16>
    %cst_45 = arith.constant dense<0.000000e+00> : vector<16x128xf32>
    %73 = tpu.matmul %72, %71, %cst_45 {dimension_numbers = #tpu.dot_dimension_numbers<[1], [0], [0], [1], [0, 0, 1, 1], [], []>} : vector<16x128xbf16>, vector<128x128xbf16>, vector<16x128xf32> -> vector<16x128xf32>
    %c6 = arith.constant 6 : index
    %c0_46 = arith.constant 0 : index
    %74 = vector.load %arg6[%c6, %c0_46] : memref<14x128xf32, #tpu.memory_space<vmem>>, vector<1x128xf32>
    %75 = vector.broadcast %74 : vector<1x128xf32> to vector<16x128xf32>
    %76 = arith.addf %73, %75 : vector<16x128xf32>
    %cst_47 = arith.constant 0.000000e+00 : f32
    %77 = vector.broadcast %cst_47 : f32 to vector<16x128xf32>
    %78 = arith.maximumf %76, %77 : vector<16x128xf32>
    %c9 = arith.constant 9 : index
    %c0_48 = arith.constant 0 : index
    %c0_49 = arith.constant 0 : index
    %79 = vector.load %arg4[%c9, %c0_48, %c0_49] : memref<10x128x128xbf16, #tpu.memory_space<vmem>>, vector<1x128x128xbf16>
    %80 = vector.shape_cast %79 : vector<1x128x128xbf16> to vector<128x128xbf16>
    %81 = arith.truncf %78 : vector<16x128xf32> to vector<16x128xbf16>
    %cst_50 = arith.constant dense<0.000000e+00> : vector<16x128xf32>
    %82 = tpu.matmul %81, %80, %cst_50 {dimension_numbers = #tpu.dot_dimension_numbers<[1], [0], [0], [1], [0, 0, 1, 1], [], []>} : vector<16x128xbf16>, vector<128x128xbf16>, vector<16x128xf32> -> vector<16x128xf32>
    %c7 = arith.constant 7 : index
    %c0_51 = arith.constant 0 : index
    %83 = vector.load %arg6[%c7, %c0_51] : memref<14x128xf32, #tpu.memory_space<vmem>>, vector<1x128xf32>
    %84 = vector.broadcast %83 : vector<1x128xf32> to vector<16x128xf32>
    %85 = arith.addf %82, %84 : vector<16x128xf32>
    %86 = arith.addf %69, %85 : vector<16x128xf32>
    %c8_52 = arith.constant 8 : index
    %c0_53 = arith.constant 0 : index
    %87 = vector.load %arg6[%c8_52, %c0_53] : memref<14x128xf32, #tpu.memory_space<vmem>>, vector<1x128xf32>
    %88 = vector.broadcast %87 : vector<1x128xf32> to vector<16x128xf32>
    %89 = arith.mulf %86, %88 : vector<16x128xf32>
    %c9_54 = arith.constant 9 : index
    %c0_55 = arith.constant 0 : index
    %90 = vector.load %arg6[%c9_54, %c0_55] : memref<14x128xf32, #tpu.memory_space<vmem>>, vector<1x128xf32>
    %91 = vector.broadcast %90 : vector<1x128xf32> to vector<16x128xf32>
    %92 = arith.addf %89, %91 : vector<16x128xf32>
    %c3_56 = arith.constant 3 : index
    %c0_57 = arith.constant 0 : index
    %c0_58 = arith.constant 0 : index
    %93 = vector.load %arg4[%c3_56, %c0_57, %c0_58] : memref<10x128x128xbf16, #tpu.memory_space<vmem>>, vector<1x128x128xbf16>
    %94 = vector.shape_cast %93 : vector<1x128x128xbf16> to vector<128x128xbf16>
    %95 = arith.truncf %92 : vector<16x128xf32> to vector<16x128xbf16>
    %cst_59 = arith.constant dense<0.000000e+00> : vector<16x128xf32>
    %96 = tpu.matmul %95, %94, %cst_59 {dimension_numbers = #tpu.dot_dimension_numbers<[1], [0], [0], [1], [0, 0, 1, 1], [], []>} : vector<16x128xbf16>, vector<128x128xbf16>, vector<16x128xf32> -> vector<16x128xf32>
    %c1_60 = arith.constant 1 : index
    %c0_61 = arith.constant 0 : index
    %c0_62 = arith.constant 0 : index
    %97 = vector.load %arg5[%c1_60, %c0_61, %c0_62] : memref<2x128x256xbf16, #tpu.memory_space<vmem>>, vector<1x128x256xbf16>
    %98 = vector.shape_cast %97 : vector<1x128x256xbf16> to vector<128x256xbf16>
    %c0_63 = arith.constant 0 : index
    %c0_64 = arith.constant 0 : index
    %c0_65 = arith.constant 0 : index
    %99 = vector.load %arg2[%c0_63, %c0_64, %c0_65] : memref<1x128x128xf32, #tpu.memory_space<vmem>>, vector<1x128x128xf32>
    %100 = vector.shape_cast %99 : vector<1x128x128xf32> to vector<128x128xf32>
    %101 = arith.truncf %100 : vector<128x128xf32> to vector<128x128xbf16>
    %cst_66 = arith.constant dense<0.000000e+00> : vector<128x256xf32>
    %102 = tpu.matmul %101, %98, %cst_66 {dimension_numbers = #tpu.dot_dimension_numbers<[1], [0], [0], [1], [0, 0, 1, 1], [], []>} : vector<128x128xbf16>, vector<128x256xbf16>, vector<128x256xf32> -> vector<128x256xf32>
    %103 = vector.extract_strided_slice %102 {offsets = [0, 0], sizes = [128, 128], strides = [1, 1]} : vector<128x256xf32> to vector<128x128xf32>
    %104 = vector.shape_cast %103 : vector<128x128xf32> to vector<16x8x128xf32>
    %105 = vector.extract_strided_slice %102 {offsets = [0, 128], sizes = [128, 128], strides = [1, 1]} : vector<128x256xf32> to vector<128x128xf32>
    %c0_67 = arith.constant 0 : index
    %c0_68 = arith.constant 0 : index
    %106 = vector.load %arg8[%c0_67, %c0_68] : memref<128x128xf32, #tpu.memory_space<vmem>>, vector<128x128xf32>
    %107 = vector.shape_cast %96 : vector<16x128xf32> to vector<16x1x128xf32>
    %108 = vector.broadcast %107 : vector<16x1x128xf32> to vector<16x8x128xf32>
    %109 = arith.subf %108, %104 : vector<16x8x128xf32>
    %110 = vector.shape_cast %106 : vector<128x128xf32> to vector<16x8x128xf32>
    %111 = arith.addf %109, %110 : vector<16x8x128xf32>
    %112 = vector.shape_cast %111 : vector<16x8x128xf32> to vector<128x128xf32>
    %c6_69 = arith.constant 6 : index
    %c0_70 = arith.constant 0 : index
    %c0_71 = arith.constant 0 : index
    %113 = vector.load %arg4[%c6_69, %c0_70, %c0_71] : memref<10x128x128xbf16, #tpu.memory_space<vmem>>, vector<1x128x128xbf16>
    %114 = vector.shape_cast %113 : vector<1x128x128xbf16> to vector<128x128xbf16>
    %115 = arith.truncf %112 : vector<128x128xf32> to vector<128x128xbf16>
    %cst_72 = arith.constant dense<0.000000e+00> : vector<128x128xf32>
    %116 = tpu.matmul %115, %114, %cst_72 {dimension_numbers = #tpu.dot_dimension_numbers<[1], [0], [0], [1], [0, 0, 1, 1], [], []>} : vector<128x128xbf16>, vector<128x128xbf16>, vector<128x128xf32> -> vector<128x128xf32>
    %c4_73 = arith.constant 4 : index
    %c0_74 = arith.constant 0 : index
    %117 = vector.load %arg6[%c4_73, %c0_74] : memref<14x128xf32, #tpu.memory_space<vmem>>, vector<1x128xf32>
    %118 = vector.broadcast %117 : vector<1x128xf32> to vector<128x128xf32>
    %119 = arith.addf %116, %118 : vector<128x128xf32>
    %cst_75 = arith.constant 0.000000e+00 : f32
    %120 = vector.broadcast %cst_75 : f32 to vector<128x128xf32>
    %121 = arith.maximumf %119, %120 : vector<128x128xf32>
    %c7_76 = arith.constant 7 : index
    %c0_77 = arith.constant 0 : index
    %c0_78 = arith.constant 0 : index
    %122 = vector.load %arg4[%c7_76, %c0_77, %c0_78] : memref<10x128x128xbf16, #tpu.memory_space<vmem>>, vector<1x128x128xbf16>
    %123 = vector.shape_cast %122 : vector<1x128x128xbf16> to vector<128x128xbf16>
    %124 = arith.truncf %121 : vector<128x128xf32> to vector<128x128xbf16>
    %cst_79 = arith.constant dense<0.000000e+00> : vector<128x128xf32>
    %125 = tpu.matmul %124, %123, %cst_79 {dimension_numbers = #tpu.dot_dimension_numbers<[1], [0], [0], [1], [0, 0, 1, 1], [], []>} : vector<128x128xbf16>, vector<128x128xbf16>, vector<128x128xf32> -> vector<128x128xf32>
    %c5_80 = arith.constant 5 : index
    %c0_81 = arith.constant 0 : index
    %126 = vector.load %arg6[%c5_80, %c0_81] : memref<14x128xf32, #tpu.memory_space<vmem>>, vector<1x128xf32>
    %127 = vector.broadcast %126 : vector<1x128xf32> to vector<128x128xf32>
    %128 = arith.addf %125, %127 : vector<128x128xf32>
    %129 = vector.shape_cast %128 : vector<128x128xf32> to vector<16x8x128xf32>
    %cst_82 = arith.constant dense<0xFF800000> : vector<16x128xf32>
    %130 = vector.multi_reduction <maximumf>, %129, %cst_82 [1] : vector<16x8x128xf32> to vector<16x128xf32>
    %131 = vector.shape_cast %130 : vector<16x128xf32> to vector<16x1x128xf32>
    %132 = vector.broadcast %131 : vector<16x1x128xf32> to vector<16x8x128xf32>
    %133 = arith.subf %129, %132 : vector<16x8x128xf32>
    %134 = math.exp %133 : vector<16x8x128xf32>
    %135 = arith.addf %105, %106 : vector<128x128xf32>
    %136 = vector.shape_cast %135 : vector<128x128xf32> to vector<16x8x128xf32>
    %137 = arith.mulf %134, %136 : vector<16x8x128xf32>
    %cst_83 = arith.constant dense<0.000000e+00> : vector<16x128xf32>
    %138 = vector.multi_reduction <add>, %137, %cst_83 [1] : vector<16x8x128xf32> to vector<16x128xf32>
    %cst_84 = arith.constant dense<0.000000e+00> : vector<16x128xf32>
    %139 = vector.multi_reduction <add>, %134, %cst_84 [1] : vector<16x8x128xf32> to vector<16x128xf32>
    %140 = tpu.reciprocal %139 : vector<16x128xf32> -> vector<16x128xf32>
    %141 = arith.mulf %138, %140 : vector<16x128xf32>
    %142 = arith.addf %92, %141 : vector<16x128xf32>
    %c10 = arith.constant 10 : index
    %c0_85 = arith.constant 0 : index
    %143 = vector.load %arg6[%c10, %c0_85] : memref<14x128xf32, #tpu.memory_space<vmem>>, vector<1x128xf32>
    %144 = vector.broadcast %143 : vector<1x128xf32> to vector<16x128xf32>
    %145 = arith.mulf %142, %144 : vector<16x128xf32>
    %c11 = arith.constant 11 : index
    %c0_86 = arith.constant 0 : index
    %146 = vector.load %arg6[%c11, %c0_86] : memref<14x128xf32, #tpu.memory_space<vmem>>, vector<1x128xf32>
    %147 = vector.broadcast %146 : vector<1x128xf32> to vector<16x128xf32>
    %148 = arith.addf %145, %147 : vector<16x128xf32>
    %149 = arith.addf %148, %20 : vector<16x128xf32>
    %c12 = arith.constant 12 : index
    %c0_87 = arith.constant 0 : index
    %150 = vector.load %arg6[%c12, %c0_87] : memref<14x128xf32, #tpu.memory_space<vmem>>, vector<1x128xf32>
    %151 = vector.broadcast %150 : vector<1x128xf32> to vector<16x128xf32>
    %152 = arith.mulf %149, %151 : vector<16x128xf32>
    %c13 = arith.constant 13 : index
    %c0_88 = arith.constant 0 : index
    %153 = vector.load %arg6[%c13, %c0_88] : memref<14x128xf32, #tpu.memory_space<vmem>>, vector<1x128xf32>
    %154 = vector.broadcast %153 : vector<1x128xf32> to vector<16x128xf32>
    %155 = arith.addf %152, %154 : vector<16x128xf32>
    %c0_89 = arith.constant 0 : index
    %c0_90 = arith.constant 0 : index
    %c0_91 = arith.constant 0 : index
    %156 = vector.load %arg7[%c0_89, %c0_90, %c0_91] : memref<1x16x128xf32, #tpu.memory_space<vmem>>, vector<1x16x128xf32>
    %157 = vector.shape_cast %156 : vector<1x16x128xf32> to vector<16x128xf32>
    %158 = vector.shape_cast %155 : vector<16x128xf32> to vector<1x16x128xf32>
    tpu.vector_store %arg7[%c0_89, %c0_90, %c0_91], %158 {strides = array<i32>} : memref<1x16x128xf32, #tpu.memory_space<vmem>>, vector<1x16x128xf32>,
    return
  }
  func.func @transform_0(%arg0: i32) -> (i32, i32, i32) {
    %c0_i32 = arith.constant 0 : i32
    %c0_i32_0 = arith.constant 0 : i32
    %c0_i32_1 = arith.constant 0 : i32
    return %arg0, %c0_i32, %c0_i32_0 : i32, i32, i32
  }
  func.func @transform_1(%arg0: i32) -> (i32, i32, i32) {
    %c0_i32 = arith.constant 0 : i32
    %c0_i32_0 = arith.constant 0 : i32
    %c0_i32_1 = arith.constant 0 : i32
    return %arg0, %c0_i32, %c0_i32_0 : i32, i32, i32
  }
  func.func @transform_2(%arg0: i32) -> (i32, i32, i32) {
    %c0_i32 = arith.constant 0 : i32
    %c0_i32_0 = arith.constant 0 : i32
    %c0_i32_1 = arith.constant 0 : i32
    return %arg0, %c0_i32, %c0_i32_0 : i32, i32, i32
  }
  func.func @transform_3(%arg0: i32) -> (i32, i32, i32) {
    %c0_i32 = arith.constant 0 : i32
    %c0_i32_0 = arith.constant 0 : i32
    %c0_i32_1 = arith.constant 0 : i32
    %c0_i32_2 = arith.constant 0 : i32
    return %c0_i32, %c0_i32_0, %c0_i32_1 : i32, i32, i32
  }
  func.func @transform_4(%arg0: i32) -> (i32, i32, i32) {
    %c0_i32 = arith.constant 0 : i32
    %c0_i32_0 = arith.constant 0 : i32
    %c0_i32_1 = arith.constant 0 : i32
    %c0_i32_2 = arith.constant 0 : i32
    return %c0_i32, %c0_i32_0, %c0_i32_1 : i32, i32, i32
  }
  func.func @transform_5(%arg0: i32) -> (i32, i32) {
    %c0_i32 = arith.constant 0 : i32
    %c0_i32_0 = arith.constant 0 : i32
    %c0_i32_1 = arith.constant 0 : i32
    return %c0_i32, %c0_i32_0 : i32, i32
  }
  func.func @transform_6(%arg0: i32) -> (i32, i32, i32) {
    %c0_i32 = arith.constant 0 : i32
    %c0_i32_0 = arith.constant 0 : i32
    %c0_i32_1 = arith.constant 0 : i32
    return %arg0, %c0_i32, %c0_i32_0 : i32, i32, i32
  }
}

</mosaic_0001>

<llo_original>
// kernel: tpu_custom_call.1
$region0: #{tpu_custom_call.1}
  #allocation0 [shape = 'u32[]', space=smem, size = 0x4, offset = 0x4, fixed_abs, tag = 'smem constant byte address 0x4 - core index']
  #allocation1 [shape = 'u32[144,128]{1,0:T(1,128)}', space=vmem, size = 0x12000, scoped, tag = 'internal scratch']
  #allocation2 [shape = 'f32[128,128]{1,0:T(8,128)}', space=vmem, size = 0x10000, scoped, tag = 'scratch operand']
  %s0 = inlined_call_operand.hbm [shape: f32[2,128,128], index: 0, kind: input, shape index: {}]
  %s1 = inlined_call_operand.hbm [shape: f32[2,128,128], index: 1, kind: input, shape index: {}]
  %s2 = inlined_call_operand.hbm [shape: f32[2,16,128], index: 2, kind: input, shape index: {}]
  %s3 = inlined_call_operand.hbm [shape: bf16[10,128,128], index: 3, kind: input, shape index: {}]
  %s4 = inlined_call_operand.hbm [shape: bf16[2,128,256], index: 4, kind: input, shape index: {}]
  %s5 = inlined_call_operand.hbm [shape: f32[14,128], index: 5, kind: input, shape index: {}]
  %s6 = inlined_call_operand.hbm [shape: f32[2,16,128], index: 6, kind: output, shape index: {}]
  %s7 = sld [smem:[#allocation0]]
  $region81: #{tpu_custom_call.1} parent=0
    _
  %s9 = ssub.s32 1, %s7
  %s10 = scalar_select 0, %s9, %s7
  $region1: #{tpu_custom_call.1} parent=0
    #allocation3 [shape = 'u8[131072]{0}', space=vmem, size = 0x20000, scoped, tag = 'input window, operand 0']
    #allocation4 [shape = 's32[2]{0}', space=sflag, size = 0x8, scoped, tag = 'scoped memory for tpu_custom_call.1']
    #allocation5 [shape = 's32[2]{0}', space=sflag, size = 0x8, scoped, tag = 'scoped memory for tpu_custom_call.1']
    #allocation6 [shape = 'u8[131072]{0}', space=vmem, size = 0x20000, scoped, tag = 'input window, operand 1']
    #allocation7 [shape = 's32[2]{0}', space=sflag, size = 0x8, scoped, tag = 'scoped memory for tpu_custom_call.1']
    #allocation8 [shape = 'u8[16384]{0}', space=vmem, size = 0x4000, scoped, tag = 'input window, operand 2']
    #allocation9 [shape = 'u8[327680]{0}', space=vmem, size = 0x50000, scoped, tag = 'input window, operand 3, single buffered']
    #allocation10 [shape = 's32[1]{0}', space=sflag, size = 0x4, scoped, tag = 'scoped memory for tpu_custom_call.1']
    #allocation11 [shape = 'u8[131072]{0}', space=vmem, size = 0x20000, scoped, tag = 'input window, operand 4, single buffered']
    #allocation12 [shape = 'u8[8192]{0}', space=vmem, size = 0x2000, scoped, tag = 'input window, operand 5, single buffered']
    #allocation13 [shape = 's32[1]{0}', space=sflag, size = 0x4, scoped, tag = 'scoped memory for tpu_custom_call.1']
    #allocation14 [shape = 'u8[16384]{0}', space=vmem, size = 0x4000, scoped, tag = 'output window, operand 0']
    %11 = vsyncpa [#allocation4], 0
    %s12 = scalar_lea.sflag [#allocation4], 1
    %13 = vsyncpa %s12, 0
    %14 = vsyncpa [#allocation7], 0
    %s15 = scalar_lea.sflag [#allocation7], 1
    %16 = vsyncpa %s15, 0
    %17 = vsyncpa [#allocation10], 0
    %18 = vsyncpa [#allocation13], 0
    %19 = vsyncpa [#allocation5], 0
    %s20 = scalar_lea.sflag [#allocation5], 1
    %21 = vsyncpa %s20, 0
    loop: start=0, step=1, limit=4
    $region2: #{tpu_custom_call.1} parent=1 // loop_pre_header
      _
    $region3: #{tpu_custom_call.1} parent=1 // loop_header
      %s23 = sphi 0, %s27
      %p24 = scmp.ge.s32.totalorder %s23, 4
      %s33 = sphi 0, %s35
      %s36 = sphi 0, %s33
      %s37 = sphi 0, %s36
      %s53 = sphi 0, %s37
      %s59 = sphi 0, %s61
      %s62 = sphi 0, %s59
      %s63 = sphi 0, %s62
      %s79 = sphi 0, %s63
      %s85 = sphi 0, %s87
      %s88 = sphi 0, %s85
      %s89 = sphi 0, %s88
      %s105 = sphi 0, %s89
      %s109 = sphi 0, %s109
      %s111 = sphi 0, %s109
      %s112 = sphi 0, %s111
      %s126 = sphi 0, %s112
      %s130 = sphi 0, %s130
      %s132 = sphi 0, %s130
      %s133 = sphi 0, %s132
      %s147 = sphi 0, %s133
      %s151 = sphi 0, %s151
      %s153 = sphi 0, %s151
      %s154 = sphi 0, %s153
      %s168 = sphi 0, %s154
      %s174 = sphi 0, %s176
      %s177 = sphi 0, %s174
      %s178 = sphi 0, %s177
      %s194 = sphi 0, %s178
    $region4: #{tpu_custom_call.1} parent=1 // loop_header_branch
      %26 = sbr.rel (%p24) target = $region8
    $region5: #{tpu_custom_call.1} parent=1 // loop_body
      %s28 = ssub.s32 %s23, 1
      %s29 = ssub.s32 %s23, 2
      %s30 = sadd.s32 %s23, 1
      %s31 = ssub.s32 %s23, %s30
      %p32 = scmp.eq.s32.totalorder %s31, 0
      %s34 = sadd.s32 %s33, 1
      %s35 = scalar_select %p32, %s33, %s34
      %p38 = pneg %p32
      %p39 = scmp.eq.s32.totalorder %s23, 1
      %p40 = por %p38, %p39
      %p41 = scmp.ne.s32.totalorder %s33, %s36
      %p42 = scmp.eq.s32.totalorder %s23, 0
      %p43 = por %p41, %p42
      %p44 = scmp.ne.s32.totalorder %s33, %s36
      %p45 = scmp.eq.s32.totalorder %s28, 1
      %p46 = por %p44, %p45
      %p47 = scmp.ne.s32.totalorder %s36, %s37
      %p48 = scmp.eq.s32.totalorder %s28, 0
      %p49 = por %p47, %p48
      %p50 = scmp.ne.s32.totalorder %s36, %s37
      %p51 = scmp.eq.s32.totalorder %s29, 1
      %p52 = por %p50, %p51
      %p54 = scmp.ne.s32.totalorder %s37, %s53
      %p55 = scmp.eq.s32.totalorder %s29, 0
      %p56 = por %p54, %p55
      %s57 = ssub.s32 %s23, %s30
      %p58 = scmp.eq.s32.totalorder %s57, 0
      %s60 = sadd.s32 %s59, 1
      %s61 = scalar_select %p58, %s59, %s60
      %p64 = pneg %p58
      %p65 = scmp.eq.s32.totalorder %s23, 1
      %p66 = por %p64, %p65
      %p67 = scmp.ne.s32.totalorder %s59, %s62
      %p68 = scmp.eq.s32.totalorder %s23, 0
      %p69 = por %p67, %p68
      %p70 = scmp.ne.s32.totalorder %s59, %s62
      %p71 = scmp.eq.s32.totalorder %s28, 1
      %p72 = por %p70, %p71
      %p73 = scmp.ne.s32.totalorder %s62, %s63
      %p74 = scmp.eq.s32.totalorder %s28, 0
      %p75 = por %p73, %p74
      %p76 = scmp.ne.s32.totalorder %s62, %s63
      %p77 = scmp.eq.s32.totalorder %s29, 1
      %p78 = por %p76, %p77
      %p80 = scmp.ne.s32.totalorder %s63, %s79
      %p81 = scmp.eq.s32.totalorder %s29, 0
      %p82 = por %p80, %p81
      %s83 = ssub.s32 %s23, %s30
      %p84 = scmp.eq.s32.totalorder %s83, 0
      %s86 = sadd.s32 %s85, 1
      %s87 = scalar_select %p84, %s85, %s86
      %p90 = pneg %p84
      %p91 = scmp.eq.s32.totalorder %s23, 1
      %p92 = por %p90, %p91
      %p93 = scmp.ne.s32.totalorder %s85, %s88
      %p94 = scmp.eq.s32.totalorder %s23, 0
      %p95 = por %p93, %p94
      %p96 = scmp.ne.s32.totalorder %s85, %s88
      %p97 = scmp.eq.s32.totalorder %s28, 1
      %p98 = por %p96, %p97
      %p99 = scmp.ne.s32.totalorder %s88, %s89
      %p100 = scmp.eq.s32.totalorder %s28, 0
      %p101 = por %p99, %p100
      %p102 = scmp.ne.s32.totalorder %s88, %s89
      %p103 = scmp.eq.s32.totalorder %s29, 1
      %p104 = por %p102, %p103
      %p106 = scmp.ne.s32.totalorder %s89, %s105
      %p107 = scmp.eq.s32.totalorder %s29, 0
      %p108 = por %p106, %p107
      %s110 = sadd.s32 %s109, 1
      %p113 = scmp.eq.s32.totalorder %s23, 1
      %p114 = scmp.ne.s32.totalorder %s109, %s111
      %p115 = scmp.eq.s32.totalorder %s23, 0
      %p116 = por %p114, %p115
      %p117 = scmp.ne.s32.totalorder %s109, %s111
      %p118 = scmp.eq.s32.totalorder %s28, 1
      %p119 = por %p117, %p118
      %p120 = scmp.ne.s32.totalorder %s111, %s112
      %p121 = scmp.eq.s32.totalorder %s28, 0
      %p122 = por %p120, %p121
      %p123 = scmp.ne.s32.totalorder %s111, %s112
      %p124 = scmp.eq.s32.totalorder %s29, 1
      %p125 = por %p123, %p124
      %p127 = scmp.ne.s32.totalorder %s112, %s126
      %p128 = scmp.eq.s32.totalorder %s29, 0
      %p129 = por %p127, %p128
      %s131 = sadd.s32 %s130, 1
      %p134 = scmp.eq.s32.totalorder %s23, 1
      %p135 = scmp.ne.s32.totalorder %s130, %s132
      %p136 = scmp.eq.s32.totalorder %s23, 0
      %p137 = por %p135, %p136
      %p138 = scmp.ne.s32.totalorder %s130, %s132
      %p139 = scmp.eq.s32.totalorder %s28, 1
      %p140 = por %p138, %p139
      %p141 = scmp.ne.s32.totalorder %s132, %s133
      %p142 = scmp.eq.s32.totalorder %s28, 0
      %p143 = por %p141, %p142
      %p144 = scmp.ne.s32.totalorder %s132, %s133
      %p145 = scmp.eq.s32.totalorder %s29, 1
      %p146 = por %p144, %p145
      %p148 = scmp.ne.s32.totalorder %s133, %s147
      %p149 = scmp.eq.s32.totalorder %s29, 0
      %p150 = por %p148, %p149
      %s152 = sadd.s32 %s151, 1
      %p155 = scmp.eq.s32.totalorder %s23, 1
      %p156 = scmp.ne.s32.totalorder %s151, %s153
      %p157 = scmp.eq.s32.totalorder %s23, 0
      %p158 = por %p156, %p157
      %p159 = scmp.ne.s32.totalorder %s151, %s153
      %p160 = scmp.eq.s32.totalorder %s28, 1
      %p161 = por %p159, %p160
      %p162 = scmp.ne.s32.totalorder %s153, %s154
      %p163 = scmp.eq.s32.totalorder %s28, 0
      %p164 = por %p162, %p163
      %p165 = scmp.ne.s32.totalorder %s153, %s154
      %p166 = scmp.eq.s32.totalorder %s29, 1
      %p167 = por %p165, %p166
      %p169 = scmp.ne.s32.totalorder %s154, %s168
      %p170 = scmp.eq.s32.totalorder %s29, 0
      %p171 = por %p169, %p170
      %s172 = ssub.s32 %s23, %s30
      %p173 = scmp.eq.s32.totalorder %s172, 0
      %s175 = sadd.s32 %s174, 1
      %s176 = scalar_select %p173, %s174, %s175
      %p179 = pneg %p173
      %p180 = scmp.eq.s32.totalorder %s23, 1
      %p181 = por %p179, %p180
      %p182 = scmp.ne.s32.totalorder %s174, %s177
      %p183 = scmp.eq.s32.totalorder %s23, 0
      %p184 = por %p182, %p183
      %p185 = scmp.ne.s32.totalorder %s174, %s177
      %p186 = scmp.eq.s32.totalorder %s28, 1
      %p187 = por %p185, %p186
      %p188 = scmp.ne.s32.totalorder %s177, %s178
      %p189 = scmp.eq.s32.totalorder %s28, 0
      %p190 = por %p188, %p189
      %p191 = scmp.ne.s32.totalorder %s177, %s178
      %p192 = scmp.eq.s32.totalorder %s29, 1
      %p193 = por %p191, %p192
      %p195 = scmp.ne.s32.totalorder %s178, %s194
      %p196 = scmp.eq.s32.totalorder %s29, 0
      %p197 = por %p195, %p196
      %p198 = scmp.le.s32.totalorder 1, %s23
      %p199 = scmp.lt.s32.totalorder %s23, 3
      %p200 = pnand %p198, %p199
      %p201 = pneg %p200
      // Predicated region
      $region9: #{tpu_custom_call.1} parent=5 // pred_check
        _
      $region10: #{tpu_custom_call.1} parent=5 // pred_check_branch
        %203 = sbr.rel (%p200) target = $region12
      $region11: #{tpu_custom_call.1} parent=5 // pred_region
        %s204 = ssub.s32 %s23, 1
        // Predicated region
        $region13: #{tpu_custom_call.1} parent=11 // pred_check
          %p205 = pneg %p122
        $region14: #{tpu_custom_call.1} parent=11 // pred_check_branch
          %207 = sbr.rel (%p205) target = $region16
        $region15: #{tpu_custom_call.1} parent=11 // pred_region
          %s209 = ssub.s32 10240, 10240
          %210 = vsyncadd [#allocation10], %s209
          %s211 = sshll.u32 [#allocation9], 4
          %s212 = int_to_ptr.vmem [resolvable:$true] %s211
          %217 = dma.hbm_to_vmem [thread:$0]  %s3, 10240, %s212, [#allocation10], 64, 64, 4
        $region16: #{tpu_custom_call.1} parent=11 // pred_fallthru
          _
        // Predicated region
        $region17: #{tpu_custom_call.1} parent=11 // pred_check
          %p218 = pneg %p143
        $region18: #{tpu_custom_call.1} parent=11 // pred_check_branch
          %220 = sbr.rel (%p218) target = $region20
        $region19: #{tpu_custom_call.1} parent=11 // pred_region
          %s222 = ssub.s32 4096, 4096
          %223 = vsyncadd [#allocation10], %s222
          %s224 = sshll.u32 [#allocation11], 4
          %s225 = int_to_ptr.vmem [resolvable:$true] %s224
          %230 = dma.hbm_to_vmem [thread:$0]  %s4, 4096, %s225, [#allocation10], 128, 128, 8
        $region20: #{tpu_custom_call.1} parent=11 // pred_fallthru
          _
        // Predicated region
        $region21: #{tpu_custom_call.1} parent=11 // pred_check
          %p231 = pneg %p164
        $region22: #{tpu_custom_call.1} parent=11 // pred_check_branch
          %233 = sbr.rel (%p231) target = $region24
        $region23: #{tpu_custom_call.1} parent=11 // pred_region
          %s235 = ssub.s32 256, 256
          %236 = vsyncadd [#allocation13], %s235
          %s237 = sshll.u32 [#allocation12], 4
          %s238 = int_to_ptr.vmem [resolvable:$true] %s237
          %243 = dma.hbm_to_vmem [thread:$0]  %s5, 256, %s238, [#allocation13], 128, 128, 8
        $region24: #{tpu_custom_call.1} parent=11 // pred_fallthru
          _
      $region12: #{tpu_custom_call.1} parent=5 // pred_fallthru
        _
      %p244 = scmp.lt.s32.totalorder %s23, 2
      // Predicated region
      $region25: #{tpu_custom_call.1} parent=5 // pred_check
        %p245 = pneg %p244
      $region26: #{tpu_custom_call.1} parent=5 // pred_check_branch
        %247 = sbr.rel (%p245) target = $region28
      $region27: #{tpu_custom_call.1} parent=5 // pred_region
        // Predicated region
        $region29: #{tpu_custom_call.1} parent=27 // pred_check
          %p248 = pneg %p43
        $region30: #{tpu_custom_call.1} parent=27 // pred_check_branch
          %250 = sbr.rel (%p248) target = $region32
        $region31: #{tpu_custom_call.1} parent=27 // pred_region
          %s251 = sand.u32 %s33, 1
          %s252 = scalar_lea.sflag [#allocation4], %s251
          %s253 = sand.u32 %s33, 1
          %s254 = smul.addr %s253, 128
          %s255 = scalar_lea.vmem [#allocation3], %s254
          %s257 = ssub.s32 2048, 2048
          %258 = vsyncadd %s252, %s257
          %s259 = smul.addr %s23, 16
          %s260 = smul.addr %s259, 128
          %s261 = scalar_lea.hbm %s0, %s260
          %s262 = sshll.u32 %s255, 4
          %s263 = int_to_ptr.vmem [resolvable:$true] %s262
          %268 = dma.hbm_to_vmem [thread:$0]  %s261, 2048, %s263, %s252, 128, 128, 8
        $region32: #{tpu_custom_call.1} parent=27 // pred_fallthru
          _
        // Predicated region
        $region33: #{tpu_custom_call.1} parent=27 // pred_check
          %p269 = pneg %p69
        $region34: #{tpu_custom_call.1} parent=27 // pred_check_branch
          %271 = sbr.rel (%p269) target = $region36
        $region35: #{tpu_custom_call.1} parent=27 // pred_region
          %s272 = sand.u32 %s23, 1
          %s273 = scalar_lea.sflag [#allocation7], %s272
          %s274 = sand.u32 %s59, 1
          %s275 = smul.addr %s274, 128
          %s276 = scalar_lea.vmem [#allocation6], %s275
          %s278 = ssub.s32 2048, 2048
          %279 = vsyncadd %s273, %s278
          %s280 = smul.addr %s23, 16
          %s281 = smul.addr %s280, 128
          %s282 = scalar_lea.hbm %s1, %s281
          %s283 = sshll.u32 %s276, 4
          %s284 = int_to_ptr.vmem [resolvable:$true] %s283
          %289 = dma.hbm_to_vmem [thread:$0]  %s282, 2048, %s284, %s273, 128, 128, 8
        $region36: #{tpu_custom_call.1} parent=27 // pred_fallthru
          _
        // Predicated region
        $region37: #{tpu_custom_call.1} parent=27 // pred_check
          %p290 = pneg %p95
        $region38: #{tpu_custom_call.1} parent=27 // pred_check_branch
          %292 = sbr.rel (%p290) target = $region40
        $region39: #{tpu_custom_call.1} parent=27 // pred_region
          %s293 = sand.u32 %s23, 1
          %s294 = scalar_lea.sflag [#allocation7], %s293
          %s295 = sand.u32 %s85, 1
          %s296 = smul.addr %s295, 16
          %s297 = scalar_lea.vmem [#allocation8], %s296
          %s299 = ssub.s32 256, 256
          %300 = vsyncadd %s294, %s299
          %s301 = smul.addr %s23, 2
          %s302 = smul.addr %s301, 128
          %s303 = scalar_lea.hbm %s2, %s302
          %s304 = sshll.u32 %s297, 4
          %s305 = int_to_ptr.vmem [resolvable:$true] %s304
          %310 = dma.hbm_to_vmem [thread:$0]  %s303, 256, %s305, %s294, 128, 128, 8
        $region40: #{tpu_custom_call.1} parent=27 // pred_fallthru
          _
      $region28: #{tpu_custom_call.1} parent=5 // pred_fallthru
        _
      %p311 = scmp.le.s32.totalorder 1, %s23
      %p312 = scmp.lt.s32.totalorder %s23, 3
      %p313 = pnand %p311, %p312
      %p314 = pneg %p313
      // Predicated region
      $region41: #{tpu_custom_call.1} parent=5 // pred_check
        _
      $region42: #{tpu_custom_call.1} parent=5 // pred_check_branch
        %316 = sbr.rel (%p313) target = $region44
      $region43: #{tpu_custom_call.1} parent=5 // pred_region
        %s317 = ssub.s32 %s23, 1
        %s318 = sand.u32 %s36, 1
        %s319 = scalar_lea.sflag [#allocation4], %s318
        %s320 = sand.u32 %s36, 1
        %s321 = smul.addr %s320, 128
        %s322 = scalar_lea.vmem [#allocation3], %s321
        // Predicated region
        $region45: #{tpu_custom_call.1} parent=43 // pred_check
          %p323 = pneg %p49
        $region46: #{tpu_custom_call.1} parent=43 // pred_check_branch
          %325 = sbr.rel (%p323) target = $region48
        $region47: #{tpu_custom_call.1} parent=43 // pred_region
          %326 = dma.done %s319, 2048
        $region48: #{tpu_custom_call.1} parent=43 // pred_fallthru
          _
        %s327 = sand.u32 %s28, 1
        %s328 = scalar_lea.sflag [#allocation7], %s327
        %s329 = sand.u32 %s62, 1
        %s330 = smul.addr %s329, 128
        %s331 = scalar_lea.vmem [#allocation6], %s330
        // Predicated region
        $region49: #{tpu_custom_call.1} parent=43 // pred_check
          %p332 = pneg %p75
        $region50: #{tpu_custom_call.1} parent=43 // pred_check_branch
          %334 = sbr.rel (%p332) target = $region52
        $region51: #{tpu_custom_call.1} parent=43 // pred_region
          %335 = dma.done %s328, 2048
        $region52: #{tpu_custom_call.1} parent=43 // pred_fallthru
          _
        %s336 = sand.u32 %s28, 1
        %s337 = scalar_lea.sflag [#allocation7], %s336
        %s338 = sand.u32 %s88, 1
        %s339 = smul.addr %s338, 16
        %s340 = scalar_lea.vmem [#allocation8], %s339
        // Predicated region
        $region53: #{tpu_custom_call.1} parent=43 // pred_check
          %p341 = pneg %p101
        $region54: #{tpu_custom_call.1} parent=43 // pred_check_branch
          %343 = sbr.rel (%p341) target = $region56
        $region55: #{tpu_custom_call.1} parent=43 // pred_region
          %344 = dma.done %s337, 256
        $region56: #{tpu_custom_call.1} parent=43 // pred_fallthru
          _
        // Predicated region
        $region57: #{tpu_custom_call.1} parent=43 // pred_check
          %p345 = pneg %p122
        $region58: #{tpu_custom_call.1} parent=43 // pred_check_branch
          %347 = sbr.rel (%p345) target = $region60
        $region59: #{tpu_custom_call.1} parent=43 // pred_region
          %348 = dma.done [#allocation10], 10240
        $region60: #{tpu_custom_call.1} parent=43 // pred_fallthru
          _
        // Predicated region
        $region61: #{tpu_custom_call.1} parent=43 // pred_check
          %p349 = pneg %p143
        $region62: #{tpu_custom_call.1} parent=43 // pred_check_branch
          %351 = sbr.rel (%p349) target = $region64
        $region63: #{tpu_custom_call.1} parent=43 // pred_region
          %352 = dma.done [#allocation10], 4096
        $region64: #{tpu_custom_call.1} parent=43 // pred_fallthru
          _
        // Predicated region
        $region65: #{tpu_custom_call.1} parent=43 // pred_check
          %p353 = pneg %p164
        $region66: #{tpu_custom_call.1} parent=43 // pred_check_branch
          %355 = sbr.rel (%p353) target = $region68
        $region67: #{tpu_custom_call.1} parent=43 // pred_region
          %356 = dma.done [#allocation13], 256
        $region68: #{tpu_custom_call.1} parent=43 // pred_fallthru
          _
        %s357 = sand.u32 %s36, 1
        %s358 = scalar_lea.sflag [#allocation4], %s357
        %s359 = sand.u32 %s36, 1
        %s360 = smul.addr %s359, 128
        %s361 = scalar_lea.vmem [#allocation3], %s360
        %p362 = pneg %p49
        %p363 = pneg %p46
        %s364 = sand.u32 %s28, 1
        %s365 = scalar_lea.sflag [#allocation7], %s364
        %s366 = sand.u32 %s62, 1
        %s367 = smul.addr %s366, 128
        %s368 = scalar_lea.vmem [#allocation6], %s367
        %p369 = pneg %p75
        %p370 = pneg %p72
        %s371 = sand.u32 %s28, 1
        %s372 = scalar_lea.sflag [#allocation7], %s371
        %s373 = sand.u32 %s88, 1
        %s374 = smul.addr %s373, 16
        %s375 = scalar_lea.vmem [#allocation8], %s374
        %p376 = pneg %p101
        %p377 = pneg %p98
        %p378 = pneg %p122
        %p379 = pneg %p119
        %p380 = pneg %p143
        %p381 = pneg %p140
        %p382 = pneg %p164
        %p383 = pneg %p161
        %p384 = pneg %p190
        %p385 = pneg %p187
        %s386 = sand.u32 %s177, 1
        %s387 = scalar_lea.sflag [#allocation5], %s386
        %s388 = sand.u32 %s177, 1
        %s389 = smul.addr %s388, 16
        %s390 = scalar_lea.vmem [#allocation14], %s389
        %v392 = vld [vmem:[%s322] sm:$0xff]
        %v393 = vld [vmem:[%s322 + $0x8] sm:$0xff]
        %v394 = vld [vmem:[%s322 + $0x10] sm:$0xff]
        %v395 = vld [vmem:[%s322 + $0x18] sm:$0xff]
        %v396 = vld [vmem:[%s322 + $0x20] sm:$0xff]
        %v397 = vld [vmem:[%s322 + $0x28] sm:$0xff]
        %v398 = vld [vmem:[%s322 + $0x30] sm:$0xff]
        %v399 = vld [vmem:[%s322 + $0x38] sm:$0xff]
        %v400 = vld [vmem:[%s322 + $0x40] sm:$0xff]
        %v401 = vld [vmem:[%s322 + $0x48] sm:$0xff]
        %v402 = vld [vmem:[%s322 + $0x50] sm:$0xff]
        %v403 = vld [vmem:[%s322 + $0x58] sm:$0xff]
        %v404 = vld [vmem:[%s322 + $0x60] sm:$0xff]
        %v405 = vld [vmem:[%s322 + $0x68] sm:$0xff]
        %v406 = vld [vmem:[%s322 + $0x70] sm:$0xff]
        %v407 = vld [vmem:[%s322 + $0x78] sm:$0xff]
        %v408 = vld [vmem:[#allocation9] sm:$0xf]
        %v409 = vld [vmem:[#allocation9 + $0x4] sm:$0xf]
        %v410 = vld [vmem:[#allocation9 + $0x8] sm:$0xf]
        %v411 = vld [vmem:[#allocation9 + $0xc] sm:$0xf]
        %v412 = vld [vmem:[#allocation9 + $0x10] sm:$0xf]
        %v413 = vld [vmem:[#allocation9 + $0x14] sm:$0xf]
        %v414 = vld [vmem:[#allocation9 + $0x18] sm:$0xf]
        %v415 = vld [vmem:[#allocation9 + $0x1c] sm:$0xf]
        %v416 = vld [vmem:[#allocation9 + $0x20] sm:$0xf]
        %v417 = vld [vmem:[#allocation9 + $0x24] sm:$0xf]
        %v418 = vld [vmem:[#allocation9 + $0x28] sm:$0xf]
        %v419 = vld [vmem:[#allocation9 + $0x2c] sm:$0xf]
        %v420 = vld [vmem:[#allocation9 + $0x30] sm:$0xf]
        %v421 = vld [vmem:[#allocation9 + $0x34] sm:$0xf]
        %v422 = vld [vmem:[#allocation9 + $0x38] sm:$0xf]
        %v423 = vld [vmem:[#allocation9 + $0x3c] sm:$0xf]
        %v424 = vpack.c.bf16 %v393, %v392
        %v425 = vpack.c.bf16 %v395, %v394
        %v426 = vpack.c.bf16 %v397, %v396
        %v427 = vpack.c.bf16 %v399, %v398
        %v428 = vpack.c.bf16 %v401, %v400
        %v429 = vpack.c.bf16 %v403, %v402
        %v430 = vpack.c.bf16 %v405, %v404
        %v431 = vpack.c.bf16 %v407, %v406
        %v432 = vld [vmem:[#allocation12] sm:$0x1]
        %v433 = vlaneseq
        %v434 = vshrl.u32 %v433, 7
        %v435 = vsub.s32 0, %v434
        %v436 = vrot.slane %v432, %v435
        %v453 = vunpack.c.l.b16 %v408
        %v454 = vunpack.c.l.b16 %v409
        %v455 = vunpack.c.l.b16 %v410
        %v456 = vunpack.c.l.b16 %v411
        %v457 = vunpack.c.l.b16 %v412
        %v458 = vunpack.c.l.b16 %v413
        %v459 = vunpack.c.l.b16 %v414
        %v460 = vunpack.c.l.b16 %v415
        %v461 = vunpack.c.l.b16 %v416
        %v462 = vunpack.c.l.b16 %v417
        %v463 = vunpack.c.l.b16 %v418
        %v464 = vunpack.c.l.b16 %v419
        %v465 = vunpack.c.l.b16 %v420
        %v466 = vunpack.c.l.b16 %v421
        %v467 = vunpack.c.l.b16 %v422
        %v468 = vunpack.c.l.b16 %v423
        %v469 = vpack.c.b16 %v454, %v453
        %v470 = vpack.c.b16 %v456, %v455
        %v471 = vpack.c.b16 %v458, %v457
        %v472 = vpack.c.b16 %v460, %v459
        %v473 = vpack.c.b16 %v462, %v461
        %v474 = vpack.c.b16 %v464, %v463
        %v475 = vpack.c.b16 %v466, %v465
        %v476 = vpack.c.b16 %v468, %v467
        %485 = vmatprep.subr.bf16.mxu0 0
        %486 = vmatpush1.bf16.msra.mxu0 %v476
        %487 = vmatprep.subr.bf16.mxu0 0
        %488 = vmatpush1.bf16.msra.mxu0 %v475
        %489 = vmatprep.subr.bf16.mxu0 0
        %490 = vmatpush1.bf16.msra.mxu0 %v474
        %491 = vmatprep.subr.bf16.mxu0 0
        %492 = vmatpush1.bf16.msra.mxu0 %v473
        %493 = vmatprep.subr.bf16.mxu0 0
        %494 = vmatpush1.bf16.msra.mxu0 %v472
        %495 = vmatprep.subr.bf16.mxu0 0
        %496 = vmatpush1.bf16.msra.mxu0 %v471
        %497 = vmatprep.subr.bf16.mxu0 0
        %498 = vmatpush1.bf16.msra.mxu0 %v470
        %499 = vmatprep.subr.bf16.mxu0 0
        %500 = vmatpush1.bf16.msra.mxu0 %v469
        %501 = vmatprep.subr.bf16.mxu0 0
        %502 = vmatpush2.bf16.msra.mxu0 0
        %503 = vmatprep.subr.bf16.mxu0 0
        %504 = vmatpush2.bf16.msra.mxu0 0
        %505 = vmatprep.subr.bf16.mxu0 0
        %506 = vmatpush2.bf16.msra.mxu0 0
        %507 = vmatprep.subr.bf16.mxu0 0
        %508 = vmatpush2.bf16.msra.mxu0 0
        %509 = vmatprep.subr.bf16.mxu0 0
        %510 = vmatpush2.bf16.msra.mxu0 0
        %511 = vmatprep.subr.bf16.mxu0 0
        %512 = vmatpush2.bf16.msra.mxu0 0
        %513 = vmatprep.subr.bf16.mxu0 0
        %514 = vmatpush2.bf16.msra.mxu0 0
        %515 = vmatprep.subr.bf16.mxu0 0
        %516 = vmatpush2.bf16.msra.mxu0 0
        %517 = vmatprep.mubr.bf16.mxu0 0
        %518 = vmatmul.mubr.bf16.gmra.mxu0 %v424
        %v519 = vpop.f32.mrf.mxu0
        %v520 = vadd.f32 %v436, %v519
        %v521 = vpop.f32.mrf.mxu0
        %v522 = vpop.f32.mrf.mxu0
        %v523 = vadd.f32 %v436, %v522
        %v524 = vpop.f32.mrf.mxu0
        %525 = vmatprep.mubr.bf16.mxu0 0
        %526 = vmatmul.mubr.bf16.gmra.mxu0 %v425
        %v527 = vpop.f32.mrf.mxu0
        %v528 = vadd.f32 %v436, %v527
        %v529 = vpop.f32.mrf.mxu0
        %v530 = vpop.f32.mrf.mxu0
        %v531 = vadd.f32 %v436, %v530
        %v532 = vpop.f32.mrf.mxu0
        %533 = vmatprep.mubr.bf16.mxu0 0
        %534 = vmatmul.mubr.bf16.gmra.mxu0 %v426
        %v535 = vpop.f32.mrf.mxu0
        %v536 = vadd.f32 %v436, %v535
        %v537 = vpop.f32.mrf.mxu0
        %v538 = vpop.f32.mrf.mxu0
        %v539 = vadd.f32 %v436, %v538
        %v540 = vpop.f32.mrf.mxu0
        %541 = vmatprep.mubr.bf16.mxu0 0
        %542 = vmatmul.mubr.bf16.gmra.mxu0 %v427
        %v543 = vpop.f32.mrf.mxu0
        %v544 = vadd.f32 %v436, %v543
        %v545 = vpop.f32.mrf.mxu0
        %v546 = vpop.f32.mrf.mxu0
        %v547 = vadd.f32 %v436, %v546
        %v548 = vpop.f32.mrf.mxu0
        %549 = vmatprep.mubr.bf16.mxu0 0
        %550 = vmatmul.mubr.bf16.gmra.mxu0 %v428
        %v551 = vpop.f32.mrf.mxu0
        %v552 = vadd.f32 %v436, %v551
        %v553 = vpop.f32.mrf.mxu0
        %v554 = vpop.f32.mrf.mxu0
        %v555 = vadd.f32 %v436, %v554
        %v556 = vpop.f32.mrf.mxu0
        %557 = vmatprep.mubr.bf16.mxu0 0
        %558 = vmatmul.mubr.bf16.gmra.mxu0 %v429
        %v559 = vpop.f32.mrf.mxu0
        %v560 = vadd.f32 %v436, %v559
        %v561 = vpop.f32.mrf.mxu0
        %v562 = vpop.f32.mrf.mxu0
        %v563 = vadd.f32 %v436, %v562
        %v564 = vpop.f32.mrf.mxu0
        %565 = vmatprep.mubr.bf16.mxu0 0
        %566 = vmatmul.mubr.bf16.gmra.mxu0 %v430
        %v567 = vpop.f32.mrf.mxu0
        %v568 = vadd.f32 %v436, %v567
        %v569 = vpop.f32.mrf.mxu0
        %v570 = vpop.f32.mrf.mxu0
        %v571 = vadd.f32 %v436, %v570
        %v572 = vpop.f32.mrf.mxu0
        %573 = vmatprep.mubr.bf16.mxu0 0
        %574 = vmatmul.mubr.bf16.gmra.mxu0 %v431
        %v575 = vpop.f32.mrf.mxu0
        %v576 = vadd.f32 %v436, %v575
        %v577 = vpop.f32.mrf.mxu0
        %v578 = vpop.f32.mrf.mxu0
        %v579 = vadd.f32 %v436, %v578
        %v580 = vpop.f32.mrf.mxu0
        %581 = vdwg.mxu0
        %v582 = vmax.f32 %v520, 0.0
        %v583 = vmax.f32 %v523, 0.0
        %v584 = vmax.f32 %v528, 0.0
        %v585 = vmax.f32 %v531, 0.0
        %v586 = vmax.f32 %v536, 0.0
        %v587 = vmax.f32 %v539, 0.0
        %v588 = vmax.f32 %v544, 0.0
        %v589 = vmax.f32 %v547, 0.0
        %v590 = vmax.f32 %v552, 0.0
        %v591 = vmax.f32 %v555, 0.0
        %v592 = vmax.f32 %v560, 0.0
        %v593 = vmax.f32 %v563, 0.0
        %v594 = vmax.f32 %v568, 0.0
        %v595 = vmax.f32 %v571, 0.0
        %v596 = vmax.f32 %v576, 0.0
        %v597 = vmax.f32 %v579, 0.0
        %s598 = scalar_lea.vmem [#allocation9], 64
        %v599 = vld [vmem:[%s598] sm:$0xf]
        %v600 = vld [vmem:[%s598 + $0x4] sm:$0xf]
        %v601 = vld [vmem:[%s598 + $0x8] sm:$0xf]
        %v602 = vld [vmem:[%s598 + $0xc] sm:$0xf]
        %v603 = vld [vmem:[%s598 + $0x10] sm:$0xf]
        %v604 = vld [vmem:[%s598 + $0x14] sm:$0xf]
        %v605 = vld [vmem:[%s598 + $0x18] sm:$0xf]
        %v606 = vld [vmem:[%s598 + $0x1c] sm:$0xf]
        %v607 = vld [vmem:[%s598 + $0x20] sm:$0xf]
        %v608 = vld [vmem:[%s598 + $0x24] sm:$0xf]
        %v609 = vld [vmem:[%s598 + $0x28] sm:$0xf]
        %v610 = vld [vmem:[%s598 + $0x2c] sm:$0xf]
        %v611 = vld [vmem:[%s598 + $0x30] sm:$0xf]
        %v612 = vld [vmem:[%s598 + $0x34] sm:$0xf]
        %v613 = vld [vmem:[%s598 + $0x38] sm:$0xf]
        %v614 = vld [vmem:[%s598 + $0x3c] sm:$0xf]
        %v615 = vpack.c.bf16 %v583, %v582
        %v616 = vpack.c.bf16 %v585, %v584
        %v617 = vpack.c.bf16 %v587, %v586
        %v618 = vpack.c.bf16 %v589, %v588
        %v619 = vpack.c.bf16 %v591, %v590
        %v620 = vpack.c.bf16 %v593, %v592
        %v621 = vpack.c.bf16 %v595, %v594
        %v622 = vpack.c.bf16 %v597, %v596
        %v623 = vld [vmem:[#allocation12 + $0x1] sm:$0x1]
        %v624 = vlaneseq
        %v625 = vshrl.u32 %v624, 7
        %v626 = vsub.s32 0, %v625
        %v627 = vrot.slane %v623, %v626
        %v644 = vunpack.c.l.b16 %v599
        %v645 = vunpack.c.l.b16 %v600
        %v646 = vunpack.c.l.b16 %v601
        %v647 = vunpack.c.l.b16 %v602
        %v648 = vunpack.c.l.b16 %v603
        %v649 = vunpack.c.l.b16 %v604
        %v650 = vunpack.c.l.b16 %v605
        %v651 = vunpack.c.l.b16 %v606
        %v652 = vunpack.c.l.b16 %v607
        %v653 = vunpack.c.l.b16 %v608
        %v654 = vunpack.c.l.b16 %v609
        %v655 = vunpack.c.l.b16 %v610
        %v656 = vunpack.c.l.b16 %v611
        %v657 = vunpack.c.l.b16 %v612
        %v658 = vunpack.c.l.b16 %v613
        %v659 = vunpack.c.l.b16 %v614
        %v660 = vpack.c.b16 %v645, %v644
        %v661 = vpack.c.b16 %v647, %v646
        %v662 = vpack.c.b16 %v649, %v648
        %v663 = vpack.c.b16 %v651, %v650
        %v664 = vpack.c.b16 %v653, %v652
        %v665 = vpack.c.b16 %v655, %v654
        %v666 = vpack.c.b16 %v657, %v656
        %v667 = vpack.c.b16 %v659, %v658
        %676 = vmatprep.subr.bf16.mxu0 0
        %677 = vmatpush1.bf16.msra.mxu0 %v667
        %678 = vmatprep.subr.bf16.mxu0 0
        %679 = vmatpush1.bf16.msra.mxu0 %v666
        %680 = vmatprep.subr.bf16.mxu0 0
        %681 = vmatpush1.bf16.msra.mxu0 %v665
        %682 = vmatprep.subr.bf16.mxu0 0
        %683 = vmatpush1.bf16.msra.mxu0 %v664
        %684 = vmatprep.subr.bf16.mxu0 0
        %685 = vmatpush1.bf16.msra.mxu0 %v663
        %686 = vmatprep.subr.bf16.mxu0 0
        %687 = vmatpush1.bf16.msra.mxu0 %v662
        %688 = vmatprep.subr.bf16.mxu0 0
        %689 = vmatpush1.bf16.msra.mxu0 %v661
        %690 = vmatprep.subr.bf16.mxu0 0
        %691 = vmatpush1.bf16.msra.mxu0 %v660
        %692 = vmatprep.subr.bf16.mxu0 0
        %693 = vmatpush2.bf16.msra.mxu0 0
        %694 = vmatprep.subr.bf16.mxu0 0
        %695 = vmatpush2.bf16.msra.mxu0 0
        %696 = vmatprep.subr.bf16.mxu0 0
        %697 = vmatpush2.bf16.msra.mxu0 0
        %698 = vmatprep.subr.bf16.mxu0 0
        %699 = vmatpush2.bf16.msra.mxu0 0
        %700 = vmatprep.subr.bf16.mxu0 0
        %701 = vmatpush2.bf16.msra.mxu0 0
        %702 = vmatprep.subr.bf16.mxu0 0
        %703 = vmatpush2.bf16.msra.mxu0 0
        %704 = vmatprep.subr.bf16.mxu0 0
        %705 = vmatpush2.bf16.msra.mxu0 0
        %706 = vmatprep.subr.bf16.mxu0 0
        %707 = vmatpush2.bf16.msra.mxu0 0
        %708 = vmatprep.mubr.bf16.mxu0 0
        %709 = vmatmul.mubr.bf16.gmra.mxu0 %v615
        %v710 = vpop.f32.mrf.mxu0
        %v711 = vadd.f32 %v627, %v710
        %v712 = vpop.f32.mrf.mxu0
        %v713 = vpop.f32.mrf.mxu0
        %v714 = vadd.f32 %v627, %v713
        %v715 = vpop.f32.mrf.mxu0
        %716 = vmatprep.mubr.bf16.mxu0 0
        %717 = vmatmul.mubr.bf16.gmra.mxu0 %v616
        %v718 = vpop.f32.mrf.mxu0
        %v719 = vadd.f32 %v627, %v718
        %v720 = vpop.f32.mrf.mxu0
        %v721 = vpop.f32.mrf.mxu0
        %v722 = vadd.f32 %v627, %v721
        %v723 = vpop.f32.mrf.mxu0
        %724 = vmatprep.mubr.bf16.mxu0 0
        %725 = vmatmul.mubr.bf16.gmra.mxu0 %v617
        %v726 = vpop.f32.mrf.mxu0
        %v727 = vadd.f32 %v627, %v726
        %v728 = vpop.f32.mrf.mxu0
        %v729 = vpop.f32.mrf.mxu0
        %v730 = vadd.f32 %v627, %v729
        %v731 = vpop.f32.mrf.mxu0
        %732 = vmatprep.mubr.bf16.mxu0 0
        %733 = vmatmul.mubr.bf16.gmra.mxu0 %v618
        %v734 = vpop.f32.mrf.mxu0
        %v735 = vadd.f32 %v627, %v734
        %v736 = vpop.f32.mrf.mxu0
        %v737 = vpop.f32.mrf.mxu0
        %v738 = vadd.f32 %v627, %v737
        %v739 = vpop.f32.mrf.mxu0
        %740 = vmatprep.mubr.bf16.mxu0 0
        %741 = vmatmul.mubr.bf16.gmra.mxu0 %v619
        %v742 = vpop.f32.mrf.mxu0
        %v743 = vadd.f32 %v627, %v742
        %v744 = vpop.f32.mrf.mxu0
        %v745 = vpop.f32.mrf.mxu0
        %v746 = vadd.f32 %v627, %v745
        %v747 = vpop.f32.mrf.mxu0
        %748 = vmatprep.mubr.bf16.mxu0 0
        %749 = vmatmul.mubr.bf16.gmra.mxu0 %v620
        %v750 = vpop.f32.mrf.mxu0
        %v751 = vadd.f32 %v627, %v750
        %v752 = vpop.f32.mrf.mxu0
        %v753 = vpop.f32.mrf.mxu0
        %v754 = vadd.f32 %v627, %v753
        %v755 = vpop.f32.mrf.mxu0
        %756 = vmatprep.mubr.bf16.mxu0 0
        %757 = vmatmul.mubr.bf16.gmra.mxu0 %v621
        %v758 = vpop.f32.mrf.mxu0
        %v759 = vadd.f32 %v627, %v758
        %v760 = vpop.f32.mrf.mxu0
        %v761 = vpop.f32.mrf.mxu0
        %v762 = vadd.f32 %v627, %v761
        %v763 = vpop.f32.mrf.mxu0
        %764 = vmatprep.mubr.bf16.mxu0 0
        %765 = vmatmul.mubr.bf16.gmra.mxu0 %v622
        %v766 = vpop.f32.mrf.mxu0
        %v767 = vadd.f32 %v627, %v766
        %v768 = vpop.f32.mrf.mxu0
        %v769 = vpop.f32.mrf.mxu0
        %v770 = vadd.f32 %v627, %v769
        %v771 = vpop.f32.mrf.mxu0
        %772 = vdwg.mxu0
        %773 = vst [vmem:[#allocation2] sm:$0xff] %v711
        %774 = vst [vmem:[#allocation2 + $0x8] sm:$0xff] %v714
        %775 = vst [vmem:[#allocation2 + $0x10] sm:$0xff] %v719
        %776 = vst [vmem:[#allocation2 + $0x18] sm:$0xff] %v722
        %777 = vst [vmem:[#allocation2 + $0x20] sm:$0xff] %v727
        %778 = vst [vmem:[#allocation2 + $0x28] sm:$0xff] %v730
        %779 = vst [vmem:[#allocation2 + $0x30] sm:$0xff] %v735
        %780 = vst [vmem:[#allocation2 + $0x38] sm:$0xff] %v738
        %781 = vst [vmem:[#allocation2 + $0x40] sm:$0xff] %v743
        %782 = vst [vmem:[#allocation2 + $0x48] sm:$0xff] %v746
        %783 = vst [vmem:[#allocation2 + $0x50] sm:$0xff] %v751
        %784 = vst [vmem:[#allocation2 + $0x58] sm:$0xff] %v754
        %785 = vst [vmem:[#allocation2 + $0x60] sm:$0xff] %v759
        %786 = vst [vmem:[#allocation2 + $0x68] sm:$0xff] %v762
        %787 = vst [vmem:[#allocation2 + $0x70] sm:$0xff] %v767
        %788 = vst [vmem:[#allocation2 + $0x78] sm:$0xff] %v770
        %v789 = vld [vmem:[%s340] sm:$0xff]
        %v790 = vld [vmem:[%s340 + $0x8] sm:$0xff]
        %s791 = scalar_lea.vmem [#allocation9], 128
        %v792 = vld [vmem:[%s791] sm:$0xf]
        %v793 = vld [vmem:[%s791 + $0x4] sm:$0xf]
        %v794 = vld [vmem:[%s791 + $0x8] sm:$0xf]
        %v795 = vld [vmem:[%s791 + $0xc] sm:$0xf]
        %v796 = vld [vmem:[%s791 + $0x10] sm:$0xf]
        %v797 = vld [vmem:[%s791 + $0x14] sm:$0xf]
        %v798 = vld [vmem:[%s791 + $0x18] sm:$0xf]
        %v799 = vld [vmem:[%s791 + $0x1c] sm:$0xf]
        %v800 = vld [vmem:[%s791 + $0x20] sm:$0xf]
        %v801 = vld [vmem:[%s791 + $0x24] sm:$0xf]
        %v802 = vld [vmem:[%s791 + $0x28] sm:$0xf]
        %v803 = vld [vmem:[%s791 + $0x2c] sm:$0xf]
        %v804 = vld [vmem:[%s791 + $0x30] sm:$0xf]
        %v805 = vld [vmem:[%s791 + $0x34] sm:$0xf]
        %v806 = vld [vmem:[%s791 + $0x38] sm:$0xf]
        %v807 = vld [vmem:[%s791 + $0x3c] sm:$0xf]
        %v808 = vpack.c.bf16 %v790, %v789
        %v825 = vunpack.c.l.b16 %v792
        %v826 = vunpack.c.l.b16 %v793
        %v827 = vunpack.c.l.b16 %v794
        %v828 = vunpack.c.l.b16 %v795
        %v829 = vunpack.c.l.b16 %v796
        %v830 = vunpack.c.l.b16 %v797
        %v831 = vunpack.c.l.b16 %v798
        %v832 = vunpack.c.l.b16 %v799
        %v833 = vunpack.c.l.b16 %v800
        %v834 = vunpack.c.l.b16 %v801
        %v835 = vunpack.c.l.b16 %v802
        %v836 = vunpack.c.l.b16 %v803
        %v837 = vunpack.c.l.b16 %v804
        %v838 = vunpack.c.l.b16 %v805
        %v839 = vunpack.c.l.b16 %v806
        %v840 = vunpack.c.l.b16 %v807
        %v841 = vpack.c.b16 %v826, %v825
        %v842 = vpack.c.b16 %v828, %v827
        %v843 = vpack.c.b16 %v830, %v829
        %v844 = vpack.c.b16 %v832, %v831
        %v845 = vpack.c.b16 %v834, %v833
        %v846 = vpack.c.b16 %v836, %v835
        %v847 = vpack.c.b16 %v838, %v837
        %v848 = vpack.c.b16 %v840, %v839
        %857 = vmatprep.subr.bf16.mxu0 0
        %858 = vmatpush1.bf16.msra.mxu0 %v848
        %859 = vmatprep.subr.bf16.mxu0 0
        %860 = vmatpush1.bf16.msra.mxu0 %v847
        %861 = vmatprep.subr.bf16.mxu0 0
        %862 = vmatpush1.bf16.msra.mxu0 %v846
        %863 = vmatprep.subr.bf16.mxu0 0
        %864 = vmatpush1.bf16.msra.mxu0 %v845
        %865 = vmatprep.subr.bf16.mxu0 0
        %866 = vmatpush1.bf16.msra.mxu0 %v844
        %867 = vmatprep.subr.bf16.mxu0 0
        %868 = vmatpush1.bf16.msra.mxu0 %v843
        %869 = vmatprep.subr.bf16.mxu0 0
        %870 = vmatpush1.bf16.msra.mxu0 %v842
        %871 = vmatprep.subr.bf16.mxu0 0
        %872 = vmatpush1.bf16.msra.mxu0 %v841
        %873 = vmatprep.subr.bf16.mxu0 0
        %874 = vmatpush2.bf16.msra.mxu0 0
        %875 = vmatprep.subr.bf16.mxu0 0
        %876 = vmatpush2.bf16.msra.mxu0 0
        %877 = vmatprep.subr.bf16.mxu0 0
        %878 = vmatpush2.bf16.msra.mxu0 0
        %879 = vmatprep.subr.bf16.mxu0 0
        %880 = vmatpush2.bf16.msra.mxu0 0
        %881 = vmatprep.subr.bf16.mxu0 0
        %882 = vmatpush2.bf16.msra.mxu0 0
        %883 = vmatprep.subr.bf16.mxu0 0
        %884 = vmatpush2.bf16.msra.mxu0 0
        %885 = vmatprep.subr.bf16.mxu0 0
        %886 = vmatpush2.bf16.msra.mxu0 0
        %887 = vmatprep.subr.bf16.mxu0 0
        %888 = vmatpush2.bf16.msra.mxu0 0
        %889 = vmatprep.mubr.bf16.mxu0 0
        %890 = vmatmul.mubr.bf16.gmra.mxu0 %v808
        %v891 = vpop.f32.mrf.mxu0
        %v892 = vadd.f32 0.0, %v891
        %v893 = vpop.f32.mrf.mxu0
        %v894 = vpop.f32.mrf.mxu0
        %v895 = vadd.f32 0.0, %v894
        %v896 = vpop.f32.mrf.mxu0
        %897 = vdwg.mxu0
        %v898 = vld [vmem:[#allocation11] sm:$0xff]
        %v899 = vld [vmem:[#allocation11 + $0x8] sm:$0xff]
        %v900 = vld [vmem:[#allocation11 + $0x10] sm:$0xff]
        %v901 = vld [vmem:[#allocation11 + $0x18] sm:$0xff]
        %v902 = vld [vmem:[#allocation11 + $0x20] sm:$0xff]
        %v903 = vld [vmem:[#allocation11 + $0x28] sm:$0xff]
        %v904 = vld [vmem:[#allocation11 + $0x30] sm:$0xff]
        %v905 = vld [vmem:[#allocation11 + $0x38] sm:$0xff]
        %v906 = vld [vmem:[#allocation11 + $0x40] sm:$0xff]
        %v907 = vld [vmem:[#allocation11 + $0x48] sm:$0xff]
        %v908 = vld [vmem:[#allocation11 + $0x50] sm:$0xff]
        %v909 = vld [vmem:[#allocation11 + $0x58] sm:$0xff]
        %v910 = vld [vmem:[#allocation11 + $0x60] sm:$0xff]
        %v911 = vld [vmem:[#allocation11 + $0x68] sm:$0xff]
        %v912 = vld [vmem:[#allocation11 + $0x70] sm:$0xff]
        %v913 = vld [vmem:[#allocation11 + $0x78] sm:$0xff]
        %v914 = vld [vmem:[%s331] sm:$0xff]
        %v915 = vld [vmem:[%s331 + $0x8] sm:$0xff]
        %v916 = vld [vmem:[%s331 + $0x10] sm:$0xff]
        %v917 = vld [vmem:[%s331 + $0x18] sm:$0xff]
        %v918 = vld [vmem:[%s331 + $0x20] sm:$0xff]
        %v919 = vld [vmem:[%s331 + $0x28] sm:$0xff]
        %v920 = vld [vmem:[%s331 + $0x30] sm:$0xff]
        %v921 = vld [vmem:[%s331 + $0x38] sm:$0xff]
        %v922 = vld [vmem:[%s331 + $0x40] sm:$0xff]
        %v923 = vld [vmem:[%s331 + $0x48] sm:$0xff]
        %v924 = vld [vmem:[%s331 + $0x50] sm:$0xff]
        %v925 = vld [vmem:[%s331 + $0x58] sm:$0xff]
        %v926 = vld [vmem:[%s331 + $0x60] sm:$0xff]
        %v927 = vld [vmem:[%s331 + $0x68] sm:$0xff]
        %v928 = vld [vmem:[%s331 + $0x70] sm:$0xff]
        %v929 = vld [vmem:[%s331 + $0x78] sm:$0xff]
        %v930 = vpack.c.bf16 %v915, %v914
        %v931 = vpack.c.bf16 %v917, %v916
        %v932 = vpack.c.bf16 %v919, %v918
        %v933 = vpack.c.bf16 %v921, %v920
        %v934 = vpack.c.bf16 %v923, %v922
        %v935 = vpack.c.bf16 %v925, %v924
        %v936 = vpack.c.bf16 %v927, %v926
        %v937 = vpack.c.bf16 %v929, %v928
        %v954 = vunpack.c.l.b16 %v898
        %v955 = vunpack.c.h.b16 %v898
        %v956 = vunpack.c.l.b16 %v899
        %v957 = vunpack.c.h.b16 %v899
        %v958 = vunpack.c.l.b16 %v900
        %v959 = vunpack.c.h.b16 %v900
        %v960 = vunpack.c.l.b16 %v901
        %v961 = vunpack.c.h.b16 %v901
        %v962 = vunpack.c.l.b16 %v902
        %v963 = vunpack.c.h.b16 %v902
        %v964 = vunpack.c.l.b16 %v903
        %v965 = vunpack.c.h.b16 %v903
        %v966 = vunpack.c.l.b16 %v904
        %v967 = vunpack.c.h.b16 %v904
        %v968 = vunpack.c.l.b16 %v905
        %v969 = vunpack.c.h.b16 %v905
        %v970 = vunpack.c.l.b16 %v906
        %v971 = vunpack.c.h.b16 %v906
        %v972 = vunpack.c.l.b16 %v907
        %v973 = vunpack.c.h.b16 %v907
        %v974 = vunpack.c.l.b16 %v908
        %v975 = vunpack.c.h.b16 %v908
        %v976 = vunpack.c.l.b16 %v909
        %v977 = vunpack.c.h.b16 %v909
        %v978 = vunpack.c.l.b16 %v910
        %v979 = vunpack.c.h.b16 %v910
        %v980 = vunpack.c.l.b16 %v911
        %v981 = vunpack.c.h.b16 %v911
        %v982 = vunpack.c.l.b16 %v912
        %v983 = vunpack.c.h.b16 %v912
        %v984 = vunpack.c.l.b16 %v913
        %v985 = vunpack.c.h.b16 %v913
        %v986 = vpack.c.b16 %v956, %v954
        %v987 = vpack.c.b16 %v957, %v955
        %v988 = vpack.c.b16 %v960, %v958
        %v989 = vpack.c.b16 %v961, %v959
        %v990 = vpack.c.b16 %v964, %v962
        %v991 = vpack.c.b16 %v965, %v963
        %v992 = vpack.c.b16 %v968, %v966
        %v993 = vpack.c.b16 %v969, %v967
        %v994 = vpack.c.b16 %v972, %v970
        %v995 = vpack.c.b16 %v973, %v971
        %v996 = vpack.c.b16 %v976, %v974
        %v997 = vpack.c.b16 %v977, %v975
        %v998 = vpack.c.b16 %v980, %v978
        %v999 = vpack.c.b16 %v981, %v979
        %v1000 = vpack.c.b16 %v984, %v982
        %v1001 = vpack.c.b16 %v985, %v983
        %1018 = vmatprep.subr.bf16.mxu0 %v1001
        %1019 = vmatpush1.bf16.msra.mxu0 %v1000
        %1020 = vmatprep.subr.bf16.mxu0 %v999
        %1021 = vmatpush1.bf16.msra.mxu0 %v998
        %1022 = vmatprep.subr.bf16.mxu0 %v997
        %1023 = vmatpush1.bf16.msra.mxu0 %v996
        %1024 = vmatprep.subr.bf16.mxu0 %v995
        %1025 = vmatpush1.bf16.msra.mxu0 %v994
        %1026 = vmatprep.subr.bf16.mxu0 %v993
        %1027 = vmatpush1.bf16.msra.mxu0 %v992
        %1028 = vmatprep.subr.bf16.mxu0 %v991
        %1029 = vmatpush1.bf16.msra.mxu0 %v990
        %1030 = vmatprep.subr.bf16.mxu0 %v989
        %1031 = vmatpush1.bf16.msra.mxu0 %v988
        %1032 = vmatprep.subr.bf16.mxu0 %v987
        %1033 = vmatpush1.bf16.msra.mxu0 %v986
        %1034 = vmatprep.subr.bf16.mxu0 0
        %1035 = vmatpush2.bf16.msra.mxu0 0
        %1036 = vmatprep.subr.bf16.mxu0 0
        %1037 = vmatpush2.bf16.msra.mxu0 0
        %1038 = vmatprep.subr.bf16.mxu0 0
        %1039 = vmatpush2.bf16.msra.mxu0 0
        %1040 = vmatprep.subr.bf16.mxu0 0
        %1041 = vmatpush2.bf16.msra.mxu0 0
        %1042 = vmatprep.subr.bf16.mxu0 0
        %1043 = vmatpush2.bf16.msra.mxu0 0
        %1044 = vmatprep.subr.bf16.mxu0 0
        %1045 = vmatpush2.bf16.msra.mxu0 0
        %1046 = vmatprep.subr.bf16.mxu0 0
        %1047 = vmatpush2.bf16.msra.mxu0 0
        %1048 = vmatprep.subr.bf16.mxu0 0
        %1049 = vmatpush2.bf16.msra.mxu0 0
        %1050 = vmatprep.mubr.bf16.mxu0 0
        %1051 = vmatmul.mubr.bf16.gmra.mxu0 %v930
        %v1052 = vpop.f32.mrf.mxu0
        %v1053 = vadd.f32 0.0, %v1052
        %v1054 = vpop.f32.mrf.mxu0
        %v1055 = vadd.f32 0.0, %v1054
        %v1056 = vpop.f32.mrf.mxu0
        %v1057 = vadd.f32 0.0, %v1056
        %v1058 = vpop.f32.mrf.mxu0
        %v1059 = vadd.f32 0.0, %v1058
        %1060 = vmatprep.mubr.bf16.mxu0 0
        %1061 = vmatmul.mubr.bf16.gmra.mxu0 %v931
        %v1062 = vpop.f32.mrf.mxu0
        %v1063 = vadd.f32 0.0, %v1062
        %v1064 = vpop.f32.mrf.mxu0
        %v1065 = vadd.f32 0.0, %v1064
        %v1066 = vpop.f32.mrf.mxu0
        %v1067 = vadd.f32 0.0, %v1066
        %v1068 = vpop.f32.mrf.mxu0
        %v1069 = vadd.f32 0.0, %v1068
        %1070 = vmatprep.mubr.bf16.mxu0 0
        %1071 = vmatmul.mubr.bf16.gmra.mxu0 %v932
        %v1072 = vpop.f32.mrf.mxu0
        %v1073 = vadd.f32 0.0, %v1072
        %v1074 = vpop.f32.mrf.mxu0
        %v1075 = vadd.f32 0.0, %v1074
        %v1076 = vpop.f32.mrf.mxu0
        %v1077 = vadd.f32 0.0, %v1076
        %v1078 = vpop.f32.mrf.mxu0
        %v1079 = vadd.f32 0.0, %v1078
        %1080 = vmatprep.mubr.bf16.mxu0 0
        %1081 = vmatmul.mubr.bf16.gmra.mxu0 %v933
        %v1082 = vpop.f32.mrf.mxu0
        %v1083 = vadd.f32 0.0, %v1082
        %v1084 = vpop.f32.mrf.mxu0
        %v1085 = vadd.f32 0.0, %v1084
        %v1086 = vpop.f32.mrf.mxu0
        %v1087 = vadd.f32 0.0, %v1086
        %v1088 = vpop.f32.mrf.mxu0
        %v1089 = vadd.f32 0.0, %v1088
        %1090 = vmatprep.mubr.bf16.mxu0 0
        %1091 = vmatmul.mubr.bf16.gmra.mxu0 %v934
        %v1092 = vpop.f32.mrf.mxu0
        %v1093 = vadd.f32 0.0, %v1092
        %v1094 = vpop.f32.mrf.mxu0
        %v1095 = vadd.f32 0.0, %v1094
        %v1096 = vpop.f32.mrf.mxu0
        %v1097 = vadd.f32 0.0, %v1096
        %v1098 = vpop.f32.mrf.mxu0
        %v1099 = vadd.f32 0.0, %v1098
        %1100 = vmatprep.mubr.bf16.mxu0 0
        %1101 = vmatmul.mubr.bf16.gmra.mxu0 %v935
        %v1102 = vpop.f32.mrf.mxu0
        %v1103 = vadd.f32 0.0, %v1102
        %v1104 = vpop.f32.mrf.mxu0
        %v1105 = vadd.f32 0.0, %v1104
        %v1106 = vpop.f32.mrf.mxu0
        %v1107 = vadd.f32 0.0, %v1106
        %v1108 = vpop.f32.mrf.mxu0
        %v1109 = vadd.f32 0.0, %v1108
        %1110 = vmatprep.mubr.bf16.mxu0 0
        %1111 = vmatmul.mubr.bf16.gmra.mxu0 %v936
        %v1112 = vpop.f32.mrf.mxu0
        %v1113 = vadd.f32 0.0, %v1112
        %v1114 = vpop.f32.mrf.mxu0
        %v1115 = vadd.f32 0.0, %v1114
        %v1116 = vpop.f32.mrf.mxu0
        %v1117 = vadd.f32 0.0, %v1116
        %v1118 = vpop.f32.mrf.mxu0
        %v1119 = vadd.f32 0.0, %v1118
        %1120 = vmatprep.mubr.bf16.mxu0 0
        %1121 = vmatmul.mubr.bf16.gmra.mxu0 %v937
        %v1122 = vpop.f32.mrf.mxu0
        %v1123 = vadd.f32 0.0, %v1122
        %v1124 = vpop.f32.mrf.mxu0
        %v1125 = vadd.f32 0.0, %v1124
        %v1126 = vpop.f32.mrf.mxu0
        %v1127 = vadd.f32 0.0, %v1126
        %v1128 = vpop.f32.mrf.mxu0
        %v1129 = vadd.f32 0.0, %v1128
        %1130 = vdwg.mxu0
        %v1131 = vld [vmem:[#allocation2] sm:$0xff]
        %v1132 = vld [vmem:[#allocation2 + $0x8] sm:$0xff]
        %v1133 = vld [vmem:[#allocation2 + $0x10] sm:$0xff]
        %v1134 = vld [vmem:[#allocation2 + $0x18] sm:$0xff]
        %v1135 = vld [vmem:[#allocation2 + $0x20] sm:$0xff]
        %v1136 = vld [vmem:[#allocation2 + $0x28] sm:$0xff]
        %v1137 = vld [vmem:[#allocation2 + $0x30] sm:$0xff]
        %v1138 = vld [vmem:[#allocation2 + $0x38] sm:$0xff]
        %v1139 = vld [vmem:[#allocation2 + $0x40] sm:$0xff]
        %v1140 = vld [vmem:[#allocation2 + $0x48] sm:$0xff]
        %v1141 = vld [vmem:[#allocation2 + $0x50] sm:$0xff]
        %v1142 = vld [vmem:[#allocation2 + $0x58] sm:$0xff]
        %v1143 = vld [vmem:[#allocation2 + $0x60] sm:$0xff]
        %v1144 = vld [vmem:[#allocation2 + $0x68] sm:$0xff]
        %v1145 = vld [vmem:[#allocation2 + $0x70] sm:$0xff]
        %v1146 = vld [vmem:[#allocation2 + $0x78] sm:$0xff]
        %v1149 = vcombine.high %v892, %v892
        %v1151 = vunpack.c.l.s4 1966171168
        %v1152 = vunpack.c.0.s8 %v1151
        %v1153 = vlaneseq
        %v1154 = vshrl.u32 %v1153, 7
        %v1155 = vsub.s32 %v1152, %v1154
        %v1156 = vrot.slane %v892, %v1155
        %v1158 = vunpack.c.l.s4 1966171168
        %v1159 = vunpack.c.0.s8 %v1158
        %v1160 = vlaneseq
        %v1161 = vshrl.u32 %v1160, 7
        %v1162 = vsub.s32 %v1159, %v1161
        %v1163 = vrot.slane %v1149, %v1162
        %v1164 = vcombine.high %v1156, %v1156
        %v1165 = vcombine.high %v1163, %v1163
        %v1167 = vunpack.c.l.s4 1966171168
        %v1168 = vunpack.c.0.s8 %v1167
        %v1169 = vlaneseq
        %v1170 = vshrl.u32 %v1169, 7
        %v1171 = vsub.s32 %v1168, %v1170
        %v1172 = vrot.slane %v1156, %v1171
        %v1174 = vunpack.c.l.s4 1966171168
        %v1175 = vunpack.c.0.s8 %v1174
        %v1176 = vlaneseq
        %v1177 = vshrl.u32 %v1176, 7
        %v1178 = vsub.s32 %v1175, %v1177
        %v1179 = vrot.slane %v1163, %v1178
        %v1181 = vunpack.c.l.s4 1966171168
        %v1182 = vunpack.c.0.s8 %v1181
        %v1183 = vlaneseq
        %v1184 = vshrl.u32 %v1183, 7
        %v1185 = vsub.s32 %v1182, %v1184
        %v1186 = vrot.slane %v1164, %v1185
        %v1188 = vunpack.c.l.s4 1966171168
        %v1189 = vunpack.c.0.s8 %v1188
        %v1190 = vlaneseq
        %v1191 = vshrl.u32 %v1190, 7
        %v1192 = vsub.s32 %v1189, %v1191
        %v1193 = vrot.slane %v1165, %v1192
        %v1194 = vcombine.high %v1172, %v1172
        %v1195 = vcombine.high %v1179, %v1179
        %v1196 = vcombine.high %v1186, %v1186
        %v1197 = vcombine.high %v1193, %v1193
        %v1198 = vcombine.high %v895, %v895
        %v1200 = vunpack.c.l.s4 1966171168
        %v1201 = vunpack.c.0.s8 %v1200
        %v1202 = vlaneseq
        %v1203 = vshrl.u32 %v1202, 7
        %v1204 = vsub.s32 %v1201, %v1203
        %v1205 = vrot.slane %v895, %v1204
        %v1207 = vunpack.c.l.s4 1966171168
        %v1208 = vunpack.c.0.s8 %v1207
        %v1209 = vlaneseq
        %v1210 = vshrl.u32 %v1209, 7
        %v1211 = vsub.s32 %v1208, %v1210
        %v1212 = vrot.slane %v1198, %v1211
        %v1213 = vcombine.high %v1205, %v1205
        %v1214 = vcombine.high %v1212, %v1212
        %v1216 = vunpack.c.l.s4 1966171168
        %v1217 = vunpack.c.0.s8 %v1216
        %v1218 = vlaneseq
        %v1219 = vshrl.u32 %v1218, 7
        %v1220 = vsub.s32 %v1217, %v1219
        %v1221 = vrot.slane %v1205, %v1220
        %v1223 = vunpack.c.l.s4 1966171168
        %v1224 = vunpack.c.0.s8 %v1223
        %v1225 = vlaneseq
        %v1226 = vshrl.u32 %v1225, 7
        %v1227 = vsub.s32 %v1224, %v1226
        %v1228 = vrot.slane %v1212, %v1227
        %v1230 = vunpack.c.l.s4 1966171168
        %v1231 = vunpack.c.0.s8 %v1230
        %v1232 = vlaneseq
        %v1233 = vshrl.u32 %v1232, 7
        %v1234 = vsub.s32 %v1231, %v1233
        %v1235 = vrot.slane %v1213, %v1234
        %v1237 = vunpack.c.l.s4 1966171168
        %v1238 = vunpack.c.0.s8 %v1237
        %v1239 = vlaneseq
        %v1240 = vshrl.u32 %v1239, 7
        %v1241 = vsub.s32 %v1238, %v1240
        %v1242 = vrot.slane %v1214, %v1241
        %v1243 = vcombine.high %v1221, %v1221
        %v1244 = vcombine.high %v1228, %v1228
        %v1245 = vcombine.high %v1235, %v1235
        %v1246 = vcombine.high %v1242, %v1242
        %v1247 = vlaneseq
        %v1248 = vshrl.u32 %v1247, 7
        %v1249 = vsub.s32 0, %v1248
        %v1250 = vrot.slane %v1172, %v1249
        %v1251 = vlaneseq
        %v1252 = vshrl.u32 %v1251, 7
        %v1253 = vsub.s32 0, %v1252
        %v1254 = vrot.slane %v1186, %v1253
        %v1255 = vlaneseq
        %v1256 = vshrl.u32 %v1255, 7
        %v1257 = vsub.s32 0, %v1256
        %v1258 = vrot.slane %v1194, %v1257
        %v1259 = vlaneseq
        %v1260 = vshrl.u32 %v1259, 7
        %v1261 = vsub.s32 0, %v1260
        %v1262 = vrot.slane %v1196, %v1261
        %v1263 = vlaneseq
        %v1264 = vshrl.u32 %v1263, 7
        %v1265 = vsub.s32 0, %v1264
        %v1266 = vrot.slane %v1179, %v1265
        %v1267 = vlaneseq
        %v1268 = vshrl.u32 %v1267, 7
        %v1269 = vsub.s32 0, %v1268
        %v1270 = vrot.slane %v1193, %v1269
        %v1271 = vlaneseq
        %v1272 = vshrl.u32 %v1271, 7
        %v1273 = vsub.s32 0, %v1272
        %v1274 = vrot.slane %v1195, %v1273
        %v1275 = vlaneseq
        %v1276 = vshrl.u32 %v1275, 7
        %v1277 = vsub.s32 0, %v1276
        %v1278 = vrot.slane %v1197, %v1277
        %v1279 = vlaneseq
        %v1280 = vshrl.u32 %v1279, 7
        %v1281 = vsub.s32 0, %v1280
        %v1282 = vrot.slane %v1221, %v1281
        %v1283 = vlaneseq
        %v1284 = vshrl.u32 %v1283, 7
        %v1285 = vsub.s32 0, %v1284
        %v1286 = vrot.slane %v1235, %v1285
        %v1287 = vlaneseq
        %v1288 = vshrl.u32 %v1287, 7
        %v1289 = vsub.s32 0, %v1288
        %v1290 = vrot.slane %v1243, %v1289
        %v1291 = vlaneseq
        %v1292 = vshrl.u32 %v1291, 7
        %v1293 = vsub.s32 0, %v1292
        %v1294 = vrot.slane %v1245, %v1293
        %v1295 = vlaneseq
        %v1296 = vshrl.u32 %v1295, 7
        %v1297 = vsub.s32 0, %v1296
        %v1298 = vrot.slane %v1228, %v1297
        %v1299 = vlaneseq
        %v1300 = vshrl.u32 %v1299, 7
        %v1301 = vsub.s32 0, %v1300
        %v1302 = vrot.slane %v1242, %v1301
        %v1303 = vlaneseq
        %v1304 = vshrl.u32 %v1303, 7
        %v1305 = vsub.s32 0, %v1304
        %v1306 = vrot.slane %v1244, %v1305
        %v1307 = vlaneseq
        %v1308 = vshrl.u32 %v1307, 7
        %v1309 = vsub.s32 0, %v1308
        %v1310 = vrot.slane %v1246, %v1309
        %v1327 = vsub.f32 %v1250, %v1053
        %v1328 = vsub.f32 %v1254, %v1057
        %v1329 = vsub.f32 %v1258, %v1063
        %v1330 = vsub.f32 %v1262, %v1067
        %v1331 = vsub.f32 %v1266, %v1073
        %v1332 = vsub.f32 %v1270, %v1077
        %v1333 = vsub.f32 %v1274, %v1083
        %v1334 = vsub.f32 %v1278, %v1087
        %v1335 = vsub.f32 %v1282, %v1093
        %v1336 = vsub.f32 %v1286, %v1097
        %v1337 = vsub.f32 %v1290, %v1103
        %v1338 = vsub.f32 %v1294, %v1107
        %v1339 = vsub.f32 %v1298, %v1113
        %v1340 = vsub.f32 %v1302, %v1117
        %v1341 = vsub.f32 %v1306, %v1123
        %v1342 = vsub.f32 %v1310, %v1127
        %v1343 = vadd.f32 %v1327, %v1131
        %v1344 = vadd.f32 %v1328, %v1132
        %v1345 = vadd.f32 %v1329, %v1133
        %v1346 = vadd.f32 %v1330, %v1134
        %v1347 = vadd.f32 %v1331, %v1135
        %v1348 = vadd.f32 %v1332, %v1136
        %v1349 = vadd.f32 %v1333, %v1137
        %v1350 = vadd.f32 %v1334, %v1138
        %v1351 = vadd.f32 %v1335, %v1139
        %v1352 = vadd.f32 %v1336, %v1140
        %v1353 = vadd.f32 %v1337, %v1141
        %v1354 = vadd.f32 %v1338, %v1142
        %v1355 = vadd.f32 %v1339, %v1143
        %v1356 = vadd.f32 %v1340, %v1144
        %v1357 = vadd.f32 %v1341, %v1145
        %v1358 = vadd.f32 %v1342, %v1146
        %s1359 = scalar_lea.vmem [#allocation9], 256
        %v1360 = vld [vmem:[%s1359] sm:$0xf]
        %v1361 = vld [vmem:[%s1359 + $0x4] sm:$0xf]
        %v1362 = vld [vmem:[%s1359 + $0x8] sm:$0xf]
        %v1363 = vld [vmem:[%s1359 + $0xc] sm:$0xf]
        %v1364 = vld [vmem:[%s1359 + $0x10] sm:$0xf]
        %v1365 = vld [vmem:[%s1359 + $0x14] sm:$0xf]
        %v1366 = vld [vmem:[%s1359 + $0x18] sm:$0xf]
        %v1367 = vld [vmem:[%s1359 + $0x1c] sm:$0xf]
        %v1368 = vld [vmem:[%s1359 + $0x20] sm:$0xf]
        %v1369 = vld [vmem:[%s1359 + $0x24] sm:$0xf]
        %v1370 = vld [vmem:[%s1359 + $0x28] sm:$0xf]
        %v1371 = vld [vmem:[%s1359 + $0x2c] sm:$0xf]
        %v1372 = vld [vmem:[%s1359 + $0x30] sm:$0xf]
        %v1373 = vld [vmem:[%s1359 + $0x34] sm:$0xf]
        %v1374 = vld [vmem:[%s1359 + $0x38] sm:$0xf]
        %v1375 = vld [vmem:[%s1359 + $0x3c] sm:$0xf]
        %v1376 = vpack.c.bf16 %v1344, %v1343
        %v1377 = vpack.c.bf16 %v1346, %v1345
        %v1378 = vpack.c.bf16 %v1348, %v1347
        %v1379 = vpack.c.bf16 %v1350, %v1349
        %v1380 = vpack.c.bf16 %v1352, %v1351
        %v1381 = vpack.c.bf16 %v1354, %v1353
        %v1382 = vpack.c.bf16 %v1356, %v1355
        %v1383 = vpack.c.bf16 %v1358, %v1357
        %v1384 = vld [vmem:[#allocation12 + $0x2] sm:$0x1]
        %v1385 = vlaneseq
        %v1386 = vshrl.u32 %v1385, 7
        %v1387 = vsub.s32 0, %v1386
        %v1388 = vrot.slane %v1384, %v1387
        %v1405 = vunpack.c.l.b16 %v1360
        %v1406 = vunpack.c.l.b16 %v1361
        %v1407 = vunpack.c.l.b16 %v1362
        %v1408 = vunpack.c.l.b16 %v1363
        %v1409 = vunpack.c.l.b16 %v1364
        %v1410 = vunpack.c.l.b16 %v1365
        %v1411 = vunpack.c.l.b16 %v1366
        %v1412 = vunpack.c.l.b16 %v1367
        %v1413 = vunpack.c.l.b16 %v1368
        %v1414 = vunpack.c.l.b16 %v1369
        %v1415 = vunpack.c.l.b16 %v1370
        %v1416 = vunpack.c.l.b16 %v1371
        %v1417 = vunpack.c.l.b16 %v1372
        %v1418 = vunpack.c.l.b16 %v1373
        %v1419 = vunpack.c.l.b16 %v1374
        %v1420 = vunpack.c.l.b16 %v1375
        %v1421 = vpack.c.b16 %v1406, %v1405
        %v1422 = vpack.c.b16 %v1408, %v1407
        %v1423 = vpack.c.b16 %v1410, %v1409
        %v1424 = vpack.c.b16 %v1412, %v1411
        %v1425 = vpack.c.b16 %v1414, %v1413
        %v1426 = vpack.c.b16 %v1416, %v1415
        %v1427 = vpack.c.b16 %v1418, %v1417
        %v1428 = vpack.c.b16 %v1420, %v1419
        %1437 = vmatprep.subr.bf16.mxu0 0
        %1438 = vmatpush1.bf16.msra.mxu0 %v1428
        %1439 = vmatprep.subr.bf16.mxu0 0
        %1440 = vmatpush1.bf16.msra.mxu0 %v1427
        %1441 = vmatprep.subr.bf16.mxu0 0
        %1442 = vmatpush1.bf16.msra.mxu0 %v1426
        %1443 = vmatprep.subr.bf16.mxu0 0
        %1444 = vmatpush1.bf16.msra.mxu0 %v1425
        %1445 = vmatprep.subr.bf16.mxu0 0
        %1446 = vmatpush1.bf16.msra.mxu0 %v1424
        %1447 = vmatprep.subr.bf16.mxu0 0
        %1448 = vmatpush1.bf16.msra.mxu0 %v1423
        %1449 = vmatprep.subr.bf16.mxu0 0
        %1450 = vmatpush1.bf16.msra.mxu0 %v1422
        %1451 = vmatprep.subr.bf16.mxu0 0
        %1452 = vmatpush1.bf16.msra.mxu0 %v1421
        %1453 = vmatprep.subr.bf16.mxu0 0
        %1454 = vmatpush2.bf16.msra.mxu0 0
        %1455 = vmatprep.subr.bf16.mxu0 0
        %1456 = vmatpush2.bf16.msra.mxu0 0
        %1457 = vmatprep.subr.bf16.mxu0 0
        %1458 = vmatpush2.bf16.msra.mxu0 0
        %1459 = vmatprep.subr.bf16.mxu0 0
        %1460 = vmatpush2.bf16.msra.mxu0 0
        %1461 = vmatprep.subr.bf16.mxu0 0
        %1462 = vmatpush2.bf16.msra.mxu0 0
        %1463 = vmatprep.subr.bf16.mxu0 0
        %1464 = vmatpush2.bf16.msra.mxu0 0
        %1465 = vmatprep.subr.bf16.mxu0 0
        %1466 = vmatpush2.bf16.msra.mxu0 0
        %1467 = vmatprep.subr.bf16.mxu0 0
        %1468 = vmatpush2.bf16.msra.mxu0 0
        %1469 = vmatprep.mubr.bf16.mxu0 0
        %1470 = vmatmul.mubr.bf16.gmra.mxu0 %v1376
        %v1471 = vpop.f32.mrf.mxu0
        %v1472 = vadd.f32 %v1388, %v1471
        %v1473 = vpop.f32.mrf.mxu0
        %v1474 = vpop.f32.mrf.mxu0
        %v1475 = vadd.f32 %v1388, %v1474
        %v1476 = vpop.f32.mrf.mxu0
        %1477 = vmatprep.mubr.bf16.mxu0 0
        %1478 = vmatmul.mubr.bf16.gmra.mxu0 %v1377
        %v1479 = vpop.f32.mrf.mxu0
        %v1480 = vadd.f32 %v1388, %v1479
        %v1481 = vpop.f32.mrf.mxu0
        %v1482 = vpop.f32.mrf.mxu0
        %v1483 = vadd.f32 %v1388, %v1482
        %v1484 = vpop.f32.mrf.mxu0
        %1485 = vmatprep.mubr.bf16.mxu0 0
        %1486 = vmatmul.mubr.bf16.gmra.mxu0 %v1378
        %v1487 = vpop.f32.mrf.mxu0
        %v1488 = vadd.f32 %v1388, %v1487
        %v1489 = vpop.f32.mrf.mxu0
        %v1490 = vpop.f32.mrf.mxu0
        %v1491 = vadd.f32 %v1388, %v1490
        %v1492 = vpop.f32.mrf.mxu0
        %1493 = vmatprep.mubr.bf16.mxu0 0
        %1494 = vmatmul.mubr.bf16.gmra.mxu0 %v1379
        %v1495 = vpop.f32.mrf.mxu0
        %v1496 = vadd.f32 %v1388, %v1495
        %v1497 = vpop.f32.mrf.mxu0
        %v1498 = vpop.f32.mrf.mxu0
        %v1499 = vadd.f32 %v1388, %v1498
        %v1500 = vpop.f32.mrf.mxu0
        %1501 = vmatprep.mubr.bf16.mxu0 0
        %1502 = vmatmul.mubr.bf16.gmra.mxu0 %v1380
        %v1503 = vpop.f32.mrf.mxu0
        %v1504 = vadd.f32 %v1388, %v1503
        %v1505 = vpop.f32.mrf.mxu0
        %v1506 = vpop.f32.mrf.mxu0
        %v1507 = vadd.f32 %v1388, %v1506
        %v1508 = vpop.f32.mrf.mxu0
        %1509 = vmatprep.mubr.bf16.mxu0 0
        %1510 = vmatmul.mubr.bf16.gmra.mxu0 %v1381
        %v1511 = vpop.f32.mrf.mxu0
        %v1512 = vadd.f32 %v1388, %v1511
        %v1513 = vpop.f32.mrf.mxu0
        %v1514 = vpop.f32.mrf.mxu0
        %v1515 = vadd.f32 %v1388, %v1514
        %v1516 = vpop.f32.mrf.mxu0
        %1517 = vmatprep.mubr.bf16.mxu0 0
        %1518 = vmatmul.mubr.bf16.gmra.mxu0 %v1382
        %v1519 = vpop.f32.mrf.mxu0
        %v1520 = vadd.f32 %v1388, %v1519
        %v1521 = vpop.f32.mrf.mxu0
        %v1522 = vpop.f32.mrf.mxu0
        %v1523 = vadd.f32 %v1388, %v1522
        %v1524 = vpop.f32.mrf.mxu0
        %1525 = vmatprep.mubr.bf16.mxu0 0
        %1526 = vmatmul.mubr.bf16.gmra.mxu0 %v1383
        %v1527 = vpop.f32.mrf.mxu0
        %v1528 = vadd.f32 %v1388, %v1527
        %v1529 = vpop.f32.mrf.mxu0
        %v1530 = vpop.f32.mrf.mxu0
        %v1531 = vadd.f32 %v1388, %v1530
        %v1532 = vpop.f32.mrf.mxu0
        %1533 = vdwg.mxu0
        %v1534 = vmax.f32 %v1472, 0.0
        %v1535 = vmax.f32 %v1475, 0.0
        %v1536 = vmax.f32 %v1480, 0.0
        %v1537 = vmax.f32 %v1483, 0.0
        %v1538 = vmax.f32 %v1488, 0.0
        %v1539 = vmax.f32 %v1491, 0.0
        %v1540 = vmax.f32 %v1496, 0.0
        %v1541 = vmax.f32 %v1499, 0.0
        %v1542 = vmax.f32 %v1504, 0.0
        %v1543 = vmax.f32 %v1507, 0.0
        %v1544 = vmax.f32 %v1512, 0.0
        %v1545 = vmax.f32 %v1515, 0.0
        %v1546 = vmax.f32 %v1520, 0.0
        %v1547 = vmax.f32 %v1523, 0.0
        %v1548 = vmax.f32 %v1528, 0.0
        %v1549 = vmax.f32 %v1531, 0.0
        %s1550 = scalar_lea.vmem [#allocation9], 320
        %v1551 = vld [vmem:[%s1550] sm:$0xf]
        %v1552 = vld [vmem:[%s1550 + $0x4] sm:$0xf]
        %v1553 = vld [vmem:[%s1550 + $0x8] sm:$0xf]
        %v1554 = vld [vmem:[%s1550 + $0xc] sm:$0xf]
        %v1555 = vld [vmem:[%s1550 + $0x10] sm:$0xf]
        %v1556 = vld [vmem:[%s1550 + $0x14] sm:$0xf]
        %v1557 = vld [vmem:[%s1550 + $0x18] sm:$0xf]
        %v1558 = vld [vmem:[%s1550 + $0x1c] sm:$0xf]
        %v1559 = vld [vmem:[%s1550 + $0x20] sm:$0xf]
        %v1560 = vld [vmem:[%s1550 + $0x24] sm:$0xf]
        %v1561 = vld [vmem:[%s1550 + $0x28] sm:$0xf]
        %v1562 = vld [vmem:[%s1550 + $0x2c] sm:$0xf]
        %v1563 = vld [vmem:[%s1550 + $0x30] sm:$0xf]
        %v1564 = vld [vmem:[%s1550 + $0x34] sm:$0xf]
        %v1565 = vld [vmem:[%s1550 + $0x38] sm:$0xf]
        %v1566 = vld [vmem:[%s1550 + $0x3c] sm:$0xf]
        %v1567 = vpack.c.bf16 %v1535, %v1534
        %v1568 = vpack.c.bf16 %v1537, %v1536
        %v1569 = vpack.c.bf16 %v1539, %v1538
        %v1570 = vpack.c.bf16 %v1541, %v1540
        %v1571 = vpack.c.bf16 %v1543, %v1542
        %v1572 = vpack.c.bf16 %v1545, %v1544
        %v1573 = vpack.c.bf16 %v1547, %v1546
        %v1574 = vpack.c.bf16 %v1549, %v1548
        %v1575 = vld [vmem:[#allocation12 + $0x3] sm:$0x1]
        %v1576 = vlaneseq
        %v1577 = vshrl.u32 %v1576, 7
        %v1578 = vsub.s32 0, %v1577
        %v1579 = vrot.slane %v1575, %v1578
        %v1596 = vunpack.c.l.b16 %v1551
        %v1597 = vunpack.c.l.b16 %v1552
        %v1598 = vunpack.c.l.b16 %v1553
        %v1599 = vunpack.c.l.b16 %v1554
        %v1600 = vunpack.c.l.b16 %v1555
        %v1601 = vunpack.c.l.b16 %v1556
        %v1602 = vunpack.c.l.b16 %v1557
        %v1603 = vunpack.c.l.b16 %v1558
        %v1604 = vunpack.c.l.b16 %v1559
        %v1605 = vunpack.c.l.b16 %v1560
        %v1606 = vunpack.c.l.b16 %v1561
        %v1607 = vunpack.c.l.b16 %v1562
        %v1608 = vunpack.c.l.b16 %v1563
        %v1609 = vunpack.c.l.b16 %v1564
        %v1610 = vunpack.c.l.b16 %v1565
        %v1611 = vunpack.c.l.b16 %v1566
        %v1612 = vpack.c.b16 %v1597, %v1596
        %v1613 = vpack.c.b16 %v1599, %v1598
        %v1614 = vpack.c.b16 %v1601, %v1600
        %v1615 = vpack.c.b16 %v1603, %v1602
        %v1616 = vpack.c.b16 %v1605, %v1604
        %v1617 = vpack.c.b16 %v1607, %v1606
        %v1618 = vpack.c.b16 %v1609, %v1608
        %v1619 = vpack.c.b16 %v1611, %v1610
        %1628 = vmatprep.subr.bf16.mxu0 0
        %1629 = vmatpush1.bf16.msra.mxu0 %v1619
        %1630 = vmatprep.subr.bf16.mxu0 0
        %1631 = vmatpush1.bf16.msra.mxu0 %v1618
        %1632 = vmatprep.subr.bf16.mxu0 0
        %1633 = vmatpush1.bf16.msra.mxu0 %v1617
        %1634 = vmatprep.subr.bf16.mxu0 0
        %1635 = vmatpush1.bf16.msra.mxu0 %v1616
        %1636 = vmatprep.subr.bf16.mxu0 0
        %1637 = vmatpush1.bf16.msra.mxu0 %v1615
        %1638 = vmatprep.subr.bf16.mxu0 0
        %1639 = vmatpush1.bf16.msra.mxu0 %v1614
        %1640 = vmatprep.subr.bf16.mxu0 0
        %1641 = vmatpush1.bf16.msra.mxu0 %v1613
        %1642 = vmatprep.subr.bf16.mxu0 0
        %1643 = vmatpush1.bf16.msra.mxu0 %v1612
        %1644 = vmatprep.subr.bf16.mxu0 0
        %1645 = vmatpush2.bf16.msra.mxu0 0
        %1646 = vmatprep.subr.bf16.mxu0 0
        %1647 = vmatpush2.bf16.msra.mxu0 0
        %1648 = vmatprep.subr.bf16.mxu0 0
        %1649 = vmatpush2.bf16.msra.mxu0 0
        %1650 = vmatprep.subr.bf16.mxu0 0
        %1651 = vmatpush2.bf16.msra.mxu0 0
        %1652 = vmatprep.subr.bf16.mxu0 0
        %1653 = vmatpush2.bf16.msra.mxu0 0
        %1654 = vmatprep.subr.bf16.mxu0 0
        %1655 = vmatpush2.bf16.msra.mxu0 0
        %1656 = vmatprep.subr.bf16.mxu0 0
        %1657 = vmatpush2.bf16.msra.mxu0 0
        %1658 = vmatprep.subr.bf16.mxu0 0
        %1659 = vmatpush2.bf16.msra.mxu0 0
        %1660 = vmatprep.mubr.bf16.mxu0 0
        %1661 = vmatmul.mubr.bf16.gmra.mxu0 %v1567
        %v1662 = vpop.f32.mrf.mxu0
        %v1663 = vadd.f32 %v1579, %v1662
        %v1664 = vpop.f32.mrf.mxu0
        %v1665 = vpop.f32.mrf.mxu0
        %v1666 = vadd.f32 %v1579, %v1665
        %v1667 = vpop.f32.mrf.mxu0
        %1668 = vmatprep.mubr.bf16.mxu0 0
        %1669 = vmatmul.mubr.bf16.gmra.mxu0 %v1568
        %v1670 = vpop.f32.mrf.mxu0
        %v1671 = vadd.f32 %v1579, %v1670
        %v1672 = vpop.f32.mrf.mxu0
        %v1673 = vpop.f32.mrf.mxu0
        %v1674 = vadd.f32 %v1579, %v1673
        %v1675 = vpop.f32.mrf.mxu0
        %1676 = vmatprep.mubr.bf16.mxu0 0
        %1677 = vmatmul.mubr.bf16.gmra.mxu0 %v1569
        %v1678 = vpop.f32.mrf.mxu0
        %v1679 = vadd.f32 %v1579, %v1678
        %v1680 = vpop.f32.mrf.mxu0
        %v1681 = vpop.f32.mrf.mxu0
        %v1682 = vadd.f32 %v1579, %v1681
        %v1683 = vpop.f32.mrf.mxu0
        %1684 = vmatprep.mubr.bf16.mxu0 0
        %1685 = vmatmul.mubr.bf16.gmra.mxu0 %v1570
        %v1686 = vpop.f32.mrf.mxu0
        %v1687 = vadd.f32 %v1579, %v1686
        %v1688 = vpop.f32.mrf.mxu0
        %v1689 = vpop.f32.mrf.mxu0
        %v1690 = vadd.f32 %v1579, %v1689
        %v1691 = vpop.f32.mrf.mxu0
        %1692 = vmatprep.mubr.bf16.mxu0 0
        %1693 = vmatmul.mubr.bf16.gmra.mxu0 %v1571
        %v1694 = vpop.f32.mrf.mxu0
        %v1695 = vadd.f32 %v1579, %v1694
        %v1696 = vpop.f32.mrf.mxu0
        %v1697 = vpop.f32.mrf.mxu0
        %v1698 = vadd.f32 %v1579, %v1697
        %v1699 = vpop.f32.mrf.mxu0
        %1700 = vmatprep.mubr.bf16.mxu0 0
        %1701 = vmatmul.mubr.bf16.gmra.mxu0 %v1572
        %v1702 = vpop.f32.mrf.mxu0
        %v1703 = vadd.f32 %v1579, %v1702
        %v1704 = vpop.f32.mrf.mxu0
        %v1705 = vpop.f32.mrf.mxu0
        %v1706 = vadd.f32 %v1579, %v1705
        %v1707 = vpop.f32.mrf.mxu0
        %1708 = vmatprep.mubr.bf16.mxu0 0
        %1709 = vmatmul.mubr.bf16.gmra.mxu0 %v1573
        %v1710 = vpop.f32.mrf.mxu0
        %v1711 = vadd.f32 %v1579, %v1710
        %v1712 = vpop.f32.mrf.mxu0
        %v1713 = vpop.f32.mrf.mxu0
        %v1714 = vadd.f32 %v1579, %v1713
        %v1715 = vpop.f32.mrf.mxu0
        %1716 = vmatprep.mubr.bf16.mxu0 0
        %1717 = vmatmul.mubr.bf16.gmra.mxu0 %v1574
        %v1718 = vpop.f32.mrf.mxu0
        %v1719 = vadd.f32 %v1579, %v1718
        %v1720 = vpop.f32.mrf.mxu0
        %v1721 = vpop.f32.mrf.mxu0
        %v1722 = vadd.f32 %v1579, %v1721
        %v1723 = vpop.f32.mrf.mxu0
        %1724 = vdwg.mxu0
        %v1725 = vrot.slane %v1663, 4
        %v1726 = vmax.f32 %v1663, %v1725
        %v1727 = vrot.slane %v1726, 2
        %v1728 = vmax.f32 %v1726, %v1727
        %v1729 = vrot.slane %v1728, 1
        %v1730 = vmax.f32 %v1728, %v1729
        %v1731 = vrot.slane %v1666, 4
        %v1732 = vmax.f32 %v1666, %v1731
        %v1733 = vrot.slane %v1732, 2
        %v1734 = vmax.f32 %v1732, %v1733
        %v1735 = vrot.slane %v1734, 1
        %v1736 = vmax.f32 %v1734, %v1735
        %v1737 = vrot.slane %v1671, 4
        %v1738 = vmax.f32 %v1671, %v1737
        %v1739 = vrot.slane %v1738, 2
        %v1740 = vmax.f32 %v1738, %v1739
        %v1741 = vrot.slane %v1740, 1
        %v1742 = vmax.f32 %v1740, %v1741
        %v1743 = vrot.slane %v1674, 4
        %v1744 = vmax.f32 %v1674, %v1743
        %v1745 = vrot.slane %v1744, 2
        %v1746 = vmax.f32 %v1744, %v1745
        %v1747 = vrot.slane %v1746, 1
        %v1748 = vmax.f32 %v1746, %v1747
        %v1749 = vrot.slane %v1679, 4
        %v1750 = vmax.f32 %v1679, %v1749
        %v1751 = vrot.slane %v1750, 2
        %v1752 = vmax.f32 %v1750, %v1751
        %v1753 = vrot.slane %v1752, 1
        %v1754 = vmax.f32 %v1752, %v1753
        %v1755 = vrot.slane %v1682, 4
        %v1756 = vmax.f32 %v1682, %v1755
        %v1757 = vrot.slane %v1756, 2
        %v1758 = vmax.f32 %v1756, %v1757
        %v1759 = vrot.slane %v1758, 1
        %v1760 = vmax.f32 %v1758, %v1759
        %v1761 = vrot.slane %v1687, 4
        %v1762 = vmax.f32 %v1687, %v1761
        %v1763 = vrot.slane %v1762, 2
        %v1764 = vmax.f32 %v1762, %v1763
        %v1765 = vrot.slane %v1764, 1
        %v1766 = vmax.f32 %v1764, %v1765
        %v1767 = vrot.slane %v1690, 4
        %v1768 = vmax.f32 %v1690, %v1767
        %v1769 = vrot.slane %v1768, 2
        %v1770 = vmax.f32 %v1768, %v1769
        %v1771 = vrot.slane %v1770, 1
        %v1772 = vmax.f32 %v1770, %v1771
        %v1773 = vrot.slane %v1695, 4
        %v1774 = vmax.f32 %v1695, %v1773
        %v1775 = vrot.slane %v1774, 2
        %v1776 = vmax.f32 %v1774, %v1775
        %v1777 = vrot.slane %v1776, 1
        %v1778 = vmax.f32 %v1776, %v1777
        %v1779 = vrot.slane %v1698, 4
        %v1780 = vmax.f32 %v1698, %v1779
        %v1781 = vrot.slane %v1780, 2
        %v1782 = vmax.f32 %v1780, %v1781
        %v1783 = vrot.slane %v1782, 1
        %v1784 = vmax.f32 %v1782, %v1783
        %v1785 = vrot.slane %v1703, 4
        %v1786 = vmax.f32 %v1703, %v1785
        %v1787 = vrot.slane %v1786, 2
        %v1788 = vmax.f32 %v1786, %v1787
        %v1789 = vrot.slane %v1788, 1
        %v1790 = vmax.f32 %v1788, %v1789
        %v1791 = vrot.slane %v1706, 4
        %v1792 = vmax.f32 %v1706, %v1791
        %v1793 = vrot.slane %v1792, 2
        %v1794 = vmax.f32 %v1792, %v1793
        %v1795 = vrot.slane %v1794, 1
        %v1796 = vmax.f32 %v1794, %v1795
        %v1797 = vrot.slane %v1711, 4
        %v1798 = vmax.f32 %v1711, %v1797
        %v1799 = vrot.slane %v1798, 2
        %v1800 = vmax.f32 %v1798, %v1799
        %v1801 = vrot.slane %v1800, 1
        %v1802 = vmax.f32 %v1800, %v1801
        %v1803 = vrot.slane %v1714, 4
        %v1804 = vmax.f32 %v1714, %v1803
        %v1805 = vrot.slane %v1804, 2
        %v1806 = vmax.f32 %v1804, %v1805
        %v1807 = vrot.slane %v1806, 1
        %v1808 = vmax.f32 %v1806, %v1807
        %v1809 = vrot.slane %v1719, 4
        %v1810 = vmax.f32 %v1719, %v1809
        %v1811 = vrot.slane %v1810, 2
        %v1812 = vmax.f32 %v1810, %v1811
        %v1813 = vrot.slane %v1812, 1
        %v1814 = vmax.f32 %v1812, %v1813
        %v1815 = vrot.slane %v1722, 4
        %v1816 = vmax.f32 %v1722, %v1815
        %v1817 = vrot.slane %v1816, 2
        %v1818 = vmax.f32 %v1816, %v1817
        %v1819 = vrot.slane %v1818, 1
        %v1820 = vmax.f32 %v1818, %v1819
        %v1821 = vsub.f32 %v1663, %v1730
        %v1822 = vsub.f32 %v1666, %v1736
        %v1823 = vsub.f32 %v1671, %v1742
        %v1824 = vsub.f32 %v1674, %v1748
        %v1825 = vsub.f32 %v1679, %v1754
        %v1826 = vsub.f32 %v1682, %v1760
        %v1827 = vsub.f32 %v1687, %v1766
        %v1828 = vsub.f32 %v1690, %v1772
        %v1829 = vsub.f32 %v1695, %v1778
        %v1830 = vsub.f32 %v1698, %v1784
        %v1831 = vsub.f32 %v1703, %v1790
        %v1832 = vsub.f32 %v1706, %v1796
        %v1833 = vsub.f32 %v1711, %v1802
        %v1834 = vsub.f32 %v1714, %v1808
        %v1835 = vsub.f32 %v1719, %v1814
        %v1836 = vsub.f32 %v1722, %v1820
        %v1837 = vmul.f32 %v1821, 1.442695
        %v1838 = vpow.pop %v1837
        %v1839 = vmul.f32 %v1822, 1.442695
        %v1840 = vpow.pop %v1839
        %v1841 = vmul.f32 %v1823, 1.442695
        %v1842 = vpow.pop %v1841
        %v1843 = vmul.f32 %v1824, 1.442695
        %v1844 = vpow.pop %v1843
        %v1845 = vmul.f32 %v1825, 1.442695
        %v1846 = vpow.pop %v1845
        %v1847 = vmul.f32 %v1826, 1.442695
        %v1848 = vpow.pop %v1847
        %v1849 = vmul.f32 %v1827, 1.442695
        %v1850 = vpow.pop %v1849
        %v1851 = vmul.f32 %v1828, 1.442695
        %v1852 = vpow.pop %v1851
        %v1853 = vmul.f32 %v1829, 1.442695
        %v1854 = vpow.pop %v1853
        %v1855 = vmul.f32 %v1830, 1.442695
        %v1856 = vpow.pop %v1855
        %v1857 = vmul.f32 %v1831, 1.442695
        %v1858 = vpow.pop %v1857
        %v1859 = vmul.f32 %v1832, 1.442695
        %v1860 = vpow.pop %v1859
        %v1861 = vmul.f32 %v1833, 1.442695
        %v1862 = vpow.pop %v1861
        %v1863 = vmul.f32 %v1834, 1.442695
        %v1864 = vpow.pop %v1863
        %v1865 = vmul.f32 %v1835, 1.442695
        %v1866 = vpow.pop %v1865
        %v1867 = vmul.f32 %v1836, 1.442695
        %v1868 = vpow.pop %v1867
        %v1869 = vadd.f32 %v1055, %v1131
        %v1870 = vadd.f32 %v1059, %v1132
        %v1871 = vadd.f32 %v1065, %v1133
        %v1872 = vadd.f32 %v1069, %v1134
        %v1873 = vadd.f32 %v1075, %v1135
        %v1874 = vadd.f32 %v1079, %v1136
        %v1875 = vadd.f32 %v1085, %v1137
        %v1876 = vadd.f32 %v1089, %v1138
        %v1877 = vadd.f32 %v1095, %v1139
        %v1878 = vadd.f32 %v1099, %v1140
        %v1879 = vadd.f32 %v1105, %v1141
        %v1880 = vadd.f32 %v1109, %v1142
        %v1881 = vadd.f32 %v1115, %v1143
        %v1882 = vadd.f32 %v1119, %v1144
        %v1883 = vadd.f32 %v1125, %v1145
        %v1884 = vadd.f32 %v1129, %v1146
        %v1885 = vmul.f32 %v1838, %v1869
        %v1886 = vmul.f32 %v1840, %v1870
        %v1887 = vmul.f32 %v1842, %v1871
        %v1888 = vmul.f32 %v1844, %v1872
        %v1889 = vmul.f32 %v1846, %v1873
        %v1890 = vmul.f32 %v1848, %v1874
        %v1891 = vmul.f32 %v1850, %v1875
        %v1892 = vmul.f32 %v1852, %v1876
        %v1893 = vmul.f32 %v1854, %v1877
        %v1894 = vmul.f32 %v1856, %v1878
        %v1895 = vmul.f32 %v1858, %v1879
        %v1896 = vmul.f32 %v1860, %v1880
        %v1897 = vmul.f32 %v1862, %v1881
        %v1898 = vmul.f32 %v1864, %v1882
        %v1899 = vmul.f32 %v1866, %v1883
        %v1900 = vmul.f32 %v1868, %v1884
        %v1901 = vrot.slane %v1885, 4
        %v1902 = vadd.f32 %v1885, %v1901
        %v1903 = vrot.slane %v1902, 2
        %v1904 = vadd.f32 %v1902, %v1903
        %v1905 = vrot.slane %v1904, 1
        %v1906 = vadd.f32 %v1904, %v1905
        %v1907 = vrot.slane %v1886, 4
        %v1908 = vadd.f32 %v1886, %v1907
        %v1909 = vrot.slane %v1908, 2
        %v1910 = vadd.f32 %v1908, %v1909
        %v1911 = vrot.slane %v1910, 1
        %v1912 = vadd.f32 %v1910, %v1911
        %v1913 = vrot.slane %v1887, 4
        %v1914 = vadd.f32 %v1887, %v1913
        %v1915 = vrot.slane %v1914, 2
        %v1916 = vadd.f32 %v1914, %v1915
        %v1917 = vrot.slane %v1916, 1
        %v1918 = vadd.f32 %v1916, %v1917
        %v1919 = vrot.slane %v1888, 4
        %v1920 = vadd.f32 %v1888, %v1919
        %v1921 = vrot.slane %v1920, 2
        %v1922 = vadd.f32 %v1920, %v1921
        %v1923 = vrot.slane %v1922, 1
        %v1924 = vadd.f32 %v1922, %v1923
        %v1925 = vrot.slane %v1889, 4
        %v1926 = vadd.f32 %v1889, %v1925
        %v1927 = vrot.slane %v1926, 2
        %v1928 = vadd.f32 %v1926, %v1927
        %v1929 = vrot.slane %v1928, 1
        %v1930 = vadd.f32 %v1928, %v1929
        %v1931 = vrot.slane %v1890, 4
        %v1932 = vadd.f32 %v1890, %v1931
        %v1933 = vrot.slane %v1932, 2
        %v1934 = vadd.f32 %v1932, %v1933
        %v1935 = vrot.slane %v1934, 1
        %v1936 = vadd.f32 %v1934, %v1935
        %v1937 = vrot.slane %v1891, 4
        %v1938 = vadd.f32 %v1891, %v1937
        %v1939 = vrot.slane %v1938, 2
        %v1940 = vadd.f32 %v1938, %v1939
        %v1941 = vrot.slane %v1940, 1
        %v1942 = vadd.f32 %v1940, %v1941
        %v1943 = vrot.slane %v1892, 4
        %v1944 = vadd.f32 %v1892, %v1943
        %v1945 = vrot.slane %v1944, 2
        %v1946 = vadd.f32 %v1944, %v1945
        %v1947 = vrot.slane %v1946, 1
        %v1948 = vadd.f32 %v1946, %v1947
        %v1949 = vrot.slane %v1893, 4
        %v1950 = vadd.f32 %v1893, %v1949
        %v1951 = vrot.slane %v1950, 2
        %v1952 = vadd.f32 %v1950, %v1951
        %v1953 = vrot.slane %v1952, 1
        %v1954 = vadd.f32 %v1952, %v1953
        %v1955 = vrot.slane %v1894, 4
        %v1956 = vadd.f32 %v1894, %v1955
        %v1957 = vrot.slane %v1956, 2
        %v1958 = vadd.f32 %v1956, %v1957
        %v1959 = vrot.slane %v1958, 1
        %v1960 = vadd.f32 %v1958, %v1959
        %v1961 = vrot.slane %v1895, 4
        %v1962 = vadd.f32 %v1895, %v1961
        %v1963 = vrot.slane %v1962, 2
        %v1964 = vadd.f32 %v1962, %v1963
        %v1965 = vrot.slane %v1964, 1
        %v1966 = vadd.f32 %v1964, %v1965
        %v1967 = vrot.slane %v1896, 4
        %v1968 = vadd.f32 %v1896, %v1967
        %v1969 = vrot.slane %v1968, 2
        %v1970 = vadd.f32 %v1968, %v1969
        %v1971 = vrot.slane %v1970, 1
        %v1972 = vadd.f32 %v1970, %v1971
        %v1973 = vrot.slane %v1897, 4
        %v1974 = vadd.f32 %v1897, %v1973
        %v1975 = vrot.slane %v1974, 2
        %v1976 = vadd.f32 %v1974, %v1975
        %v1977 = vrot.slane %v1976, 1
        %v1978 = vadd.f32 %v1976, %v1977
        %v1979 = vrot.slane %v1898, 4
        %v1980 = vadd.f32 %v1898, %v1979
        %v1981 = vrot.slane %v1980, 2
        %v1982 = vadd.f32 %v1980, %v1981
        %v1983 = vrot.slane %v1982, 1
        %v1984 = vadd.f32 %v1982, %v1983
        %v1985 = vrot.slane %v1899, 4
        %v1986 = vadd.f32 %v1899, %v1985
        %v1987 = vrot.slane %v1986, 2
        %v1988 = vadd.f32 %v1986, %v1987
        %v1989 = vrot.slane %v1988, 1
        %v1990 = vadd.f32 %v1988, %v1989
        %v1991 = vrot.slane %v1900, 4
        %v1992 = vadd.f32 %v1900, %v1991
        %v1993 = vrot.slane %v1992, 2
        %v1994 = vadd.f32 %v1992, %v1993
        %v1995 = vrot.slane %v1994, 1
        %v1996 = vadd.f32 %v1994, %v1995
        %v1997 = vrot.slane %v1838, 4
        %v1998 = vadd.f32 %v1838, %v1997
        %v1999 = vrot.slane %v1998, 2
        %v2000 = vadd.f32 %v1998, %v1999
        %v2001 = vrot.slane %v2000, 1
        %v2002 = vadd.f32 %v2000, %v2001
        %v2003 = vrot.slane %v1840, 4
        %v2004 = vadd.f32 %v1840, %v2003
        %v2005 = vrot.slane %v2004, 2
        %v2006 = vadd.f32 %v2004, %v2005
        %v2007 = vrot.slane %v2006, 1
        %v2008 = vadd.f32 %v2006, %v2007
        %v2009 = vrot.slane %v1842, 4
        %v2010 = vadd.f32 %v1842, %v2009
        %v2011 = vrot.slane %v2010, 2
        %v2012 = vadd.f32 %v2010, %v2011
        %v2013 = vrot.slane %v2012, 1
        %v2014 = vadd.f32 %v2012, %v2013
        %v2015 = vrot.slane %v1844, 4
        %v2016 = vadd.f32 %v1844, %v2015
        %v2017 = vrot.slane %v2016, 2
        %v2018 = vadd.f32 %v2016, %v2017
        %v2019 = vrot.slane %v2018, 1
        %v2020 = vadd.f32 %v2018, %v2019
        %v2021 = vrot.slane %v1846, 4
        %v2022 = vadd.f32 %v1846, %v2021
        %v2023 = vrot.slane %v2022, 2
        %v2024 = vadd.f32 %v2022, %v2023
        %v2025 = vrot.slane %v2024, 1
        %v2026 = vadd.f32 %v2024, %v2025
        %v2027 = vrot.slane %v1848, 4
        %v2028 = vadd.f32 %v1848, %v2027
        %v2029 = vrot.slane %v2028, 2
        %v2030 = vadd.f32 %v2028, %v2029
        %v2031 = vrot.slane %v2030, 1
        %v2032 = vadd.f32 %v2030, %v2031
        %v2033 = vrot.slane %v1850, 4
        %v2034 = vadd.f32 %v1850, %v2033
        %v2035 = vrot.slane %v2034, 2
        %v2036 = vadd.f32 %v2034, %v2035
        %v2037 = vrot.slane %v2036, 1
        %v2038 = vadd.f32 %v2036, %v2037
        %v2039 = vrot.slane %v1852, 4
        %v2040 = vadd.f32 %v1852, %v2039
        %v2041 = vrot.slane %v2040, 2
        %v2042 = vadd.f32 %v2040, %v2041
        %v2043 = vrot.slane %v2042, 1
        %v2044 = vadd.f32 %v2042, %v2043
        %v2045 = vrot.slane %v1854, 4
        %v2046 = vadd.f32 %v1854, %v2045
        %v2047 = vrot.slane %v2046, 2
        %v2048 = vadd.f32 %v2046, %v2047
        %v2049 = vrot.slane %v2048, 1
        %v2050 = vadd.f32 %v2048, %v2049
        %v2051 = vrot.slane %v1856, 4
        %v2052 = vadd.f32 %v1856, %v2051
        %v2053 = vrot.slane %v2052, 2
        %v2054 = vadd.f32 %v2052, %v2053
        %v2055 = vrot.slane %v2054, 1
        %v2056 = vadd.f32 %v2054, %v2055
        %v2057 = vrot.slane %v1858, 4
        %v2058 = vadd.f32 %v1858, %v2057
        %v2059 = vrot.slane %v2058, 2
        %v2060 = vadd.f32 %v2058, %v2059
        %v2061 = vrot.slane %v2060, 1
        %v2062 = vadd.f32 %v2060, %v2061
        %v2063 = vrot.slane %v1860, 4
        %v2064 = vadd.f32 %v1860, %v2063
        %v2065 = vrot.slane %v2064, 2
        %v2066 = vadd.f32 %v2064, %v2065
        %v2067 = vrot.slane %v2066, 1
        %v2068 = vadd.f32 %v2066, %v2067
        %v2069 = vrot.slane %v1862, 4
        %v2070 = vadd.f32 %v1862, %v2069
        %v2071 = vrot.slane %v2070, 2
        %v2072 = vadd.f32 %v2070, %v2071
        %v2073 = vrot.slane %v2072, 1
        %v2074 = vadd.f32 %v2072, %v2073
        %v2075 = vrot.slane %v1864, 4
        %v2076 = vadd.f32 %v1864, %v2075
        %v2077 = vrot.slane %v2076, 2
        %v2078 = vadd.f32 %v2076, %v2077
        %v2079 = vrot.slane %v2078, 1
        %v2080 = vadd.f32 %v2078, %v2079
        %v2081 = vrot.slane %v1866, 4
        %v2082 = vadd.f32 %v1866, %v2081
        %v2083 = vrot.slane %v2082, 2
        %v2084 = vadd.f32 %v2082, %v2083
        %v2085 = vrot.slane %v2084, 1
        %v2086 = vadd.f32 %v2084, %v2085
        %v2087 = vrot.slane %v1868, 4
        %v2088 = vadd.f32 %v1868, %v2087
        %v2089 = vrot.slane %v2088, 2
        %v2090 = vadd.f32 %v2088, %v2089
        %v2091 = vrot.slane %v2090, 1
        %v2092 = vadd.f32 %v2090, %v2091
        %v2093 = vrcp.pop %v2002
        %v2094 = vrcp.pop %v2008
        %v2095 = vrcp.pop %v2014
        %v2096 = vrcp.pop %v2020
        %v2097 = vrcp.pop %v2026
        %v2098 = vrcp.pop %v2032
        %v2099 = vrcp.pop %v2038
        %v2100 = vrcp.pop %v2044
        %v2101 = vrcp.pop %v2050
        %v2102 = vrcp.pop %v2056
        %v2103 = vrcp.pop %v2062
        %v2104 = vrcp.pop %v2068
        %v2105 = vrcp.pop %v2074
        %v2106 = vrcp.pop %v2080
        %v2107 = vrcp.pop %v2086
        %v2108 = vrcp.pop %v2092
        %v2109 = vmul.f32 %v1906, %v2093
        %v2110 = vmul.f32 %v1912, %v2094
        %v2111 = vmul.f32 %v1918, %v2095
        %v2112 = vmul.f32 %v1924, %v2096
        %v2113 = vmul.f32 %v1930, %v2097
        %v2114 = vmul.f32 %v1936, %v2098
        %v2115 = vmul.f32 %v1942, %v2099
        %v2116 = vmul.f32 %v1948, %v2100
        %v2117 = vmul.f32 %v1954, %v2101
        %v2118 = vmul.f32 %v1960, %v2102
        %v2119 = vmul.f32 %v1966, %v2103
        %v2120 = vmul.f32 %v1972, %v2104
        %v2121 = vmul.f32 %v1978, %v2105
        %v2122 = vmul.f32 %v1984, %v2106
        %v2123 = vmul.f32 %v1990, %v2107
        %v2124 = vmul.f32 %v1996, %v2108
        %s2125 = scalar_lea.vmem [#allocation9], 512
        %v2126 = vld [vmem:[%s2125] sm:$0xf]
        %v2127 = vld [vmem:[%s2125 + $0x4] sm:$0xf]
        %v2128 = vld [vmem:[%s2125 + $0x8] sm:$0xf]
        %v2129 = vld [vmem:[%s2125 + $0xc] sm:$0xf]
        %v2130 = vld [vmem:[%s2125 + $0x10] sm:$0xf]
        %v2131 = vld [vmem:[%s2125 + $0x14] sm:$0xf]
        %v2132 = vld [vmem:[%s2125 + $0x18] sm:$0xf]
        %v2133 = vld [vmem:[%s2125 + $0x1c] sm:$0xf]
        %v2134 = vld [vmem:[%s2125 + $0x20] sm:$0xf]
        %v2135 = vld [vmem:[%s2125 + $0x24] sm:$0xf]
        %v2136 = vld [vmem:[%s2125 + $0x28] sm:$0xf]
        %v2137 = vld [vmem:[%s2125 + $0x2c] sm:$0xf]
        %v2138 = vld [vmem:[%s2125 + $0x30] sm:$0xf]
        %v2139 = vld [vmem:[%s2125 + $0x34] sm:$0xf]
        %v2140 = vld [vmem:[%s2125 + $0x38] sm:$0xf]
        %v2141 = vld [vmem:[%s2125 + $0x3c] sm:$0xf]
        %v2142 = vpack.c.bf16 %v2109, %v2109
        %v2143 = vpack.c.bf16 %v2110, %v2110
        %v2144 = vpack.c.bf16 %v2111, %v2111
        %v2145 = vpack.c.bf16 %v2112, %v2112
        %v2146 = vpack.c.bf16 %v2113, %v2113
        %v2147 = vpack.c.bf16 %v2114, %v2114
        %v2148 = vpack.c.bf16 %v2115, %v2115
        %v2149 = vpack.c.bf16 %v2116, %v2116
        %v2150 = vpack.c.bf16 %v2117, %v2117
        %v2151 = vpack.c.bf16 %v2118, %v2118
        %v2152 = vpack.c.bf16 %v2119, %v2119
        %v2153 = vpack.c.bf16 %v2120, %v2120
        %v2154 = vpack.c.bf16 %v2121, %v2121
        %v2155 = vpack.c.bf16 %v2122, %v2122
        %v2156 = vpack.c.bf16 %v2123, %v2123
        %v2157 = vpack.c.bf16 %v2124, %v2124
        %v2158 = vld [vmem:[#allocation12 + $0x6] sm:$0x1]
        %v2159 = vlaneseq
        %v2160 = vshrl.u32 %v2159, 7
        %v2161 = vsub.s32 0, %v2160
        %v2162 = vrot.slane %v2158, %v2161
        %v2179 = vunpack.c.l.b16 %v2142
        %v2180 = vunpack.c.l.b16 %v2143
        %v2181 = vunpack.c.l.b16 %v2144
        %v2182 = vunpack.c.l.b16 %v2145
        %v2183 = vunpack.c.l.b16 %v2146
        %v2184 = vunpack.c.l.b16 %v2147
        %v2185 = vunpack.c.l.b16 %v2148
        %v2186 = vunpack.c.l.b16 %v2149
        %v2187 = vunpack.c.l.b16 %v2150
        %v2188 = vunpack.c.l.b16 %v2151
        %v2189 = vunpack.c.l.b16 %v2152
        %v2190 = vunpack.c.l.b16 %v2153
        %v2191 = vunpack.c.l.b16 %v2154
        %v2192 = vunpack.c.l.b16 %v2155
        %v2193 = vunpack.c.l.b16 %v2156
        %v2194 = vunpack.c.l.b16 %v2157
        %vm2195 = vcmask 1041409
        %v2196 = vsel %vm2195, %v2180, %v2179
        %vm2197 = vcmask 1042434
        %v2198 = vsel %vm2197, %v2181, %v2196
        %vm2199 = vcmask 1043459
        %v2200 = vsel %vm2199, %v2182, %v2198
        %vm2201 = vcmask 1044484
        %v2202 = vsel %vm2201, %v2183, %v2200
        %vm2203 = vcmask 1045509
        %v2204 = vsel %vm2203, %v2184, %v2202
        %vm2205 = vcmask 1046534
        %v2206 = vsel %vm2205, %v2185, %v2204
        %vm2207 = vcmask 1047559
        %v2208 = vsel %vm2207, %v2186, %v2206
        %v2209 = vsel %vm2195, %v2188, %v2187
        %v2210 = vsel %vm2197, %v2189, %v2209
        %v2211 = vsel %vm2199, %v2190, %v2210
        %v2212 = vsel %vm2201, %v2191, %v2211
        %v2213 = vsel %vm2203, %v2192, %v2212
        %v2214 = vsel %vm2205, %v2193, %v2213
        %v2215 = vsel %vm2207, %v2194, %v2214
        %v2216 = vpack.c.b16 %v2215, %v2208
        %v2234 = vunpack.c.l.b16 %v2126
        %v2235 = vunpack.c.l.b16 %v2127
        %v2236 = vunpack.c.l.b16 %v2128
        %v2237 = vunpack.c.l.b16 %v2129
        %v2238 = vunpack.c.l.b16 %v2130
        %v2239 = vunpack.c.l.b16 %v2131
        %v2240 = vunpack.c.l.b16 %v2132
        %v2241 = vunpack.c.l.b16 %v2133
        %v2242 = vunpack.c.l.b16 %v2134
        %v2243 = vunpack.c.l.b16 %v2135
        %v2244 = vunpack.c.l.b16 %v2136
        %v2245 = vunpack.c.l.b16 %v2137
        %v2246 = vunpack.c.l.b16 %v2138
        %v2247 = vunpack.c.l.b16 %v2139
        %v2248 = vunpack.c.l.b16 %v2140
        %v2249 = vunpack.c.l.b16 %v2141
        %v2250 = vpack.c.b16 %v2235, %v2234
        %v2251 = vpack.c.b16 %v2237, %v2236
        %v2252 = vpack.c.b16 %v2239, %v2238
        %v2253 = vpack.c.b16 %v2241, %v2240
        %v2254 = vpack.c.b16 %v2243, %v2242
        %v2255 = vpack.c.b16 %v2245, %v2244
        %v2256 = vpack.c.b16 %v2247, %v2246
        %v2257 = vpack.c.b16 %v2249, %v2248
        %2266 = vmatprep.subr.bf16.mxu0 0
        %2267 = vmatpush1.bf16.msra.mxu0 %v2257
        %2268 = vmatprep.subr.bf16.mxu0 0
        %2269 = vmatpush1.bf16.msra.mxu0 %v2256
        %2270 = vmatprep.subr.bf16.mxu0 0
        %2271 = vmatpush1.bf16.msra.mxu0 %v2255
        %2272 = vmatprep.subr.bf16.mxu0 0
        %2273 = vmatpush1.bf16.msra.mxu0 %v2254
        %2274 = vmatprep.subr.bf16.mxu0 0
        %2275 = vmatpush1.bf16.msra.mxu0 %v2253
        %2276 = vmatprep.subr.bf16.mxu0 0
        %2277 = vmatpush1.bf16.msra.mxu0 %v2252
        %2278 = vmatprep.subr.bf16.mxu0 0
        %2279 = vmatpush1.bf16.msra.mxu0 %v2251
        %2280 = vmatprep.subr.bf16.mxu0 0
        %2281 = vmatpush1.bf16.msra.mxu0 %v2250
        %2282 = vmatprep.subr.bf16.mxu0 0
        %2283 = vmatpush2.bf16.msra.mxu0 0
        %2284 = vmatprep.subr.bf16.mxu0 0
        %2285 = vmatpush2.bf16.msra.mxu0 0
        %2286 = vmatprep.subr.bf16.mxu0 0
        %2287 = vmatpush2.bf16.msra.mxu0 0
        %2288 = vmatprep.subr.bf16.mxu0 0
        %2289 = vmatpush2.bf16.msra.mxu0 0
        %2290 = vmatprep.subr.bf16.mxu0 0
        %2291 = vmatpush2.bf16.msra.mxu0 0
        %2292 = vmatprep.subr.bf16.mxu0 0
        %2293 = vmatpush2.bf16.msra.mxu0 0
        %2294 = vmatprep.subr.bf16.mxu0 0
        %2295 = vmatpush2.bf16.msra.mxu0 0
        %2296 = vmatprep.subr.bf16.mxu0 0
        %2297 = vmatpush2.bf16.msra.mxu0 0
        %2298 = vmatprep.mubr.bf16.mxu0 0
        %2299 = vmatmul.mubr.bf16.gmra.mxu0 %v2216
        %v2300 = vpop.f32.mrf.mxu0
        %v2301 = vadd.f32 %v2162, %v2300
        %v2302 = vpop.f32.mrf.mxu0
        %v2303 = vpop.f32.mrf.mxu0
        %v2304 = vadd.f32 %v2162, %v2303
        %v2305 = vpop.f32.mrf.mxu0
        %2306 = vdwg.mxu0
        %v2307 = vmax.f32 %v2301, 0.0
        %v2308 = vmax.f32 %v2304, 0.0
        %s2309 = scalar_lea.vmem [#allocation9], 576
        %v2310 = vld [vmem:[%s2309] sm:$0xf]
        %v2311 = vld [vmem:[%s2309 + $0x4] sm:$0xf]
        %v2312 = vld [vmem:[%s2309 + $0x8] sm:$0xf]
        %v2313 = vld [vmem:[%s2309 + $0xc] sm:$0xf]
        %v2314 = vld [vmem:[%s2309 + $0x10] sm:$0xf]
        %v2315 = vld [vmem:[%s2309 + $0x14] sm:$0xf]
        %v2316 = vld [vmem:[%s2309 + $0x18] sm:$0xf]
        %v2317 = vld [vmem:[%s2309 + $0x1c] sm:$0xf]
        %v2318 = vld [vmem:[%s2309 + $0x20] sm:$0xf]
        %v2319 = vld [vmem:[%s2309 + $0x24] sm:$0xf]
        %v2320 = vld [vmem:[%s2309 + $0x28] sm:$0xf]
        %v2321 = vld [vmem:[%s2309 + $0x2c] sm:$0xf]
        %v2322 = vld [vmem:[%s2309 + $0x30] sm:$0xf]
        %v2323 = vld [vmem:[%s2309 + $0x34] sm:$0xf]
        %v2324 = vld [vmem:[%s2309 + $0x38] sm:$0xf]
        %v2325 = vld [vmem:[%s2309 + $0x3c] sm:$0xf]
        %v2326 = vpack.c.bf16 %v2308, %v2307
        %v2327 = vld [vmem:[#allocation12 + $0x7] sm:$0x1]
        %v2328 = vlaneseq
        %v2329 = vshrl.u32 %v2328, 7
        %v2330 = vsub.s32 0, %v2329
        %v2331 = vrot.slane %v2327, %v2330
        %v2348 = vunpack.c.l.b16 %v2310
        %v2349 = vunpack.c.l.b16 %v2311
        %v2350 = vunpack.c.l.b16 %v2312
        %v2351 = vunpack.c.l.b16 %v2313
        %v2352 = vunpack.c.l.b16 %v2314
        %v2353 = vunpack.c.l.b16 %v2315
        %v2354 = vunpack.c.l.b16 %v2316
        %v2355 = vunpack.c.l.b16 %v2317
        %v2356 = vunpack.c.l.b16 %v2318
        %v2357 = vunpack.c.l.b16 %v2319
        %v2358 = vunpack.c.l.b16 %v2320
        %v2359 = vunpack.c.l.b16 %v2321
        %v2360 = vunpack.c.l.b16 %v2322
        %v2361 = vunpack.c.l.b16 %v2323
        %v2362 = vunpack.c.l.b16 %v2324
        %v2363 = vunpack.c.l.b16 %v2325
        %v2364 = vpack.c.b16 %v2349, %v2348
        %v2365 = vpack.c.b16 %v2351, %v2350
        %v2366 = vpack.c.b16 %v2353, %v2352
        %v2367 = vpack.c.b16 %v2355, %v2354
        %v2368 = vpack.c.b16 %v2357, %v2356
        %v2369 = vpack.c.b16 %v2359, %v2358
        %v2370 = vpack.c.b16 %v2361, %v2360
        %v2371 = vpack.c.b16 %v2363, %v2362
        %2380 = vmatprep.subr.bf16.mxu0 0
        %2381 = vmatpush1.bf16.msra.mxu0 %v2371
        %2382 = vmatprep.subr.bf16.mxu0 0
        %2383 = vmatpush1.bf16.msra.mxu0 %v2370
        %2384 = vmatprep.subr.bf16.mxu0 0
        %2385 = vmatpush1.bf16.msra.mxu0 %v2369
        %2386 = vmatprep.subr.bf16.mxu0 0
        %2387 = vmatpush1.bf16.msra.mxu0 %v2368
        %2388 = vmatprep.subr.bf16.mxu0 0
        %2389 = vmatpush1.bf16.msra.mxu0 %v2367
        %2390 = vmatprep.subr.bf16.mxu0 0
        %2391 = vmatpush1.bf16.msra.mxu0 %v2366
        %2392 = vmatprep.subr.bf16.mxu0 0
        %2393 = vmatpush1.bf16.msra.mxu0 %v2365
        %2394 = vmatprep.subr.bf16.mxu0 0
        %2395 = vmatpush1.bf16.msra.mxu0 %v2364
        %2396 = vmatprep.subr.bf16.mxu0 0
        %2397 = vmatpush2.bf16.msra.mxu0 0
        %2398 = vmatprep.subr.bf16.mxu0 0
        %2399 = vmatpush2.bf16.msra.mxu0 0
        %2400 = vmatprep.subr.bf16.mxu0 0
        %2401 = vmatpush2.bf16.msra.mxu0 0
        %2402 = vmatprep.subr.bf16.mxu0 0
        %2403 = vmatpush2.bf16.msra.mxu0 0
        %2404 = vmatprep.subr.bf16.mxu0 0
        %2405 = vmatpush2.bf16.msra.mxu0 0
        %2406 = vmatprep.subr.bf16.mxu0 0
        %2407 = vmatpush2.bf16.msra.mxu0 0
        %2408 = vmatprep.subr.bf16.mxu0 0
        %2409 = vmatpush2.bf16.msra.mxu0 0
        %2410 = vmatprep.subr.bf16.mxu0 0
        %2411 = vmatpush2.bf16.msra.mxu0 0
        %2412 = vmatprep.mubr.bf16.mxu0 0
        %2413 = vmatmul.mubr.bf16.gmra.mxu0 %v2326
        %v2414 = vpop.f32.mrf.mxu0
        %v2415 = vadd.f32 %v2331, %v2414
        %v2416 = vpop.f32.mrf.mxu0
        %v2417 = vpop.f32.mrf.mxu0
        %v2418 = vadd.f32 %v2331, %v2417
        %v2419 = vpop.f32.mrf.mxu0
        %2420 = vdwg.mxu0
        %v2423 = vrot.slane %v2415, 1
        %v2424 = vrot.slane %v2415, 2
        %v2425 = vrot.slane %v2415, 3
        %v2426 = vrot.slane %v2415, 4
        %v2427 = vrot.slane %v2415, 5
        %v2428 = vrot.slane %v2415, 6
        %v2429 = vrot.slane %v2415, 7
        %v2430 = vrot.slane %v2418, 1
        %v2431 = vrot.slane %v2418, 2
        %v2432 = vrot.slane %v2418, 3
        %v2433 = vrot.slane %v2418, 4
        %v2434 = vrot.slane %v2418, 5
        %v2435 = vrot.slane %v2418, 6
        %v2436 = vrot.slane %v2418, 7
        %v2453 = vadd.f32 %v2109, %v2415
        %v2454 = vadd.f32 %v2110, %v2423
        %v2455 = vadd.f32 %v2111, %v2424
        %v2456 = vadd.f32 %v2112, %v2425
        %v2457 = vadd.f32 %v2113, %v2426
        %v2458 = vadd.f32 %v2114, %v2427
        %v2459 = vadd.f32 %v2115, %v2428
        %v2460 = vadd.f32 %v2116, %v2429
        %v2461 = vadd.f32 %v2117, %v2418
        %v2462 = vadd.f32 %v2118, %v2430
        %v2463 = vadd.f32 %v2119, %v2431
        %v2464 = vadd.f32 %v2120, %v2432
        %v2465 = vadd.f32 %v2121, %v2433
        %v2466 = vadd.f32 %v2122, %v2434
        %v2467 = vadd.f32 %v2123, %v2435
        %v2468 = vadd.f32 %v2124, %v2436
        %v2469 = vld [vmem:[#allocation12 + $0x8] sm:$0x1]
        %v2470 = vlaneseq
        %v2471 = vshrl.u32 %v2470, 7
        %v2472 = vsub.s32 0, %v2471
        %v2473 = vrot.slane %v2469, %v2472
        %v2474 = vmul.f32 %v2453, %v2473
        %v2475 = vmul.f32 %v2454, %v2473
        %v2476 = vmul.f32 %v2455, %v2473
        %v2477 = vmul.f32 %v2456, %v2473
        %v2478 = vmul.f32 %v2457, %v2473
        %v2479 = vmul.f32 %v2458, %v2473
        %v2480 = vmul.f32 %v2459, %v2473
        %v2481 = vmul.f32 %v2460, %v2473
        %v2482 = vmul.f32 %v2461, %v2473
        %v2483 = vmul.f32 %v2462, %v2473
        %v2484 = vmul.f32 %v2463, %v2473
        %v2485 = vmul.f32 %v2464, %v2473
        %v2486 = vmul.f32 %v2465, %v2473
        %v2487 = vmul.f32 %v2466, %v2473
        %v2488 = vmul.f32 %v2467, %v2473
        %v2489 = vmul.f32 %v2468, %v2473
        %v2490 = vld [vmem:[#allocation12 + $0x9] sm:$0x1]
        %v2491 = vlaneseq
        %v2492 = vshrl.u32 %v2491, 7
        %v2493 = vsub.s32 0, %v2492
        %v2494 = vrot.slane %v2490, %v2493
        %v2495 = vadd.f32 %v2474, %v2494
        %v2496 = vadd.f32 %v2475, %v2494
        %v2497 = vadd.f32 %v2476, %v2494
        %v2498 = vadd.f32 %v2477, %v2494
        %v2499 = vadd.f32 %v2478, %v2494
        %v2500 = vadd.f32 %v2479, %v2494
        %v2501 = vadd.f32 %v2480, %v2494
        %v2502 = vadd.f32 %v2481, %v2494
        %v2503 = vadd.f32 %v2482, %v2494
        %v2504 = vadd.f32 %v2483, %v2494
        %v2505 = vadd.f32 %v2484, %v2494
        %v2506 = vadd.f32 %v2485, %v2494
        %v2507 = vadd.f32 %v2486, %v2494
        %v2508 = vadd.f32 %v2487, %v2494
        %v2509 = vadd.f32 %v2488, %v2494
        %v2510 = vadd.f32 %v2489, %v2494
        %s2511 = scalar_lea.vmem [#allocation9], 192
        %v2512 = vld [vmem:[%s2511] sm:$0xf]
        %v2513 = vld [vmem:[%s2511 + $0x4] sm:$0xf]
        %v2514 = vld [vmem:[%s2511 + $0x8] sm:$0xf]
        %v2515 = vld [vmem:[%s2511 + $0xc] sm:$0xf]
        %v2516 = vld [vmem:[%s2511 + $0x10] sm:$0xf]
        %v2517 = vld [vmem:[%s2511 + $0x14] sm:$0xf]
        %v2518 = vld [vmem:[%s2511 + $0x18] sm:$0xf]
        %v2519 = vld [vmem:[%s2511 + $0x1c] sm:$0xf]
        %v2520 = vld [vmem:[%s2511 + $0x20] sm:$0xf]
        %v2521 = vld [vmem:[%s2511 + $0x24] sm:$0xf]
        %v2522 = vld [vmem:[%s2511 + $0x28] sm:$0xf]
        %v2523 = vld [vmem:[%s2511 + $0x2c] sm:$0xf]
        %v2524 = vld [vmem:[%s2511 + $0x30] sm:$0xf]
        %v2525 = vld [vmem:[%s2511 + $0x34] sm:$0xf]
        %v2526 = vld [vmem:[%s2511 + $0x38] sm:$0xf]
        %v2527 = vld [vmem:[%s2511 + $0x3c] sm:$0xf]
        %v2528 = vpack.c.bf16 %v2495, %v2495
        %v2529 = vpack.c.bf16 %v2496, %v2496
        %v2530 = vpack.c.bf16 %v2497, %v2497
        %v2531 = vpack.c.bf16 %v2498, %v2498
        %v2532 = vpack.c.bf16 %v2499, %v2499
        %v2533 = vpack.c.bf16 %v2500, %v2500
        %v2534 = vpack.c.bf16 %v2501, %v2501
        %v2535 = vpack.c.bf16 %v2502, %v2502
        %v2536 = vpack.c.bf16 %v2503, %v2503
        %v2537 = vpack.c.bf16 %v2504, %v2504
        %v2538 = vpack.c.bf16 %v2505, %v2505
        %v2539 = vpack.c.bf16 %v2506, %v2506
        %v2540 = vpack.c.bf16 %v2507, %v2507
        %v2541 = vpack.c.bf16 %v2508, %v2508
        %v2542 = vpack.c.bf16 %v2509, %v2509
        %v2543 = vpack.c.bf16 %v2510, %v2510
        %v2560 = vunpack.c.l.b16 %v2528
        %v2561 = vunpack.c.l.b16 %v2529
        %v2562 = vunpack.c.l.b16 %v2530
        %v2563 = vunpack.c.l.b16 %v2531
        %v2564 = vunpack.c.l.b16 %v2532
        %v2565 = vunpack.c.l.b16 %v2533
        %v2566 = vunpack.c.l.b16 %v2534
        %v2567 = vunpack.c.l.b16 %v2535
        %v2568 = vunpack.c.l.b16 %v2536
        %v2569 = vunpack.c.l.b16 %v2537
        %v2570 = vunpack.c.l.b16 %v2538
        %v2571 = vunpack.c.l.b16 %v2539
        %v2572 = vunpack.c.l.b16 %v2540
        %v2573 = vunpack.c.l.b16 %v2541
        %v2574 = vunpack.c.l.b16 %v2542
        %v2575 = vunpack.c.l.b16 %v2543
        %v2576 = vrot.slane %v2561, 7
        %v2577 = vsel %vm2195, %v2576, %v2560
        %v2578 = vrot.slane %v2562, 6
        %v2579 = vsel %vm2197, %v2578, %v2577
        %v2580 = vrot.slane %v2563, 5
        %v2581 = vsel %vm2199, %v2580, %v2579
        %v2582 = vrot.slane %v2564, 4
        %v2583 = vsel %vm2201, %v2582, %v2581
        %v2584 = vrot.slane %v2565, 3
        %v2585 = vsel %vm2203, %v2584, %v2583
        %v2586 = vrot.slane %v2566, 2
        %v2587 = vsel %vm2205, %v2586, %v2585
        %v2588 = vrot.slane %v2567, 1
        %v2589 = vsel %vm2207, %v2588, %v2587
        %v2590 = vrot.slane %v2569, 7
        %v2591 = vsel %vm2195, %v2590, %v2568
        %v2592 = vrot.slane %v2570, 6
        %v2593 = vsel %vm2197, %v2592, %v2591
        %v2594 = vrot.slane %v2571, 5
        %v2595 = vsel %vm2199, %v2594, %v2593
        %v2596 = vrot.slane %v2572, 4
        %v2597 = vsel %vm2201, %v2596, %v2595
        %v2598 = vrot.slane %v2573, 3
        %v2599 = vsel %vm2203, %v2598, %v2597
        %v2600 = vrot.slane %v2574, 2
        %v2601 = vsel %vm2205, %v2600, %v2599
        %v2602 = vrot.slane %v2575, 1
        %v2603 = vsel %vm2207, %v2602, %v2601
        %v2604 = vpack.c.b16 %v2603, %v2589
        %v2622 = vunpack.c.l.b16 %v2512
        %v2623 = vunpack.c.l.b16 %v2513
        %v2624 = vunpack.c.l.b16 %v2514
        %v2625 = vunpack.c.l.b16 %v2515
        %v2626 = vunpack.c.l.b16 %v2516
        %v2627 = vunpack.c.l.b16 %v2517
        %v2628 = vunpack.c.l.b16 %v2518
        %v2629 = vunpack.c.l.b16 %v2519
        %v2630 = vunpack.c.l.b16 %v2520
        %v2631 = vunpack.c.l.b16 %v2521
        %v2632 = vunpack.c.l.b16 %v2522
        %v2633 = vunpack.c.l.b16 %v2523
        %v2634 = vunpack.c.l.b16 %v2524
        %v2635 = vunpack.c.l.b16 %v2525
        %v2636 = vunpack.c.l.b16 %v2526
        %v2637 = vunpack.c.l.b16 %v2527
        %v2638 = vpack.c.b16 %v2623, %v2622
        %v2639 = vpack.c.b16 %v2625, %v2624
        %v2640 = vpack.c.b16 %v2627, %v2626
        %v2641 = vpack.c.b16 %v2629, %v2628
        %v2642 = vpack.c.b16 %v2631, %v2630
        %v2643 = vpack.c.b16 %v2633, %v2632
        %v2644 = vpack.c.b16 %v2635, %v2634
        %v2645 = vpack.c.b16 %v2637, %v2636
        %2654 = vmatprep.subr.bf16.mxu0 0
        %2655 = vmatpush1.bf16.msra.mxu0 %v2645
        %2656 = vmatprep.subr.bf16.mxu0 0
        %2657 = vmatpush1.bf16.msra.mxu0 %v2644
        %2658 = vmatprep.subr.bf16.mxu0 0
        %2659 = vmatpush1.bf16.msra.mxu0 %v2643
        %2660 = vmatprep.subr.bf16.mxu0 0
        %2661 = vmatpush1.bf16.msra.mxu0 %v2642
        %2662 = vmatprep.subr.bf16.mxu0 0
        %2663 = vmatpush1.bf16.msra.mxu0 %v2641
        %2664 = vmatprep.subr.bf16.mxu0 0
        %2665 = vmatpush1.bf16.msra.mxu0 %v2640
        %2666 = vmatprep.subr.bf16.mxu0 0
        %2667 = vmatpush1.bf16.msra.mxu0 %v2639
        %2668 = vmatprep.subr.bf16.mxu0 0
        %2669 = vmatpush1.bf16.msra.mxu0 %v2638
        %2670 = vmatprep.subr.bf16.mxu0 0
        %2671 = vmatpush2.bf16.msra.mxu0 0
        %2672 = vmatprep.subr.bf16.mxu0 0
        %2673 = vmatpush2.bf16.msra.mxu0 0
        %2674 = vmatprep.subr.bf16.mxu0 0
        %2675 = vmatpush2.bf16.msra.mxu0 0
        %2676 = vmatprep.subr.bf16.mxu0 0
        %2677 = vmatpush2.bf16.msra.mxu0 0
        %2678 = vmatprep.subr.bf16.mxu0 0
        %2679 = vmatpush2.bf16.msra.mxu0 0
        %2680 = vmatprep.subr.bf16.mxu0 0
        %2681 = vmatpush2.bf16.msra.mxu0 0
        %2682 = vmatprep.subr.bf16.mxu0 0
        %2683 = vmatpush2.bf16.msra.mxu0 0
        %2684 = vmatprep.subr.bf16.mxu0 0
        %2685 = vmatpush2.bf16.msra.mxu0 0
        %2686 = vmatprep.mubr.bf16.mxu0 0
        %2687 = vmatmul.mubr.bf16.gmra.mxu0 %v2604
        %v2688 = vpop.f32.mrf.mxu0
        %v2689 = vadd.f32 0.0, %v2688
        %v2690 = vpop.f32.mrf.mxu0
        %v2691 = vpop.f32.mrf.mxu0
        %v2692 = vadd.f32 0.0, %v2691
        %v2693 = vpop.f32.mrf.mxu0
        %2694 = vdwg.mxu0
        %s2695 = scalar_lea.vmem [#allocation11], 128
        %v2696 = vld [vmem:[%s2695] sm:$0xff]
        %v2697 = vld [vmem:[%s2695 + $0x8] sm:$0xff]
        %v2698 = vld [vmem:[%s2695 + $0x10] sm:$0xff]
        %v2699 = vld [vmem:[%s2695 + $0x18] sm:$0xff]
        %v2700 = vld [vmem:[%s2695 + $0x20] sm:$0xff]
        %v2701 = vld [vmem:[%s2695 + $0x28] sm:$0xff]
        %v2702 = vld [vmem:[%s2695 + $0x30] sm:$0xff]
        %v2703 = vld [vmem:[%s2695 + $0x38] sm:$0xff]
        %v2704 = vld [vmem:[%s2695 + $0x40] sm:$0xff]
        %v2705 = vld [vmem:[%s2695 + $0x48] sm:$0xff]
        %v2706 = vld [vmem:[%s2695 + $0x50] sm:$0xff]
        %v2707 = vld [vmem:[%s2695 + $0x58] sm:$0xff]
        %v2708 = vld [vmem:[%s2695 + $0x60] sm:$0xff]
        %v2709 = vld [vmem:[%s2695 + $0x68] sm:$0xff]
        %v2710 = vld [vmem:[%s2695 + $0x70] sm:$0xff]
        %v2711 = vld [vmem:[%s2695 + $0x78] sm:$0xff]
        %v2728 = vunpack.c.l.b16 %v2696
        %v2729 = vunpack.c.h.b16 %v2696
        %v2730 = vunpack.c.l.b16 %v2697
        %v2731 = vunpack.c.h.b16 %v2697
        %v2732 = vunpack.c.l.b16 %v2698
        %v2733 = vunpack.c.h.b16 %v2698
        %v2734 = vunpack.c.l.b16 %v2699
        %v2735 = vunpack.c.h.b16 %v2699
        %v2736 = vunpack.c.l.b16 %v2700
        %v2737 = vunpack.c.h.b16 %v2700
        %v2738 = vunpack.c.l.b16 %v2701
        %v2739 = vunpack.c.h.b16 %v2701
        %v2740 = vunpack.c.l.b16 %v2702
        %v2741 = vunpack.c.h.b16 %v2702
        %v2742 = vunpack.c.l.b16 %v2703
        %v2743 = vunpack.c.h.b16 %v2703
        %v2744 = vunpack.c.l.b16 %v2704
        %v2745 = vunpack.c.h.b16 %v2704
        %v2746 = vunpack.c.l.b16 %v2705
        %v2747 = vunpack.c.h.b16 %v2705
        %v2748 = vunpack.c.l.b16 %v2706
        %v2749 = vunpack.c.h.b16 %v2706
        %v2750 = vunpack.c.l.b16 %v2707
        %v2751 = vunpack.c.h.b16 %v2707
        %v2752 = vunpack.c.l.b16 %v2708
        %v2753 = vunpack.c.h.b16 %v2708
        %v2754 = vunpack.c.l.b16 %v2709
        %v2755 = vunpack.c.h.b16 %v2709
        %v2756 = vunpack.c.l.b16 %v2710
        %v2757 = vunpack.c.h.b16 %v2710
        %v2758 = vunpack.c.l.b16 %v2711
        %v2759 = vunpack.c.h.b16 %v2711
        %v2760 = vpack.c.b16 %v2730, %v2728
        %v2761 = vpack.c.b16 %v2731, %v2729
        %v2762 = vpack.c.b16 %v2734, %v2732
        %v2763 = vpack.c.b16 %v2735, %v2733
        %v2764 = vpack.c.b16 %v2738, %v2736
        %v2765 = vpack.c.b16 %v2739, %v2737
        %v2766 = vpack.c.b16 %v2742, %v2740
        %v2767 = vpack.c.b16 %v2743, %v2741
        %v2768 = vpack.c.b16 %v2746, %v2744
        %v2769 = vpack.c.b16 %v2747, %v2745
        %v2770 = vpack.c.b16 %v2750, %v2748
        %v2771 = vpack.c.b16 %v2751, %v2749
        %v2772 = vpack.c.b16 %v2754, %v2752
        %v2773 = vpack.c.b16 %v2755, %v2753
        %v2774 = vpack.c.b16 %v2758, %v2756
        %v2775 = vpack.c.b16 %v2759, %v2757
        %2792 = vmatprep.subr.bf16.mxu0 %v2775
        %2793 = vmatpush1.bf16.msra.mxu0 %v2774
        %2794 = vmatprep.subr.bf16.mxu0 %v2773
        %2795 = vmatpush1.bf16.msra.mxu0 %v2772
        %2796 = vmatprep.subr.bf16.mxu0 %v2771
        %2797 = vmatpush1.bf16.msra.mxu0 %v2770
        %2798 = vmatprep.subr.bf16.mxu0 %v2769
        %2799 = vmatpush1.bf16.msra.mxu0 %v2768
        %2800 = vmatprep.subr.bf16.mxu0 %v2767
        %2801 = vmatpush1.bf16.msra.mxu0 %v2766
        %2802 = vmatprep.subr.bf16.mxu0 %v2765
        %2803 = vmatpush1.bf16.msra.mxu0 %v2764
        %2804 = vmatprep.subr.bf16.mxu0 %v2763
        %2805 = vmatpush1.bf16.msra.mxu0 %v2762
        %2806 = vmatprep.subr.bf16.mxu0 %v2761
        %2807 = vmatpush1.bf16.msra.mxu0 %v2760
        %2808 = vmatprep.subr.bf16.mxu0 0
        %2809 = vmatpush2.bf16.msra.mxu0 0
        %2810 = vmatprep.subr.bf16.mxu0 0
        %2811 = vmatpush2.bf16.msra.mxu0 0
        %2812 = vmatprep.subr.bf16.mxu0 0
        %2813 = vmatpush2.bf16.msra.mxu0 0
        %2814 = vmatprep.subr.bf16.mxu0 0
        %2815 = vmatpush2.bf16.msra.mxu0 0
        %2816 = vmatprep.subr.bf16.mxu0 0
        %2817 = vmatpush2.bf16.msra.mxu0 0
        %2818 = vmatprep.subr.bf16.mxu0 0
        %2819 = vmatpush2.bf16.msra.mxu0 0
        %2820 = vmatprep.subr.bf16.mxu0 0
        %2821 = vmatpush2.bf16.msra.mxu0 0
        %2822 = vmatprep.subr.bf16.mxu0 0
        %2823 = vmatpush2.bf16.msra.mxu0 0
        %2824 = vmatprep.mubr.bf16.mxu0 0
        %2825 = vmatmul.mubr.bf16.gmra.mxu0 %v930
        %v2826 = vpop.f32.mrf.mxu0
        %v2827 = vadd.f32 0.0, %v2826
        %v2828 = vpop.f32.mrf.mxu0
        %v2829 = vadd.f32 0.0, %v2828
        %v2830 = vpop.f32.mrf.mxu0
        %v2831 = vadd.f32 0.0, %v2830
        %v2832 = vpop.f32.mrf.mxu0
        %v2833 = vadd.f32 0.0, %v2832
        %2834 = vmatprep.mubr.bf16.mxu0 0
        %2835 = vmatmul.mubr.bf16.gmra.mxu0 %v931
        %v2836 = vpop.f32.mrf.mxu0
        %v2837 = vadd.f32 0.0, %v2836
        %v2838 = vpop.f32.mrf.mxu0
        %v2839 = vadd.f32 0.0, %v2838
        %v2840 = vpop.f32.mrf.mxu0
        %v2841 = vadd.f32 0.0, %v2840
        %v2842 = vpop.f32.mrf.mxu0
        %v2843 = vadd.f32 0.0, %v2842
        %2844 = vmatprep.mubr.bf16.mxu0 0
        %2845 = vmatmul.mubr.bf16.gmra.mxu0 %v932
        %v2846 = vpop.f32.mrf.mxu0
        %v2847 = vadd.f32 0.0, %v2846
        %v2848 = vpop.f32.mrf.mxu0
        %v2849 = vadd.f32 0.0, %v2848
        %v2850 = vpop.f32.mrf.mxu0
        %v2851 = vadd.f32 0.0, %v2850
        %v2852 = vpop.f32.mrf.mxu0
        %v2853 = vadd.f32 0.0, %v2852
        %2854 = vmatprep.mubr.bf16.mxu0 0
        %2855 = vmatmul.mubr.bf16.gmra.mxu0 %v933
        %v2856 = vpop.f32.mrf.mxu0
        %v2857 = vadd.f32 0.0, %v2856
        %v2858 = vpop.f32.mrf.mxu0
        %v2859 = vadd.f32 0.0, %v2858
        %v2860 = vpop.f32.mrf.mxu0
        %v2861 = vadd.f32 0.0, %v2860
        %v2862 = vpop.f32.mrf.mxu0
        %v2863 = vadd.f32 0.0, %v2862
        %2864 = vmatprep.mubr.bf16.mxu0 0
        %2865 = vmatmul.mubr.bf16.gmra.mxu0 %v934
        %v2866 = vpop.f32.mrf.mxu0
        %v2867 = vadd.f32 0.0, %v2866
        %v2868 = vpop.f32.mrf.mxu0
        %v2869 = vadd.f32 0.0, %v2868
        %v2870 = vpop.f32.mrf.mxu0
        %v2871 = vadd.f32 0.0, %v2870
        %v2872 = vpop.f32.mrf.mxu0
        %v2873 = vadd.f32 0.0, %v2872
        %2874 = vmatprep.mubr.bf16.mxu0 0
        %2875 = vmatmul.mubr.bf16.gmra.mxu0 %v935
        %v2876 = vpop.f32.mrf.mxu0
        %v2877 = vadd.f32 0.0, %v2876
        %v2878 = vpop.f32.mrf.mxu0
        %v2879 = vadd.f32 0.0, %v2878
        %v2880 = vpop.f32.mrf.mxu0
        %v2881 = vadd.f32 0.0, %v2880
        %v2882 = vpop.f32.mrf.mxu0
        %v2883 = vadd.f32 0.0, %v2882
        %2884 = vmatprep.mubr.bf16.mxu0 0
        %2885 = vmatmul.mubr.bf16.gmra.mxu0 %v936
        %v2886 = vpop.f32.mrf.mxu0
        %v2887 = vadd.f32 0.0, %v2886
        %v2888 = vpop.f32.mrf.mxu0
        %v2889 = vadd.f32 0.0, %v2888
        %v2890 = vpop.f32.mrf.mxu0
        %v2891 = vadd.f32 0.0, %v2890
        %v2892 = vpop.f32.mrf.mxu0
        %v2893 = vadd.f32 0.0, %v2892
        %2894 = vmatprep.mubr.bf16.mxu0 0
        %2895 = vmatmul.mubr.bf16.gmra.mxu0 %v937
        %v2896 = vpop.f32.mrf.mxu0
        %v2897 = vadd.f32 0.0, %v2896
        %v2898 = vpop.f32.mrf.mxu0
        %v2899 = vadd.f32 0.0, %v2898
        %v2900 = vpop.f32.mrf.mxu0
        %v2901 = vadd.f32 0.0, %v2900
        %v2902 = vpop.f32.mrf.mxu0
        %v2903 = vadd.f32 0.0, %v2902
        %2904 = vdwg.mxu0
        %v2907 = vcombine.high %v2689, %v2689
        %v2909 = vunpack.c.l.s4 1966171168
        %v2910 = vunpack.c.0.s8 %v2909
        %v2911 = vlaneseq
        %v2912 = vshrl.u32 %v2911, 7
        %v2913 = vsub.s32 %v2910, %v2912
        %v2914 = vrot.slane %v2689, %v2913
        %v2916 = vunpack.c.l.s4 1966171168
        %v2917 = vunpack.c.0.s8 %v2916
        %v2918 = vlaneseq
        %v2919 = vshrl.u32 %v2918, 7
        %v2920 = vsub.s32 %v2917, %v2919
        %v2921 = vrot.slane %v2907, %v2920
        %v2922 = vcombine.high %v2914, %v2914
        %v2923 = vcombine.high %v2921, %v2921
        %v2925 = vunpack.c.l.s4 1966171168
        %v2926 = vunpack.c.0.s8 %v2925
        %v2927 = vlaneseq
        %v2928 = vshrl.u32 %v2927, 7
        %v2929 = vsub.s32 %v2926, %v2928
        %v2930 = vrot.slane %v2914, %v2929
        %v2932 = vunpack.c.l.s4 1966171168
        %v2933 = vunpack.c.0.s8 %v2932
        %v2934 = vlaneseq
        %v2935 = vshrl.u32 %v2934, 7
        %v2936 = vsub.s32 %v2933, %v2935
        %v2937 = vrot.slane %v2921, %v2936
        %v2939 = vunpack.c.l.s4 1966171168
        %v2940 = vunpack.c.0.s8 %v2939
        %v2941 = vlaneseq
        %v2942 = vshrl.u32 %v2941, 7
        %v2943 = vsub.s32 %v2940, %v2942
        %v2944 = vrot.slane %v2922, %v2943
        %v2946 = vunpack.c.l.s4 1966171168
        %v2947 = vunpack.c.0.s8 %v2946
        %v2948 = vlaneseq
        %v2949 = vshrl.u32 %v2948, 7
        %v2950 = vsub.s32 %v2947, %v2949
        %v2951 = vrot.slane %v2923, %v2950
        %v2952 = vcombine.high %v2930, %v2930
        %v2953 = vcombine.high %v2937, %v2937
        %v2954 = vcombine.high %v2944, %v2944
        %v2955 = vcombine.high %v2951, %v2951
        %v2956 = vcombine.high %v2692, %v2692
        %v2958 = vunpack.c.l.s4 1966171168
        %v2959 = vunpack.c.0.s8 %v2958
        %v2960 = vlaneseq
        %v2961 = vshrl.u32 %v2960, 7
        %v2962 = vsub.s32 %v2959, %v2961
        %v2963 = vrot.slane %v2692, %v2962
        %v2965 = vunpack.c.l.s4 1966171168
        %v2966 = vunpack.c.0.s8 %v2965
        %v2967 = vlaneseq
        %v2968 = vshrl.u32 %v2967, 7
        %v2969 = vsub.s32 %v2966, %v2968
        %v2970 = vrot.slane %v2956, %v2969
        %v2971 = vcombine.high %v2963, %v2963
        %v2972 = vcombine.high %v2970, %v2970
        %v2974 = vunpack.c.l.s4 1966171168
        %v2975 = vunpack.c.0.s8 %v2974
        %v2976 = vlaneseq
        %v2977 = vshrl.u32 %v2976, 7
        %v2978 = vsub.s32 %v2975, %v2977
        %v2979 = vrot.slane %v2963, %v2978
        %v2981 = vunpack.c.l.s4 1966171168
        %v2982 = vunpack.c.0.s8 %v2981
        %v2983 = vlaneseq
        %v2984 = vshrl.u32 %v2983, 7
        %v2985 = vsub.s32 %v2982, %v2984
        %v2986 = vrot.slane %v2970, %v2985
        %v2988 = vunpack.c.l.s4 1966171168
        %v2989 = vunpack.c.0.s8 %v2988
        %v2990 = vlaneseq
        %v2991 = vshrl.u32 %v2990, 7
        %v2992 = vsub.s32 %v2989, %v2991
        %v2993 = vrot.slane %v2971, %v2992
        %v2995 = vunpack.c.l.s4 1966171168
        %v2996 = vunpack.c.0.s8 %v2995
        %v2997 = vlaneseq
        %v2998 = vshrl.u32 %v2997, 7
        %v2999 = vsub.s32 %v2996, %v2998
        %v3000 = vrot.slane %v2972, %v2999
        %v3001 = vcombine.high %v2979, %v2979
        %v3002 = vcombine.high %v2986, %v2986
        %v3003 = vcombine.high %v2993, %v2993
        %v3004 = vcombine.high %v3000, %v3000
        %v3005 = vlaneseq
        %v3006 = vshrl.u32 %v3005, 7
        %v3007 = vsub.s32 0, %v3006
        %v3008 = vrot.slane %v2930, %v3007
        %v3009 = vlaneseq
        %v3010 = vshrl.u32 %v3009, 7
        %v3011 = vsub.s32 0, %v3010
        %v3012 = vrot.slane %v2944, %v3011
        %v3013 = vlaneseq
        %v3014 = vshrl.u32 %v3013, 7
        %v3015 = vsub.s32 0, %v3014
        %v3016 = vrot.slane %v2952, %v3015
        %v3017 = vlaneseq
        %v3018 = vshrl.u32 %v3017, 7
        %v3019 = vsub.s32 0, %v3018
        %v3020 = vrot.slane %v2954, %v3019
        %v3021 = vlaneseq
        %v3022 = vshrl.u32 %v3021, 7
        %v3023 = vsub.s32 0, %v3022
        %v3024 = vrot.slane %v2937, %v3023
        %v3025 = vlaneseq
        %v3026 = vshrl.u32 %v3025, 7
        %v3027 = vsub.s32 0, %v3026
        %v3028 = vrot.slane %v2951, %v3027
        %v3029 = vlaneseq
        %v3030 = vshrl.u32 %v3029, 7
        %v3031 = vsub.s32 0, %v3030
        %v3032 = vrot.slane %v2953, %v3031
        %v3033 = vlaneseq
        %v3034 = vshrl.u32 %v3033, 7
        %v3035 = vsub.s32 0, %v3034
        %v3036 = vrot.slane %v2955, %v3035
        %v3037 = vlaneseq
        %v3038 = vshrl.u32 %v3037, 7
        %v3039 = vsub.s32 0, %v3038
        %v3040 = vrot.slane %v2979, %v3039
        %v3041 = vlaneseq
        %v3042 = vshrl.u32 %v3041, 7
        %v3043 = vsub.s32 0, %v3042
        %v3044 = vrot.slane %v2993, %v3043
        %v3045 = vlaneseq
        %v3046 = vshrl.u32 %v3045, 7
        %v3047 = vsub.s32 0, %v3046
        %v3048 = vrot.slane %v3001, %v3047
        %v3049 = vlaneseq
        %v3050 = vshrl.u32 %v3049, 7
        %v3051 = vsub.s32 0, %v3050
        %v3052 = vrot.slane %v3003, %v3051
        %v3053 = vlaneseq
        %v3054 = vshrl.u32 %v3053, 7
        %v3055 = vsub.s32 0, %v3054
        %v3056 = vrot.slane %v2986, %v3055
        %v3057 = vlaneseq
        %v3058 = vshrl.u32 %v3057, 7
        %v3059 = vsub.s32 0, %v3058
        %v3060 = vrot.slane %v3000, %v3059
        %v3061 = vlaneseq
        %v3062 = vshrl.u32 %v3061, 7
        %v3063 = vsub.s32 0, %v3062
        %v3064 = vrot.slane %v3002, %v3063
        %v3065 = vlaneseq
        %v3066 = vshrl.u32 %v3065, 7
        %v3067 = vsub.s32 0, %v3066
        %v3068 = vrot.slane %v3004, %v3067
        %v3085 = vsub.f32 %v3008, %v2827
        %v3086 = vsub.f32 %v3012, %v2831
        %v3087 = vsub.f32 %v3016, %v2837
        %v3088 = vsub.f32 %v3020, %v2841
        %v3089 = vsub.f32 %v3024, %v2847
        %v3090 = vsub.f32 %v3028, %v2851
        %v3091 = vsub.f32 %v3032, %v2857
        %v3092 = vsub.f32 %v3036, %v2861
        %v3093 = vsub.f32 %v3040, %v2867
        %v3094 = vsub.f32 %v3044, %v2871
        %v3095 = vsub.f32 %v3048, %v2877
        %v3096 = vsub.f32 %v3052, %v2881
        %v3097 = vsub.f32 %v3056, %v2887
        %v3098 = vsub.f32 %v3060, %v2891
        %v3099 = vsub.f32 %v3064, %v2897
        %v3100 = vsub.f32 %v3068, %v2901
        %v3101 = vadd.f32 %v3085, %v1131
        %v3102 = vadd.f32 %v3086, %v1132
        %v3103 = vadd.f32 %v3087, %v1133
        %v3104 = vadd.f32 %v3088, %v1134
        %v3105 = vadd.f32 %v3089, %v1135
        %v3106 = vadd.f32 %v3090, %v1136
        %v3107 = vadd.f32 %v3091, %v1137
        %v3108 = vadd.f32 %v3092, %v1138
        %v3109 = vadd.f32 %v3093, %v1139
        %v3110 = vadd.f32 %v3094, %v1140
        %v3111 = vadd.f32 %v3095, %v1141
        %v3112 = vadd.f32 %v3096, %v1142
        %v3113 = vadd.f32 %v3097, %v1143
        %v3114 = vadd.f32 %v3098, %v1144
        %v3115 = vadd.f32 %v3099, %v1145
        %v3116 = vadd.f32 %v3100, %v1146
        %s3117 = scalar_lea.vmem [#allocation9], 384
        %v3118 = vld [vmem:[%s3117] sm:$0xf]
        %v3119 = vld [vmem:[%s3117 + $0x4] sm:$0xf]
        %v3120 = vld [vmem:[%s3117 + $0x8] sm:$0xf]
        %v3121 = vld [vmem:[%s3117 + $0xc] sm:$0xf]
        %v3122 = vld [vmem:[%s3117 + $0x10] sm:$0xf]
        %v3123 = vld [vmem:[%s3117 + $0x14] sm:$0xf]
        %v3124 = vld [vmem:[%s3117 + $0x18] sm:$0xf]
        %v3125 = vld [vmem:[%s3117 + $0x1c] sm:$0xf]
        %v3126 = vld [vmem:[%s3117 + $0x20] sm:$0xf]
        %v3127 = vld [vmem:[%s3117 + $0x24] sm:$0xf]
        %v3128 = vld [vmem:[%s3117 + $0x28] sm:$0xf]
        %v3129 = vld [vmem:[%s3117 + $0x2c] sm:$0xf]
        %v3130 = vld [vmem:[%s3117 + $0x30] sm:$0xf]
        %v3131 = vld [vmem:[%s3117 + $0x34] sm:$0xf]
        %v3132 = vld [vmem:[%s3117 + $0x38] sm:$0xf]
        %v3133 = vld [vmem:[%s3117 + $0x3c] sm:$0xf]
        %v3134 = vpack.c.bf16 %v3102, %v3101
        %v3135 = vpack.c.bf16 %v3104, %v3103
        %v3136 = vpack.c.bf16 %v3106, %v3105
        %v3137 = vpack.c.bf16 %v3108, %v3107
        %v3138 = vpack.c.bf16 %v3110, %v3109
        %v3139 = vpack.c.bf16 %v3112, %v3111
        %v3140 = vpack.c.bf16 %v3114, %v3113
        %v3141 = vpack.c.bf16 %v3116, %v3115
        %v3142 = vld [vmem:[#allocation12 + $0x4] sm:$0x1]
        %v3143 = vlaneseq
        %v3144 = vshrl.u32 %v3143, 7
        %v3145 = vsub.s32 0, %v3144
        %v3146 = vrot.slane %v3142, %v3145
        %v3163 = vunpack.c.l.b16 %v3118
        %v3164 = vunpack.c.l.b16 %v3119
        %v3165 = vunpack.c.l.b16 %v3120
        %v3166 = vunpack.c.l.b16 %v3121
        %v3167 = vunpack.c.l.b16 %v3122
        %v3168 = vunpack.c.l.b16 %v3123
        %v3169 = vunpack.c.l.b16 %v3124
        %v3170 = vunpack.c.l.b16 %v3125
        %v3171 = vunpack.c.l.b16 %v3126
        %v3172 = vunpack.c.l.b16 %v3127
        %v3173 = vunpack.c.l.b16 %v3128
        %v3174 = vunpack.c.l.b16 %v3129
        %v3175 = vunpack.c.l.b16 %v3130
        %v3176 = vunpack.c.l.b16 %v3131
        %v3177 = vunpack.c.l.b16 %v3132
        %v3178 = vunpack.c.l.b16 %v3133
        %v3179 = vpack.c.b16 %v3164, %v3163
        %v3180 = vpack.c.b16 %v3166, %v3165
        %v3181 = vpack.c.b16 %v3168, %v3167
        %v3182 = vpack.c.b16 %v3170, %v3169
        %v3183 = vpack.c.b16 %v3172, %v3171
        %v3184 = vpack.c.b16 %v3174, %v3173
        %v3185 = vpack.c.b16 %v3176, %v3175
        %v3186 = vpack.c.b16 %v3178, %v3177
        %3195 = vmatprep.subr.bf16.mxu0 0
        %3196 = vmatpush1.bf16.msra.mxu0 %v3186
        %3197 = vmatprep.subr.bf16.mxu0 0
        %3198 = vmatpush1.bf16.msra.mxu0 %v3185
        %3199 = vmatprep.subr.bf16.mxu0 0
        %3200 = vmatpush1.bf16.msra.mxu0 %v3184
        %3201 = vmatprep.subr.bf16.mxu0 0
        %3202 = vmatpush1.bf16.msra.mxu0 %v3183
        %3203 = vmatprep.subr.bf16.mxu0 0
        %3204 = vmatpush1.bf16.msra.mxu0 %v3182
        %3205 = vmatprep.subr.bf16.mxu0 0
        %3206 = vmatpush1.bf16.msra.mxu0 %v3181
        %3207 = vmatprep.subr.bf16.mxu0 0
        %3208 = vmatpush1.bf16.msra.mxu0 %v3180
        %3209 = vmatprep.subr.bf16.mxu0 0
        %3210 = vmatpush1.bf16.msra.mxu0 %v3179
        %3211 = vmatprep.subr.bf16.mxu0 0
        %3212 = vmatpush2.bf16.msra.mxu0 0
        %3213 = vmatprep.subr.bf16.mxu0 0
        %3214 = vmatpush2.bf16.msra.mxu0 0
        %3215 = vmatprep.subr.bf16.mxu0 0
        %3216 = vmatpush2.bf16.msra.mxu0 0
        %3217 = vmatprep.subr.bf16.mxu0 0
        %3218 = vmatpush2.bf16.msra.mxu0 0
        %3219 = vmatprep.subr.bf16.mxu0 0
        %3220 = vmatpush2.bf16.msra.mxu0 0
        %3221 = vmatprep.subr.bf16.mxu0 0
        %3222 = vmatpush2.bf16.msra.mxu0 0
        %3223 = vmatprep.subr.bf16.mxu0 0
        %3224 = vmatpush2.bf16.msra.mxu0 0
        %3225 = vmatprep.subr.bf16.mxu0 0
        %3226 = vmatpush2.bf16.msra.mxu0 0
        %3227 = vmatprep.mubr.bf16.mxu0 0
        %3228 = vmatmul.mubr.bf16.gmra.mxu0 %v3134
        %v3229 = vpop.f32.mrf.mxu0
        %v3230 = vadd.f32 %v3146, %v3229
        %v3231 = vpop.f32.mrf.mxu0
        %v3232 = vpop.f32.mrf.mxu0
        %v3233 = vadd.f32 %v3146, %v3232
        %v3234 = vpop.f32.mrf.mxu0
        %3235 = vmatprep.mubr.bf16.mxu0 0
        %3236 = vmatmul.mubr.bf16.gmra.mxu0 %v3135
        %v3237 = vpop.f32.mrf.mxu0
        %v3238 = vadd.f32 %v3146, %v3237
        %v3239 = vpop.f32.mrf.mxu0
        %v3240 = vpop.f32.mrf.mxu0
        %v3241 = vadd.f32 %v3146, %v3240
        %v3242 = vpop.f32.mrf.mxu0
        %3243 = vmatprep.mubr.bf16.mxu0 0
        %3244 = vmatmul.mubr.bf16.gmra.mxu0 %v3136
        %v3245 = vpop.f32.mrf.mxu0
        %v3246 = vadd.f32 %v3146, %v3245
        %v3247 = vpop.f32.mrf.mxu0
        %v3248 = vpop.f32.mrf.mxu0
        %v3249 = vadd.f32 %v3146, %v3248
        %v3250 = vpop.f32.mrf.mxu0
        %3251 = vmatprep.mubr.bf16.mxu0 0
        %3252 = vmatmul.mubr.bf16.gmra.mxu0 %v3137
        %v3253 = vpop.f32.mrf.mxu0
        %v3254 = vadd.f32 %v3146, %v3253
        %v3255 = vpop.f32.mrf.mxu0
        %v3256 = vpop.f32.mrf.mxu0
        %v3257 = vadd.f32 %v3146, %v3256
        %v3258 = vpop.f32.mrf.mxu0
        %3259 = vmatprep.mubr.bf16.mxu0 0
        %3260 = vmatmul.mubr.bf16.gmra.mxu0 %v3138
        %v3261 = vpop.f32.mrf.mxu0
        %v3262 = vadd.f32 %v3146, %v3261
        %v3263 = vpop.f32.mrf.mxu0
        %v3264 = vpop.f32.mrf.mxu0
        %v3265 = vadd.f32 %v3146, %v3264
        %v3266 = vpop.f32.mrf.mxu0
        %3267 = vmatprep.mubr.bf16.mxu0 0
        %3268 = vmatmul.mubr.bf16.gmra.mxu0 %v3139
        %v3269 = vpop.f32.mrf.mxu0
        %v3270 = vadd.f32 %v3146, %v3269
        %v3271 = vpop.f32.mrf.mxu0
        %v3272 = vpop.f32.mrf.mxu0
        %v3273 = vadd.f32 %v3146, %v3272
        %v3274 = vpop.f32.mrf.mxu0
        %3275 = vmatprep.mubr.bf16.mxu0 0
        %3276 = vmatmul.mubr.bf16.gmra.mxu0 %v3140
        %v3277 = vpop.f32.mrf.mxu0
        %v3278 = vadd.f32 %v3146, %v3277
        %v3279 = vpop.f32.mrf.mxu0
        %v3280 = vpop.f32.mrf.mxu0
        %v3281 = vadd.f32 %v3146, %v3280
        %v3282 = vpop.f32.mrf.mxu0
        %3283 = vmatprep.mubr.bf16.mxu0 0
        %3284 = vmatmul.mubr.bf16.gmra.mxu0 %v3141
        %v3285 = vpop.f32.mrf.mxu0
        %v3286 = vadd.f32 %v3146, %v3285
        %v3287 = vpop.f32.mrf.mxu0
        %v3288 = vpop.f32.mrf.mxu0
        %v3289 = vadd.f32 %v3146, %v3288
        %v3290 = vpop.f32.mrf.mxu0
        %3291 = vdwg.mxu0
        %v3292 = vmax.f32 %v3230, 0.0
        %v3293 = vmax.f32 %v3233, 0.0
        %v3294 = vmax.f32 %v3238, 0.0
        %v3295 = vmax.f32 %v3241, 0.0
        %v3296 = vmax.f32 %v3246, 0.0
        %v3297 = vmax.f32 %v3249, 0.0
        %v3298 = vmax.f32 %v3254, 0.0
        %v3299 = vmax.f32 %v3257, 0.0
        %v3300 = vmax.f32 %v3262, 0.0
        %v3301 = vmax.f32 %v3265, 0.0
        %v3302 = vmax.f32 %v3270, 0.0
        %v3303 = vmax.f32 %v3273, 0.0
        %v3304 = vmax.f32 %v3278, 0.0
        %v3305 = vmax.f32 %v3281, 0.0
        %v3306 = vmax.f32 %v3286, 0.0
        %v3307 = vmax.f32 %v3289, 0.0
        %s3308 = scalar_lea.vmem [#allocation9], 448
        %v3309 = vld [vmem:[%s3308] sm:$0xf]
        %v3310 = vld [vmem:[%s3308 + $0x4] sm:$0xf]
        %v3311 = vld [vmem:[%s3308 + $0x8] sm:$0xf]
        %v3312 = vld [vmem:[%s3308 + $0xc] sm:$0xf]
        %v3313 = vld [vmem:[%s3308 + $0x10] sm:$0xf]
        %v3314 = vld [vmem:[%s3308 + $0x14] sm:$0xf]
        %v3315 = vld [vmem:[%s3308 + $0x18] sm:$0xf]
        %v3316 = vld [vmem:[%s3308 + $0x1c] sm:$0xf]
        %v3317 = vld [vmem:[%s3308 + $0x20] sm:$0xf]
        %v3318 = vld [vmem:[%s3308 + $0x24] sm:$0xf]
        %v3319 = vld [vmem:[%s3308 + $0x28] sm:$0xf]
        %v3320 = vld [vmem:[%s3308 + $0x2c] sm:$0xf]
        %v3321 = vld [vmem:[%s3308 + $0x30] sm:$0xf]
        %v3322 = vld [vmem:[%s3308 + $0x34] sm:$0xf]
        %v3323 = vld [vmem:[%s3308 + $0x38] sm:$0xf]
        %v3324 = vld [vmem:[%s3308 + $0x3c] sm:$0xf]
        %v3325 = vpack.c.bf16 %v3293, %v3292
        %v3326 = vpack.c.bf16 %v3295, %v3294
        %v3327 = vpack.c.bf16 %v3297, %v3296
        %v3328 = vpack.c.bf16 %v3299, %v3298
        %v3329 = vpack.c.bf16 %v3301, %v3300
        %v3330 = vpack.c.bf16 %v3303, %v3302
        %v3331 = vpack.c.bf16 %v3305, %v3304
        %v3332 = vpack.c.bf16 %v3307, %v3306
        %v3333 = vld [vmem:[#allocation12 + $0x5] sm:$0x1]
        %v3334 = vlaneseq
        %v3335 = vshrl.u32 %v3334, 7
        %v3336 = vsub.s32 0, %v3335
        %v3337 = vrot.slane %v3333, %v3336
        %v3354 = vunpack.c.l.b16 %v3309
        %v3355 = vunpack.c.l.b16 %v3310
        %v3356 = vunpack.c.l.b16 %v3311
        %v3357 = vunpack.c.l.b16 %v3312
        %v3358 = vunpack.c.l.b16 %v3313
        %v3359 = vunpack.c.l.b16 %v3314
        %v3360 = vunpack.c.l.b16 %v3315
        %v3361 = vunpack.c.l.b16 %v3316
        %v3362 = vunpack.c.l.b16 %v3317
        %v3363 = vunpack.c.l.b16 %v3318
        %v3364 = vunpack.c.l.b16 %v3319
        %v3365 = vunpack.c.l.b16 %v3320
        %v3366 = vunpack.c.l.b16 %v3321
        %v3367 = vunpack.c.l.b16 %v3322
        %v3368 = vunpack.c.l.b16 %v3323
        %v3369 = vunpack.c.l.b16 %v3324
        %v3370 = vpack.c.b16 %v3355, %v3354
        %v3371 = vpack.c.b16 %v3357, %v3356
        %v3372 = vpack.c.b16 %v3359, %v3358
        %v3373 = vpack.c.b16 %v3361, %v3360
        %v3374 = vpack.c.b16 %v3363, %v3362
        %v3375 = vpack.c.b16 %v3365, %v3364
        %v3376 = vpack.c.b16 %v3367, %v3366
        %v3377 = vpack.c.b16 %v3369, %v3368
        %3386 = vmatprep.subr.bf16.mxu0 0
        %3387 = vmatpush1.bf16.msra.mxu0 %v3377
        %3388 = vmatprep.subr.bf16.mxu0 0
        %3389 = vmatpush1.bf16.msra.mxu0 %v3376
        %3390 = vmatprep.subr.bf16.mxu0 0
        %3391 = vmatpush1.bf16.msra.mxu0 %v3375
        %3392 = vmatprep.subr.bf16.mxu0 0
        %3393 = vmatpush1.bf16.msra.mxu0 %v3374
        %3394 = vmatprep.subr.bf16.mxu0 0
        %3395 = vmatpush1.bf16.msra.mxu0 %v3373
        %3396 = vmatprep.subr.bf16.mxu0 0
        %3397 = vmatpush1.bf16.msra.mxu0 %v3372
        %3398 = vmatprep.subr.bf16.mxu0 0
        %3399 = vmatpush1.bf16.msra.mxu0 %v3371
        %3400 = vmatprep.subr.bf16.mxu0 0
        %3401 = vmatpush1.bf16.msra.mxu0 %v3370
        %3402 = vmatprep.subr.bf16.mxu0 0
        %3403 = vmatpush2.bf16.msra.mxu0 0
        %3404 = vmatprep.subr.bf16.mxu0 0
        %3405 = vmatpush2.bf16.msra.mxu0 0
        %3406 = vmatprep.subr.bf16.mxu0 0
        %3407 = vmatpush2.bf16.msra.mxu0 0
        %3408 = vmatprep.subr.bf16.mxu0 0
        %3409 = vmatpush2.bf16.msra.mxu0 0
        %3410 = vmatprep.subr.bf16.mxu0 0
        %3411 = vmatpush2.bf16.msra.mxu0 0
        %3412 = vmatprep.subr.bf16.mxu0 0
        %3413 = vmatpush2.bf16.msra.mxu0 0
        %3414 = vmatprep.subr.bf16.mxu0 0
        %3415 = vmatpush2.bf16.msra.mxu0 0
        %3416 = vmatprep.subr.bf16.mxu0 0
        %3417 = vmatpush2.bf16.msra.mxu0 0
        %3418 = vmatprep.mubr.bf16.mxu0 0
        %3419 = vmatmul.mubr.bf16.gmra.mxu0 %v3325
        %v3420 = vpop.f32.mrf.mxu0
        %v3421 = vadd.f32 %v3337, %v3420
        %v3422 = vpop.f32.mrf.mxu0
        %v3423 = vpop.f32.mrf.mxu0
        %v3424 = vadd.f32 %v3337, %v3423
        %v3425 = vpop.f32.mrf.mxu0
        %3426 = vmatprep.mubr.bf16.mxu0 0
        %3427 = vmatmul.mubr.bf16.gmra.mxu0 %v3326
        %v3428 = vpop.f32.mrf.mxu0
        %v3429 = vadd.f32 %v3337, %v3428
        %v3430 = vpop.f32.mrf.mxu0
        %v3431 = vpop.f32.mrf.mxu0
        %v3432 = vadd.f32 %v3337, %v3431
        %v3433 = vpop.f32.mrf.mxu0
        %3434 = vmatprep.mubr.bf16.mxu0 0
        %3435 = vmatmul.mubr.bf16.gmra.mxu0 %v3327
        %v3436 = vpop.f32.mrf.mxu0
        %v3437 = vadd.f32 %v3337, %v3436
        %v3438 = vpop.f32.mrf.mxu0
        %v3439 = vpop.f32.mrf.mxu0
        %v3440 = vadd.f32 %v3337, %v3439
        %v3441 = vpop.f32.mrf.mxu0
        %3442 = vmatprep.mubr.bf16.mxu0 0
        %3443 = vmatmul.mubr.bf16.gmra.mxu0 %v3328
        %v3444 = vpop.f32.mrf.mxu0
        %v3445 = vadd.f32 %v3337, %v3444
        %v3446 = vpop.f32.mrf.mxu0
        %v3447 = vpop.f32.mrf.mxu0
        %v3448 = vadd.f32 %v3337, %v3447
        %v3449 = vpop.f32.mrf.mxu0
        %3450 = vmatprep.mubr.bf16.mxu0 0
        %3451 = vmatmul.mubr.bf16.gmra.mxu0 %v3329
        %v3452 = vpop.f32.mrf.mxu0
        %v3453 = vadd.f32 %v3337, %v3452
        %v3454 = vpop.f32.mrf.mxu0
        %v3455 = vpop.f32.mrf.mxu0
        %v3456 = vadd.f32 %v3337, %v3455
        %v3457 = vpop.f32.mrf.mxu0
        %3458 = vmatprep.mubr.bf16.mxu0 0
        %3459 = vmatmul.mubr.bf16.gmra.mxu0 %v3330
        %v3460 = vpop.f32.mrf.mxu0
        %v3461 = vadd.f32 %v3337, %v3460
        %v3462 = vpop.f32.mrf.mxu0
        %v3463 = vpop.f32.mrf.mxu0
        %v3464 = vadd.f32 %v3337, %v3463
        %v3465 = vpop.f32.mrf.mxu0
        %3466 = vmatprep.mubr.bf16.mxu0 0
        %3467 = vmatmul.mubr.bf16.gmra.mxu0 %v3331
        %v3468 = vpop.f32.mrf.mxu0
        %v3469 = vadd.f32 %v3337, %v3468
        %v3470 = vpop.f32.mrf.mxu0
        %v3471 = vpop.f32.mrf.mxu0
        %v3472 = vadd.f32 %v3337, %v3471
        %v3473 = vpop.f32.mrf.mxu0
        %3474 = vmatprep.mubr.bf16.mxu0 0
        %3475 = vmatmul.mubr.bf16.gmra.mxu0 %v3332
        %v3476 = vpop.f32.mrf.mxu0
        %v3477 = vadd.f32 %v3337, %v3476
        %v3478 = vpop.f32.mrf.mxu0
        %v3479 = vpop.f32.mrf.mxu0
        %v3480 = vadd.f32 %v3337, %v3479
        %v3481 = vpop.f32.mrf.mxu0
        %3482 = vdwg.mxu0
        %v3483 = vrot.slane %v3421, 4
        %v3484 = vmax.f32 %v3421, %v3483
        %v3485 = vrot.slane %v3484, 2
        %v3486 = vmax.f32 %v3484, %v3485
        %v3487 = vrot.slane %v3486, 1
        %v3488 = vmax.f32 %v3486, %v3487
        %v3489 = vrot.slane %v3424, 4
        %v3490 = vmax.f32 %v3424, %v3489
        %v3491 = vrot.slane %v3490, 2
        %v3492 = vmax.f32 %v3490, %v3491
        %v3493 = vrot.slane %v3492, 1
        %v3494 = vmax.f32 %v3492, %v3493
        %v3495 = vrot.slane %v3429, 4
        %v3496 = vmax.f32 %v3429, %v3495
        %v3497 = vrot.slane %v3496, 2
        %v3498 = vmax.f32 %v3496, %v3497
        %v3499 = vrot.slane %v3498, 1
        %v3500 = vmax.f32 %v3498, %v3499
        %v3501 = vrot.slane %v3432, 4
        %v3502 = vmax.f32 %v3432, %v3501
        %v3503 = vrot.slane %v3502, 2
        %v3504 = vmax.f32 %v3502, %v3503
        %v3505 = vrot.slane %v3504, 1
        %v3506 = vmax.f32 %v3504, %v3505
        %v3507 = vrot.slane %v3437, 4
        %v3508 = vmax.f32 %v3437, %v3507
        %v3509 = vrot.slane %v3508, 2
        %v3510 = vmax.f32 %v3508, %v3509
        %v3511 = vrot.slane %v3510, 1
        %v3512 = vmax.f32 %v3510, %v3511
        %v3513 = vrot.slane %v3440, 4
        %v3514 = vmax.f32 %v3440, %v3513
        %v3515 = vrot.slane %v3514, 2
        %v3516 = vmax.f32 %v3514, %v3515
        %v3517 = vrot.slane %v3516, 1
        %v3518 = vmax.f32 %v3516, %v3517
        %v3519 = vrot.slane %v3445, 4
        %v3520 = vmax.f32 %v3445, %v3519
        %v3521 = vrot.slane %v3520, 2
        %v3522 = vmax.f32 %v3520, %v3521
        %v3523 = vrot.slane %v3522, 1
        %v3524 = vmax.f32 %v3522, %v3523
        %v3525 = vrot.slane %v3448, 4
        %v3526 = vmax.f32 %v3448, %v3525
        %v3527 = vrot.slane %v3526, 2
        %v3528 = vmax.f32 %v3526, %v3527
        %v3529 = vrot.slane %v3528, 1
        %v3530 = vmax.f32 %v3528, %v3529
        %v3531 = vrot.slane %v3453, 4
        %v3532 = vmax.f32 %v3453, %v3531
        %v3533 = vrot.slane %v3532, 2
        %v3534 = vmax.f32 %v3532, %v3533
        %v3535 = vrot.slane %v3534, 1
        %v3536 = vmax.f32 %v3534, %v3535
        %v3537 = vrot.slane %v3456, 4
        %v3538 = vmax.f32 %v3456, %v3537
        %v3539 = vrot.slane %v3538, 2
        %v3540 = vmax.f32 %v3538, %v3539
        %v3541 = vrot.slane %v3540, 1
        %v3542 = vmax.f32 %v3540, %v3541
        %v3543 = vrot.slane %v3461, 4
        %v3544 = vmax.f32 %v3461, %v3543
        %v3545 = vrot.slane %v3544, 2
        %v3546 = vmax.f32 %v3544, %v3545
        %v3547 = vrot.slane %v3546, 1
        %v3548 = vmax.f32 %v3546, %v3547
        %v3549 = vrot.slane %v3464, 4
        %v3550 = vmax.f32 %v3464, %v3549
        %v3551 = vrot.slane %v3550, 2
        %v3552 = vmax.f32 %v3550, %v3551
        %v3553 = vrot.slane %v3552, 1
        %v3554 = vmax.f32 %v3552, %v3553
        %v3555 = vrot.slane %v3469, 4
        %v3556 = vmax.f32 %v3469, %v3555
        %v3557 = vrot.slane %v3556, 2
        %v3558 = vmax.f32 %v3556, %v3557
        %v3559 = vrot.slane %v3558, 1
        %v3560 = vmax.f32 %v3558, %v3559
        %v3561 = vrot.slane %v3472, 4
        %v3562 = vmax.f32 %v3472, %v3561
        %v3563 = vrot.slane %v3562, 2
        %v3564 = vmax.f32 %v3562, %v3563
        %v3565 = vrot.slane %v3564, 1
        %v3566 = vmax.f32 %v3564, %v3565
        %v3567 = vrot.slane %v3477, 4
        %v3568 = vmax.f32 %v3477, %v3567
        %v3569 = vrot.slane %v3568, 2
        %v3570 = vmax.f32 %v3568, %v3569
        %v3571 = vrot.slane %v3570, 1
        %v3572 = vmax.f32 %v3570, %v3571
        %v3573 = vrot.slane %v3480, 4
        %v3574 = vmax.f32 %v3480, %v3573
        %v3575 = vrot.slane %v3574, 2
        %v3576 = vmax.f32 %v3574, %v3575
        %v3577 = vrot.slane %v3576, 1
        %v3578 = vmax.f32 %v3576, %v3577
        %v3579 = vsub.f32 %v3421, %v3488
        %v3580 = vsub.f32 %v3424, %v3494
        %v3581 = vsub.f32 %v3429, %v3500
        %v3582 = vsub.f32 %v3432, %v3506
        %v3583 = vsub.f32 %v3437, %v3512
        %v3584 = vsub.f32 %v3440, %v3518
        %v3585 = vsub.f32 %v3445, %v3524
        %v3586 = vsub.f32 %v3448, %v3530
        %v3587 = vsub.f32 %v3453, %v3536
        %v3588 = vsub.f32 %v3456, %v3542
        %v3589 = vsub.f32 %v3461, %v3548
        %v3590 = vsub.f32 %v3464, %v3554
        %v3591 = vsub.f32 %v3469, %v3560
        %v3592 = vsub.f32 %v3472, %v3566
        %v3593 = vsub.f32 %v3477, %v3572
        %v3594 = vsub.f32 %v3480, %v3578
        %v3595 = vmul.f32 %v3579, 1.442695
        %v3596 = vpow.pop %v3595
        %v3597 = vmul.f32 %v3580, 1.442695
        %v3598 = vpow.pop %v3597
        %v3599 = vmul.f32 %v3581, 1.442695
        %v3600 = vpow.pop %v3599
        %v3601 = vmul.f32 %v3582, 1.442695
        %v3602 = vpow.pop %v3601
        %v3603 = vmul.f32 %v3583, 1.442695
        %v3604 = vpow.pop %v3603
        %v3605 = vmul.f32 %v3584, 1.442695
        %v3606 = vpow.pop %v3605
        %v3607 = vmul.f32 %v3585, 1.442695
        %v3608 = vpow.pop %v3607
        %v3609 = vmul.f32 %v3586, 1.442695
        %v3610 = vpow.pop %v3609
        %v3611 = vmul.f32 %v3587, 1.442695
        %v3612 = vpow.pop %v3611
        %v3613 = vmul.f32 %v3588, 1.442695
        %v3614 = vpow.pop %v3613
        %v3615 = vmul.f32 %v3589, 1.442695
        %v3616 = vpow.pop %v3615
        %v3617 = vmul.f32 %v3590, 1.442695
        %v3618 = vpow.pop %v3617
        %v3619 = vmul.f32 %v3591, 1.442695
        %v3620 = vpow.pop %v3619
        %v3621 = vmul.f32 %v3592, 1.442695
        %v3622 = vpow.pop %v3621
        %v3623 = vmul.f32 %v3593, 1.442695
        %v3624 = vpow.pop %v3623
        %v3625 = vmul.f32 %v3594, 1.442695
        %v3626 = vpow.pop %v3625
        %v3627 = vadd.f32 %v2829, %v1131
        %v3628 = vadd.f32 %v2833, %v1132
        %v3629 = vadd.f32 %v2839, %v1133
        %v3630 = vadd.f32 %v2843, %v1134
        %v3631 = vadd.f32 %v2849, %v1135
        %v3632 = vadd.f32 %v2853, %v1136
        %v3633 = vadd.f32 %v2859, %v1137
        %v3634 = vadd.f32 %v2863, %v1138
        %v3635 = vadd.f32 %v2869, %v1139
        %v3636 = vadd.f32 %v2873, %v1140
        %v3637 = vadd.f32 %v2879, %v1141
        %v3638 = vadd.f32 %v2883, %v1142
        %v3639 = vadd.f32 %v2889, %v1143
        %v3640 = vadd.f32 %v2893, %v1144
        %v3641 = vadd.f32 %v2899, %v1145
        %v3642 = vadd.f32 %v2903, %v1146
        %v3643 = vmul.f32 %v3596, %v3627
        %v3644 = vmul.f32 %v3598, %v3628
        %v3645 = vmul.f32 %v3600, %v3629
        %v3646 = vmul.f32 %v3602, %v3630
        %v3647 = vmul.f32 %v3604, %v3631
        %v3648 = vmul.f32 %v3606, %v3632
        %v3649 = vmul.f32 %v3608, %v3633
        %v3650 = vmul.f32 %v3610, %v3634
        %v3651 = vmul.f32 %v3612, %v3635
        %v3652 = vmul.f32 %v3614, %v3636
        %v3653 = vmul.f32 %v3616, %v3637
        %v3654 = vmul.f32 %v3618, %v3638
        %v3655 = vmul.f32 %v3620, %v3639
        %v3656 = vmul.f32 %v3622, %v3640
        %v3657 = vmul.f32 %v3624, %v3641
        %v3658 = vmul.f32 %v3626, %v3642
        %v3659 = vrot.slane %v3643, 4
        %v3660 = vadd.f32 %v3643, %v3659
        %v3661 = vrot.slane %v3660, 2
        %v3662 = vadd.f32 %v3660, %v3661
        %v3663 = vrot.slane %v3662, 1
        %v3664 = vadd.f32 %v3662, %v3663
        %v3665 = vrot.slane %v3644, 4
        %v3666 = vadd.f32 %v3644, %v3665
        %v3667 = vrot.slane %v3666, 2
        %v3668 = vadd.f32 %v3666, %v3667
        %v3669 = vrot.slane %v3668, 1
        %v3670 = vadd.f32 %v3668, %v3669
        %v3671 = vrot.slane %v3645, 4
        %v3672 = vadd.f32 %v3645, %v3671
        %v3673 = vrot.slane %v3672, 2
        %v3674 = vadd.f32 %v3672, %v3673
        %v3675 = vrot.slane %v3674, 1
        %v3676 = vadd.f32 %v3674, %v3675
        %v3677 = vrot.slane %v3646, 4
        %v3678 = vadd.f32 %v3646, %v3677
        %v3679 = vrot.slane %v3678, 2
        %v3680 = vadd.f32 %v3678, %v3679
        %v3681 = vrot.slane %v3680, 1
        %v3682 = vadd.f32 %v3680, %v3681
        %v3683 = vrot.slane %v3647, 4
        %v3684 = vadd.f32 %v3647, %v3683
        %v3685 = vrot.slane %v3684, 2
        %v3686 = vadd.f32 %v3684, %v3685
        %v3687 = vrot.slane %v3686, 1
        %v3688 = vadd.f32 %v3686, %v3687
        %v3689 = vrot.slane %v3648, 4
        %v3690 = vadd.f32 %v3648, %v3689
        %v3691 = vrot.slane %v3690, 2
        %v3692 = vadd.f32 %v3690, %v3691
        %v3693 = vrot.slane %v3692, 1
        %v3694 = vadd.f32 %v3692, %v3693
        %v3695 = vrot.slane %v3649, 4
        %v3696 = vadd.f32 %v3649, %v3695
        %v3697 = vrot.slane %v3696, 2
        %v3698 = vadd.f32 %v3696, %v3697
        %v3699 = vrot.slane %v3698, 1
        %v3700 = vadd.f32 %v3698, %v3699
        %v3701 = vrot.slane %v3650, 4
        %v3702 = vadd.f32 %v3650, %v3701
        %v3703 = vrot.slane %v3702, 2
        %v3704 = vadd.f32 %v3702, %v3703
        %v3705 = vrot.slane %v3704, 1
        %v3706 = vadd.f32 %v3704, %v3705
        %v3707 = vrot.slane %v3651, 4
        %v3708 = vadd.f32 %v3651, %v3707
        %v3709 = vrot.slane %v3708, 2
        %v3710 = vadd.f32 %v3708, %v3709
        %v3711 = vrot.slane %v3710, 1
        %v3712 = vadd.f32 %v3710, %v3711
        %v3713 = vrot.slane %v3652, 4
        %v3714 = vadd.f32 %v3652, %v3713
        %v3715 = vrot.slane %v3714, 2
        %v3716 = vadd.f32 %v3714, %v3715
        %v3717 = vrot.slane %v3716, 1
        %v3718 = vadd.f32 %v3716, %v3717
        %v3719 = vrot.slane %v3653, 4
        %v3720 = vadd.f32 %v3653, %v3719
        %v3721 = vrot.slane %v3720, 2
        %v3722 = vadd.f32 %v3720, %v3721
        %v3723 = vrot.slane %v3722, 1
        %v3724 = vadd.f32 %v3722, %v3723
        %v3725 = vrot.slane %v3654, 4
        %v3726 = vadd.f32 %v3654, %v3725
        %v3727 = vrot.slane %v3726, 2
        %v3728 = vadd.f32 %v3726, %v3727
        %v3729 = vrot.slane %v3728, 1
        %v3730 = vadd.f32 %v3728, %v3729
        %v3731 = vrot.slane %v3655, 4
        %v3732 = vadd.f32 %v3655, %v3731
        %v3733 = vrot.slane %v3732, 2
        %v3734 = vadd.f32 %v3732, %v3733
        %v3735 = vrot.slane %v3734, 1
        %v3736 = vadd.f32 %v3734, %v3735
        %v3737 = vrot.slane %v3656, 4
        %v3738 = vadd.f32 %v3656, %v3737
        %v3739 = vrot.slane %v3738, 2
        %v3740 = vadd.f32 %v3738, %v3739
        %v3741 = vrot.slane %v3740, 1
        %v3742 = vadd.f32 %v3740, %v3741
        %v3743 = vrot.slane %v3657, 4
        %v3744 = vadd.f32 %v3657, %v3743
        %v3745 = vrot.slane %v3744, 2
        %v3746 = vadd.f32 %v3744, %v3745
        %v3747 = vrot.slane %v3746, 1
        %v3748 = vadd.f32 %v3746, %v3747
        %v3749 = vrot.slane %v3658, 4
        %v3750 = vadd.f32 %v3658, %v3749
        %v3751 = vrot.slane %v3750, 2
        %v3752 = vadd.f32 %v3750, %v3751
        %v3753 = vrot.slane %v3752, 1
        %v3754 = vadd.f32 %v3752, %v3753
        %v3755 = vrot.slane %v3596, 4
        %v3756 = vadd.f32 %v3596, %v3755
        %v3757 = vrot.slane %v3756, 2
        %v3758 = vadd.f32 %v3756, %v3757
        %v3759 = vrot.slane %v3758, 1
        %v3760 = vadd.f32 %v3758, %v3759
        %v3761 = vrot.slane %v3598, 4
        %v3762 = vadd.f32 %v3598, %v3761
        %v3763 = vrot.slane %v3762, 2
        %v3764 = vadd.f32 %v3762, %v3763
        %v3765 = vrot.slane %v3764, 1
        %v3766 = vadd.f32 %v3764, %v3765
        %v3767 = vrot.slane %v3600, 4
        %v3768 = vadd.f32 %v3600, %v3767
        %v3769 = vrot.slane %v3768, 2
        %v3770 = vadd.f32 %v3768, %v3769
        %v3771 = vrot.slane %v3770, 1
        %v3772 = vadd.f32 %v3770, %v3771
        %v3773 = vrot.slane %v3602, 4
        %v3774 = vadd.f32 %v3602, %v3773
        %v3775 = vrot.slane %v3774, 2
        %v3776 = vadd.f32 %v3774, %v3775
        %v3777 = vrot.slane %v3776, 1
        %v3778 = vadd.f32 %v3776, %v3777
        %v3779 = vrot.slane %v3604, 4
        %v3780 = vadd.f32 %v3604, %v3779
        %v3781 = vrot.slane %v3780, 2
        %v3782 = vadd.f32 %v3780, %v3781
        %v3783 = vrot.slane %v3782, 1
        %v3784 = vadd.f32 %v3782, %v3783
        %v3785 = vrot.slane %v3606, 4
        %v3786 = vadd.f32 %v3606, %v3785
        %v3787 = vrot.slane %v3786, 2
        %v3788 = vadd.f32 %v3786, %v3787
        %v3789 = vrot.slane %v3788, 1
        %v3790 = vadd.f32 %v3788, %v3789
        %v3791 = vrot.slane %v3608, 4
        %v3792 = vadd.f32 %v3608, %v3791
        %v3793 = vrot.slane %v3792, 2
        %v3794 = vadd.f32 %v3792, %v3793
        %v3795 = vrot.slane %v3794, 1
        %v3796 = vadd.f32 %v3794, %v3795
        %v3797 = vrot.slane %v3610, 4
        %v3798 = vadd.f32 %v3610, %v3797
        %v3799 = vrot.slane %v3798, 2
        %v3800 = vadd.f32 %v3798, %v3799
        %v3801 = vrot.slane %v3800, 1
        %v3802 = vadd.f32 %v3800, %v3801
        %v3803 = vrot.slane %v3612, 4
        %v3804 = vadd.f32 %v3612, %v3803
        %v3805 = vrot.slane %v3804, 2
        %v3806 = vadd.f32 %v3804, %v3805
        %v3807 = vrot.slane %v3806, 1
        %v3808 = vadd.f32 %v3806, %v3807
        %v3809 = vrot.slane %v3614, 4
        %v3810 = vadd.f32 %v3614, %v3809
        %v3811 = vrot.slane %v3810, 2
        %v3812 = vadd.f32 %v3810, %v3811
        %v3813 = vrot.slane %v3812, 1
        %v3814 = vadd.f32 %v3812, %v3813
        %v3815 = vrot.slane %v3616, 4
        %v3816 = vadd.f32 %v3616, %v3815
        %v3817 = vrot.slane %v3816, 2
        %v3818 = vadd.f32 %v3816, %v3817
        %v3819 = vrot.slane %v3818, 1
        %v3820 = vadd.f32 %v3818, %v3819
        %v3821 = vrot.slane %v3618, 4
        %v3822 = vadd.f32 %v3618, %v3821
        %v3823 = vrot.slane %v3822, 2
        %v3824 = vadd.f32 %v3822, %v3823
        %v3825 = vrot.slane %v3824, 1
        %v3826 = vadd.f32 %v3824, %v3825
        %v3827 = vrot.slane %v3620, 4
        %v3828 = vadd.f32 %v3620, %v3827
        %v3829 = vrot.slane %v3828, 2
        %v3830 = vadd.f32 %v3828, %v3829
        %v3831 = vrot.slane %v3830, 1
        %v3832 = vadd.f32 %v3830, %v3831
        %v3833 = vrot.slane %v3622, 4
        %v3834 = vadd.f32 %v3622, %v3833
        %v3835 = vrot.slane %v3834, 2
        %v3836 = vadd.f32 %v3834, %v3835
        %v3837 = vrot.slane %v3836, 1
        %v3838 = vadd.f32 %v3836, %v3837
        %v3839 = vrot.slane %v3624, 4
        %v3840 = vadd.f32 %v3624, %v3839
        %v3841 = vrot.slane %v3840, 2
        %v3842 = vadd.f32 %v3840, %v3841
        %v3843 = vrot.slane %v3842, 1
        %v3844 = vadd.f32 %v3842, %v3843
        %v3845 = vrot.slane %v3626, 4
        %v3846 = vadd.f32 %v3626, %v3845
        %v3847 = vrot.slane %v3846, 2
        %v3848 = vadd.f32 %v3846, %v3847
        %v3849 = vrot.slane %v3848, 1
        %v3850 = vadd.f32 %v3848, %v3849
        %v3851 = vrcp.pop %v3760
        %v3852 = vrcp.pop %v3766
        %v3853 = vrcp.pop %v3772
        %v3854 = vrcp.pop %v3778
        %v3855 = vrcp.pop %v3784
        %v3856 = vrcp.pop %v3790
        %v3857 = vrcp.pop %v3796
        %v3858 = vrcp.pop %v3802
        %v3859 = vrcp.pop %v3808
        %v3860 = vrcp.pop %v3814
        %v3861 = vrcp.pop %v3820
        %v3862 = vrcp.pop %v3826
        %v3863 = vrcp.pop %v3832
        %v3864 = vrcp.pop %v3838
        %v3865 = vrcp.pop %v3844
        %v3866 = vrcp.pop %v3850
        %v3867 = vmul.f32 %v3664, %v3851
        %v3868 = vmul.f32 %v3670, %v3852
        %v3869 = vmul.f32 %v3676, %v3853
        %v3870 = vmul.f32 %v3682, %v3854
        %v3871 = vmul.f32 %v3688, %v3855
        %v3872 = vmul.f32 %v3694, %v3856
        %v3873 = vmul.f32 %v3700, %v3857
        %v3874 = vmul.f32 %v3706, %v3858
        %v3875 = vmul.f32 %v3712, %v3859
        %v3876 = vmul.f32 %v3718, %v3860
        %v3877 = vmul.f32 %v3724, %v3861
        %v3878 = vmul.f32 %v3730, %v3862
        %v3879 = vmul.f32 %v3736, %v3863
        %v3880 = vmul.f32 %v3742, %v3864
        %v3881 = vmul.f32 %v3748, %v3865
        %v3882 = vmul.f32 %v3754, %v3866
        %v3883 = vadd.f32 %v2495, %v3867
        %v3884 = vadd.f32 %v2496, %v3868
        %v3885 = vadd.f32 %v2497, %v3869
        %v3886 = vadd.f32 %v2498, %v3870
        %v3887 = vadd.f32 %v2499, %v3871
        %v3888 = vadd.f32 %v2500, %v3872
        %v3889 = vadd.f32 %v2501, %v3873
        %v3890 = vadd.f32 %v2502, %v3874
        %v3891 = vadd.f32 %v2503, %v3875
        %v3892 = vadd.f32 %v2504, %v3876
        %v3893 = vadd.f32 %v2505, %v3877
        %v3894 = vadd.f32 %v2506, %v3878
        %v3895 = vadd.f32 %v2507, %v3879
        %v3896 = vadd.f32 %v2508, %v3880
        %v3897 = vadd.f32 %v2509, %v3881
        %v3898 = vadd.f32 %v2510, %v3882
        %v3899 = vld [vmem:[#allocation12 + $0xa] sm:$0x1]
        %v3900 = vlaneseq
        %v3901 = vshrl.u32 %v3900, 7
        %v3902 = vsub.s32 0, %v3901
        %v3903 = vrot.slane %v3899, %v3902
        %v3904 = vmul.f32 %v3883, %v3903
        %v3905 = vmul.f32 %v3884, %v3903
        %v3906 = vmul.f32 %v3885, %v3903
        %v3907 = vmul.f32 %v3886, %v3903
        %v3908 = vmul.f32 %v3887, %v3903
        %v3909 = vmul.f32 %v3888, %v3903
        %v3910 = vmul.f32 %v3889, %v3903
        %v3911 = vmul.f32 %v3890, %v3903
        %v3912 = vmul.f32 %v3891, %v3903
        %v3913 = vmul.f32 %v3892, %v3903
        %v3914 = vmul.f32 %v3893, %v3903
        %v3915 = vmul.f32 %v3894, %v3903
        %v3916 = vmul.f32 %v3895, %v3903
        %v3917 = vmul.f32 %v3896, %v3903
        %v3918 = vmul.f32 %v3897, %v3903
        %v3919 = vmul.f32 %v3898, %v3903
        %v3920 = vld [vmem:[#allocation12 + $0xb] sm:$0x1]
        %v3921 = vlaneseq
        %v3922 = vshrl.u32 %v3921, 7
        %v3923 = vsub.s32 0, %v3922
        %v3924 = vrot.slane %v3920, %v3923
        %v3925 = vadd.f32 %v3904, %v3924
        %v3926 = vadd.f32 %v3905, %v3924
        %v3927 = vadd.f32 %v3906, %v3924
        %v3928 = vadd.f32 %v3907, %v3924
        %v3929 = vadd.f32 %v3908, %v3924
        %v3930 = vadd.f32 %v3909, %v3924
        %v3931 = vadd.f32 %v3910, %v3924
        %v3932 = vadd.f32 %v3911, %v3924
        %v3933 = vadd.f32 %v3912, %v3924
        %v3934 = vadd.f32 %v3913, %v3924
        %v3935 = vadd.f32 %v3914, %v3924
        %v3936 = vadd.f32 %v3915, %v3924
        %v3937 = vadd.f32 %v3916, %v3924
        %v3938 = vadd.f32 %v3917, %v3924
        %v3939 = vadd.f32 %v3918, %v3924
        %v3940 = vadd.f32 %v3919, %v3924
        %v3943 = vrot.slane %v789, 1
        %v3944 = vrot.slane %v789, 2
        %v3945 = vrot.slane %v789, 3
        %v3946 = vrot.slane %v789, 4
        %v3947 = vrot.slane %v789, 5
        %v3948 = vrot.slane %v789, 6
        %v3949 = vrot.slane %v789, 7
        %v3950 = vrot.slane %v790, 1
        %v3951 = vrot.slane %v790, 2
        %v3952 = vrot.slane %v790, 3
        %v3953 = vrot.slane %v790, 4
        %v3954 = vrot.slane %v790, 5
        %v3955 = vrot.slane %v790, 6
        %v3956 = vrot.slane %v790, 7
        %v3973 = vadd.f32 %v3925, %v789
        %v3974 = vadd.f32 %v3926, %v3943
        %v3975 = vadd.f32 %v3927, %v3944
        %v3976 = vadd.f32 %v3928, %v3945
        %v3977 = vadd.f32 %v3929, %v3946
        %v3978 = vadd.f32 %v3930, %v3947
        %v3979 = vadd.f32 %v3931, %v3948
        %v3980 = vadd.f32 %v3932, %v3949
        %v3981 = vadd.f32 %v3933, %v790
        %v3982 = vadd.f32 %v3934, %v3950
        %v3983 = vadd.f32 %v3935, %v3951
        %v3984 = vadd.f32 %v3936, %v3952
        %v3985 = vadd.f32 %v3937, %v3953
        %v3986 = vadd.f32 %v3938, %v3954
        %v3987 = vadd.f32 %v3939, %v3955
        %v3988 = vadd.f32 %v3940, %v3956
        %v3989 = vld [vmem:[#allocation12 + $0xc] sm:$0x1]
        %v3990 = vlaneseq
        %v3991 = vshrl.u32 %v3990, 7
        %v3992 = vsub.s32 0, %v3991
        %v3993 = vrot.slane %v3989, %v3992
        %v3994 = vmul.f32 %v3973, %v3993
        %v3995 = vmul.f32 %v3974, %v3993
        %v3996 = vmul.f32 %v3975, %v3993
        %v3997 = vmul.f32 %v3976, %v3993
        %v3998 = vmul.f32 %v3977, %v3993
        %v3999 = vmul.f32 %v3978, %v3993
        %v4000 = vmul.f32 %v3979, %v3993
        %v4001 = vmul.f32 %v3980, %v3993
        %v4002 = vmul.f32 %v3981, %v3993
        %v4003 = vmul.f32 %v3982, %v3993
        %v4004 = vmul.f32 %v3983, %v3993
        %v4005 = vmul.f32 %v3984, %v3993
        %v4006 = vmul.f32 %v3985, %v3993
        %v4007 = vmul.f32 %v3986, %v3993
        %v4008 = vmul.f32 %v3987, %v3993
        %v4009 = vmul.f32 %v3988, %v3993
        %v4010 = vld [vmem:[#allocation12 + $0xd] sm:$0x1]
        %v4011 = vlaneseq
        %v4012 = vshrl.u32 %v4011, 7
        %v4013 = vsub.s32 0, %v4012
        %v4014 = vrot.slane %v4010, %v4013
        %v4015 = vadd.f32 %v3994, %v4014
        %v4016 = vadd.f32 %v3995, %v4014
        %v4017 = vadd.f32 %v3996, %v4014
        %v4018 = vadd.f32 %v3997, %v4014
        %v4019 = vadd.f32 %v3998, %v4014
        %v4020 = vadd.f32 %v3999, %v4014
        %v4021 = vadd.f32 %v4000, %v4014
        %v4022 = vadd.f32 %v4001, %v4014
        %v4023 = vadd.f32 %v4002, %v4014
        %v4024 = vadd.f32 %v4003, %v4014
        %v4025 = vadd.f32 %v4004, %v4014
        %v4026 = vadd.f32 %v4005, %v4014
        %v4027 = vadd.f32 %v4006, %v4014
        %v4028 = vadd.f32 %v4007, %v4014
        %v4029 = vadd.f32 %v4008, %v4014
        %v4030 = vadd.f32 %v4009, %v4014
        %v4047 = vrot.slane %v4016, 7
        %v4048 = vsel %vm2195, %v4047, %v4015
        %v4049 = vrot.slane %v4017, 6
        %v4050 = vsel %vm2197, %v4049, %v4048
        %v4051 = vrot.slane %v4018, 5
        %v4052 = vsel %vm2199, %v4051, %v4050
        %v4053 = vrot.slane %v4019, 4
        %v4054 = vsel %vm2201, %v4053, %v4052
        %v4055 = vrot.slane %v4020, 3
        %v4056 = vsel %vm2203, %v4055, %v4054
        %v4057 = vrot.slane %v4021, 2
        %v4058 = vsel %vm2205, %v4057, %v4056
        %v4059 = vrot.slane %v4022, 1
        %v4060 = vsel %vm2207, %v4059, %v4058
        %v4061 = vrot.slane %v4024, 7
        %v4062 = vsel %vm2195, %v4061, %v4023
        %v4063 = vrot.slane %v4025, 6
        %v4064 = vsel %vm2197, %v4063, %v4062
        %v4065 = vrot.slane %v4026, 5
        %v4066 = vsel %vm2199, %v4065, %v4064
        %v4067 = vrot.slane %v4027, 4
        %v4068 = vsel %vm2201, %v4067, %v4066
        %v4069 = vrot.slane %v4028, 3
        %v4070 = vsel %vm2203, %v4069, %v4068
        %v4071 = vrot.slane %v4029, 2
        %v4072 = vsel %vm2205, %v4071, %v4070
        %v4073 = vrot.slane %v4030, 1
        %v4074 = vsel %vm2207, %v4073, %v4072
        %4077 = vst [vmem:[%s390] sm:$0xff] %v4060
        %4078 = vst [vmem:[%s390 + $0x8] sm:$0xff] %v4074
        %s4079 = sand.u32 %s177, 1
        %s4080 = scalar_lea.sflag [#allocation5], %s4079
        %s4081 = sand.u32 %s177, 1
        %s4082 = smul.addr %s4081, 16
        %s4083 = scalar_lea.vmem [#allocation14], %s4082
        // Predicated region
        $region69: #{tpu_custom_call.1} parent=43 // pred_check
          %p4084 = pneg %p187
        $region70: #{tpu_custom_call.1} parent=43 // pred_check_branch
          %4086 = sbr.rel (%p4084) target = $region72
        $region71: #{tpu_custom_call.1} parent=43 // pred_region
          %s4088 = ssub.s32 256, 256
          %4089 = vsyncadd %s4080, %s4088
          %s4090 = smul.addr %s28, 2
          %s4091 = smul.addr %s4090, 128
          %s4092 = scalar_lea.hbm %s6, %s4091
          %s4093 = sshll.u32 %s4083, 4
          %s4094 = int_to_ptr.vmem [resolvable:$true] %s4093
          %4099 = dma.vmem_to_hbm [thread:$0]  %s4094, 256, %s4092, %s4080, 128, 128, 8
        $region72: #{tpu_custom_call.1} parent=43 // pred_fallthru
          _
      $region44: #{tpu_custom_call.1} parent=5 // pred_fallthru
        _
      %p4100 = scmp.le.s32.totalorder 2, %s23
      // Predicated region
      $region73: #{tpu_custom_call.1} parent=5 // pred_check
        %p4101 = pneg %p4100
      $region74: #{tpu_custom_call.1} parent=5 // pred_check_branch
        %4103 = sbr.rel (%p4101) target = $region76
      $region75: #{tpu_custom_call.1} parent=5 // pred_region
        %s4104 = ssub.s32 %s23, 2
        // Predicated region
        $region77: #{tpu_custom_call.1} parent=75 // pred_check
          %p4105 = pneg %p193
        $region78: #{tpu_custom_call.1} parent=75 // pred_check_branch
          %4107 = sbr.rel (%p4105) target = $region80
        $region79: #{tpu_custom_call.1} parent=75 // pred_region
          %s4108 = sand.u32 %s178, 1
          %s4109 = scalar_lea.sflag [#allocation5], %s4108
          %s4110 = sand.u32 %s178, 1
          %s4111 = smul.addr %s4110, 16
          %s4112 = scalar_lea.vmem [#allocation14], %s4111
          %4113 = dma.done %s4109, 256
        $region80: #{tpu_custom_call.1} parent=75 // pred_fallthru
          _
      $region76: #{tpu_custom_call.1} parent=5 // pred_fallthru
        _
    $region6: #{tpu_custom_call.1} parent=1 // loop_footer
      %s27 = sadd.s32 1, %s23
    $region7: #{tpu_custom_call.1} parent=1 // loop_footer_branch
      %22 = sbr.rel target = $region3
    $region8: #{tpu_custom_call.1} parent=1 // loop_exit
      _
    %4114 = vsyncpa [#allocation4], 1
    %s4115 = scalar_lea.sflag [#allocation4], 1
    %4116 = vsyncpa %s4115, 1
    %4117 = vsyncpa [#allocation7], 1
    %s4118 = scalar_lea.sflag [#allocation7], 1
    %4119 = vsyncpa %s4118, 1
    %4120 = vsyncpa [#allocation10], 1
    %4121 = vsyncpa [#allocation13], 1
    %4122 = vsyncpa [#allocation5], 1
    %s4123 = scalar_lea.sflag [#allocation5], 1
    %4124 = vsyncpa %s4123, 1

</llo_original>
